<compile_context>
chip_gen: v6e
topology: v6e:2x2x1
jax: 0.10.0
libtpu: 0.0.40
codegen_flags: <defaults>
</compile_context>

<pallas_src>
import functools

import numpy as np

import jax
import jax.numpy as jnp
from jax import lax
from jax.experimental import pallas as pl
from jax.experimental.pallas import tpu as pltpu


_APPROX_RECIP = True   # EUP approximate reciprocal in Mish (~1e-4 rel err); set
                       # False for an exact divide when bit-matching a reference.


# ----------------------------------------------------------------------------
# in-kernel helpers
# ----------------------------------------------------------------------------
def _mish_fast(x):
    # mish(x) = x * tanh(softplus(x)) = x * (y^2 + 2y) / (y^2 + 2y + 2), y=e^x
    y = jnp.exp(jnp.minimum(x, 20.0))
    num = y * (y + 2.0)
    den = num + 2.0
    if _APPROX_RECIP:
        return x * num * pl.reciprocal(den, approx=True)
    return x * num / den


# ----------------------------------------------------------------------------
# fused kernel: reverse diffusion -> clip -> packed 2-critic Q -> selection
# ----------------------------------------------------------------------------
def _policy_kernel(sched_ref,                       # (4*T,) SMEM schedule
                   x0_ref, noise_ref, temb_ref,     # (N,A), (T,N,A), (T,H)
                   s_ref, low_ref, high_ref,        # (N,S), (1,A), (1,A)
                   w1x_ref, w1s_ref, w2_ref, b2_ref, w3_ref, b3_ref,
                   w4_ref, b4_ref,
                   cw1_ref, cb1_ref, cw2_ref, cb2_ref, cw3_ref, cb3_ref,
                   sel_ref, act_ref, val_ref):
    f32 = jnp.float32
    bf16 = jnp.bfloat16
    s = s_ref[...]
    low = low_ref[...]
    high = high_ref[...]
    n_steps = temb_ref.shape[0]

    # resident bf16 weights (f32 biases)
    w1x = w1x_ref[...]
    w2 = w2_ref[...]
    w3 = w3_ref[...]
    w4 = w4_ref[...]
    b2 = b2_ref[...]
    b3 = b3_ref[...]
    b4 = b4_ref[...]

    # state contribution to the denoiser's first layer, hoisted out of the loop
    # (denoiser b1 is already folded into temb_ref host-side)
    hbase = jnp.dot(s.astype(bf16), w1s_ref[...], preferred_element_type=f32)

    # TODO(synk): hold w2/w3 in separate MXU weight registers across the
    # unrolled steps (matmul_push_rhs/acc_lhs/pop) on v6e/v7x.
    def step(i, x):
        temb = temb_ref[pl.ds(i, 1), :]          # (1, H), pre-projected by W1t (+b1)
        h = _mish_fast(jnp.dot(x.astype(bf16), w1x, preferred_element_type=f32)
                       + hbase + temb)
        h = _mish_fast(jnp.dot(h.astype(bf16), w2, preferred_element_type=f32) + b2)
        h = _mish_fast(jnp.dot(h.astype(bf16), w3, preferred_element_type=f32) + b3)
        eps = jnp.dot(h.astype(bf16), w4, preferred_element_type=f32) + b4
        src = sched_ref[4 * i]
        srm1 = sched_ref[4 * i + 1]
        c1 = sched_ref[4 * i + 2]
        c2 = sched_ref[4 * i + 3]
        x0 = jnp.clip(src * x - srm1 * eps, low, high)
        # posterior noise is pre-scaled by sqrt(post_var) (zero on final step)
        return c1 * x0 + c2 * x + noise_ref[i]

    x = lax.fori_loop(0, n_steps, step, x0_ref[...], unroll=True)

    # clip candidate actions to the Box bounds (matches th.clip in forward())
    a = jnp.clip(x, low, high)
    act_ref[...] = a

    # packed two-critic Q network (ReLU), layer-1 fused to a single matmul on
    # concat(state, action); min over critics.
    sa = jnp.concatenate([s, a], axis=-1).astype(bf16)                # (N, S+A)
    hq = jnp.maximum(jnp.dot(sa, cw1_ref[...], preferred_element_type=f32)
                     + cb1_ref[...], 0.0)
    hq = jnp.maximum(jnp.dot(hq.astype(bf16), cw2_ref[...],
                             preferred_element_type=f32) + cb2_ref[...], 0.0)
    q2 = jnp.dot(hq.astype(bf16), cw3_ref[...],
                 preferred_element_type=f32) + cb3_ref[...]           # (N, 2)

    # ---- vectorized selection epilogue (no per-batch Python loop) ----
    n_rows = act_ref.shape[0]
    n_batch = sel_ref.shape[0]
    n_cand = n_rows // n_batch
    # min over the two critics, laid out as a lane-dense row vector (1, N)
    q_row = jnp.min(jnp.transpose(q2), axis=0, keepdims=True)         # (1, N)
    col = lax.broadcasted_iota(jnp.int32, (n_batch, n_rows), 1)       # (B, N)
    bid = lax.broadcasted_iota(jnp.int32, (n_batch, n_rows), 0)       # (B, N)
    seg = (col >= bid * n_cand) & (col < (bid + 1) * n_cand)          # (B, N)
    q_b = jnp.where(seg, q_row, -jnp.inf)                             # (B, N)
    qmax = jnp.max(q_b, axis=1, keepdims=True)                        # (B, 1)
    colf = col.astype(f32)
    cand = jnp.where(seg & (q_b >= qmax), colf, f32(n_rows))
    first = jnp.min(cand, axis=1, keepdims=True)                      # first argmax
    onehot = (colf == first).astype(f32)                              # (B, N)
    # onehot is exactly 0/1 -> selected action equals one candidate row of `a`
    sel_ref[...] = jnp.dot(onehot, a, preferred_element_type=f32)     # (B, A)
    val_ref[...] = (jnp.sum(jnp.where(seg, q_row, 0.0), axis=1, keepdims=True)
                    * (1.0 / n_cand))                                 # mean min-Q


# ----------------------------------------------------------------------------
# parameter construction (deterministic, synthetic) + critic packing
# ----------------------------------------------------------------------------
def init_params(key, obs_dim, action_dim, t_dim=16, hidden=128,
                q_hidden=128, n_critics=2):
    def lin(k, fan_in, shape):
        return jax.random.normal(k, shape, jnp.float32) / jnp.sqrt(float(fan_in))

    ks = iter(jax.random.split(key, 32))
    dz = lambda *s: jnp.zeros(s, jnp.float32)

    denoiser = dict(
        w1x=lin(next(ks), action_dim, (action_dim, hidden)),
        w1t=lin(next(ks), t_dim, (t_dim, hidden)),
        w1s=lin(next(ks), obs_dim, (obs_dim, hidden)),
        b1=dz(1, hidden),
        w2=lin(next(ks), hidden, (hidden, hidden)), b2=dz(1, hidden),
        w3=lin(next(ks), hidden, (hidden, hidden)), b3=dz(1, hidden),
        w4=lin(next(ks), hidden, (hidden, action_dim)), b4=dz(1, action_dim),
    )
    time_mlp = dict(
        w1=lin(next(ks), t_dim, (t_dim, 2 * t_dim)), b1=dz(2 * t_dim),
        w2=lin(next(ks), 2 * t_dim, (2 * t_dim, t_dim)), b2=dz(t_dim),
    )
    critics = dict(
        w1s=lin(next(ks), obs_dim, (n_critics, obs_dim, q_hidden)),
        w1a=lin(next(ks), action_dim, (n_critics, action_dim, q_hidden)),
        b1=dz(n_critics, 1, q_hidden),
        w2=lin(next(ks), q_hidden, (n_critics, q_hidden, q_hidden)),
        b2=dz(n_critics, 1, q_hidden),
        w3=lin(next(ks), q_hidden, (n_critics, q_hidden, 1)),
        b3=dz(n_critics, 1, 1),
    )
    return dict(denoiser=denoiser, time_mlp=time_mlp, critics=critics)


def _block_diag(blocks):
    rows = sum(b.shape[0] for b in blocks)
    cols = sum(b.shape[1] for b in blocks)
    out = jnp.zeros((rows, cols), blocks[0].dtype)
    r = c = 0
    for b in blocks:
        out = out.at[r:r + b.shape[0], c:c + b.shape[1]].set(b)
        r += b.shape[0]
        c += b.shape[1]
    return out


def _pack_critics(cp, dtype=jnp.bfloat16):
    """Pack n_critics MLP critics into one wide network; weights cast to bf16."""
    nc = cp["w1s"].shape[0]
    cw1s = jnp.concatenate([cp["w1s"][i] for i in range(nc)], axis=1)  # (S, nc*Qh)
    cw1a = jnp.concatenate([cp["w1a"][i] for i in range(nc)], axis=1)  # (A, nc*Qh)
    cw1 = jnp.concatenate([cw1s, cw1a], axis=0).astype(dtype)          # (S+A, nc*Qh)
    cb1 = jnp.concatenate([cp["b1"][i] for i in range(nc)], axis=1)
    cw2 = _block_diag([cp["w2"][i] for i in range(nc)]).astype(dtype)
    cb2 = jnp.concatenate([cp["b2"][i] for i in range(nc)], axis=1)
    cw3 = _block_diag([cp["w3"][i] for i in range(nc)]).astype(dtype)
    cb3 = jnp.concatenate([cp["b3"][i] for i in range(nc)], axis=1)
    return cw1, cb1, cw2, cb2, cw3, cb3


# ----------------------------------------------------------------------------
# full forward pass of Diffusion_ActorCriticPolicy
# ----------------------------------------------------------------------------
def diffusion_actor_critic_forward(state, params, key, action_low, action_high,
                                   n_actions=16, n_timesteps=5):
    b, _ = state.shape
    a_dim = action_low.shape[-1]
    n = b * n_actions
    dp, tp, cp = params["denoiser"], params["time_mlp"], params["critics"]
    t_dim = tp["w1"].shape[0]
    bf16 = jnp.bfloat16

    low2 = action_low.reshape(1, a_dim).astype(jnp.float32)
    high2 = action_high.reshape(1, a_dim).astype(jnp.float32)
    # replicated state is DMA'd into the single fused kernel exactly once
    s_rep = jnp.repeat(state.astype(jnp.float32), n_actions, axis=0)    # (N, S)

    # ---- static DDPM schedule (linear betas), execution order, flat for SMEM ----
    t_exec = np.arange(n_timesteps - 1, -1, -1)            # diffusion t per step
    betas = np.linspace(1e-4, 2e-2, n_timesteps).astype(np.float64)
    alphas = 1.0 - betas
    acp = np.cumprod(alphas)
    acp_prev = np.concatenate([np.ones(1), acp[:-1]])
    sqrt_recip = np.sqrt(1.0 / acp)
    sqrt_recipm1 = np.sqrt(1.0 / acp - 1.0)
    post_var = betas * (1.0 - acp_prev) / (1.0 - acp)
    coef1 = betas * np.sqrt(acp_prev) / (1.0 - acp)
    coef2 = (1.0 - acp_prev) * np.sqrt(alphas) / (1.0 - acp)
    sched = np.stack([sqrt_recip[t_exec], sqrt_recipm1[t_exec],
                      coef1[t_exec], coef2[t_exec]], axis=1)             # (T, 4)
    sched_flat = jnp.asarray(sched.reshape(-1), dtype=jnp.float32)       # (4*T,)
    noise_scale = np.where(t_exec > 0, np.sqrt(post_var[t_exec]), 0.0)   # (T,)

    # ---- all T time embeddings at once, projected through W1t (+ b1) outside ----
    half = t_dim // 2
    freqs = np.exp(-np.log(10000.0) * np.arange(half) / float(half - 1))
    ang = t_exec[:, None].astype(np.float64) * freqs[None, :]
    emb = jnp.asarray(np.concatenate([np.sin(ang), np.cos(ang)], axis=1),
                      dtype=jnp.float32)                              # (T, t_dim)
    h = emb @ tp["w1"] + tp["b1"]
    h = h * jnp.tanh(jax.nn.softplus(h))                              # Mish
    temb = h @ tp["w2"] + tp["b2"]                                    # (T, t_dim)
    temb_proj = temb @ dp["w1t"] + dp["b1"]                           # (T, H), b1 folded

    # ---- all random draws up front; per-step posterior noise pre-scaled ----
    k0, k1 = jax.random.split(key)
    x_init = jax.random.normal(k0, (n, a_dim), jnp.float32)
    noise = (jax.random.normal(k1, (n_timesteps, n, a_dim), jnp.float32)
             * jnp.asarray(noise_scale, jnp.float32)[:, None, None])

    # ---- pack both critics into one wide (2*Qh) bf16 network ----
    cw1, cb1, cw2, cb2, cw3, cb3 = _pack_critics(cp)

    n_inputs = 21
    in_specs = ([pl.BlockSpec(memory_space=pltpu.MemorySpace.SMEM)]
                + [pl.BlockSpec(memory_space=pltpu.MemorySpace.VMEM)]
                * (n_inputs - 1))
    out_specs = (pl.BlockSpec(memory_space=pltpu.MemorySpace.VMEM),) * 3

    selected, all_actions, values = pl.pallas_call(
        _policy_kernel,
        in_specs=in_specs,
        out_specs=out_specs,
        out_shape=(jax.ShapeDtypeStruct((b, a_dim), jnp.float32),
                   jax.ShapeDtypeStruct((n, a_dim), jnp.float32),
                   jax.ShapeDtypeStruct((b, 1), jnp.float32)),
    )(sched_flat, x_init, noise, temb_proj, s_rep, low2, high2,
      dp["w1x"].astype(bf16), dp["w1s"].astype(bf16),
      dp["w2"].astype(bf16), dp["b2"], dp["w3"].astype(bf16), dp["b3"],
      dp["w4"].astype(bf16), dp["b4"],
      cw1, cb1, cw2, cb2, cw3, cb3)

    return selected, all_actions.reshape(b, n_actions, a_dim), values[:, 0]


# ----------------------------------------------------------------------------
if __name__ == "__main__":
    B, OBS_DIM, ACT_DIM = 2, 16, 4
    N_ACTIONS, N_TIMESTEPS = 16, 5

    root = jax.random.PRNGKey(0)
    k_params, k_state, k_fwd = jax.random.split(root, 3)

    params = init_params(k_params, OBS_DIM, ACT_DIM)
    state = jax.random.normal(k_state, (B, OBS_DIM), jnp.float32)
    action_low = -jnp.ones((ACT_DIM,), jnp.float32)      # Box(-1, 1)
    action_high = jnp.ones((ACT_DIM,), jnp.float32)

    fwd = jax.jit(functools.partial(diffusion_actor_critic_forward,
                                    n_actions=N_ACTIONS,
                                    n_timesteps=N_TIMESTEPS))

    selected, all_actions, values = fwd(state, params, k_fwd,
                                        action_low, action_high)
    jax.block_until_ready((selected, all_actions, values))

    assert selected.shape == (B, ACT_DIM)
    assert all_actions.shape == (B, N_ACTIONS, ACT_DIM)
    assert values.shape == (B,)
    assert bool(jnp.all(all_actions <= 1.0)) and bool(jnp.all(all_actions >= -1.0))
    # each selected action must match one of that batch row's candidates
    d = jnp.min(jnp.sum((all_actions - selected[:, None, :]) ** 2, axis=-1), axis=1)
    assert bool(jnp.all(d < 1e-6))
    assert bool(jnp.all(jnp.isfinite(values)))
    print("KERNEL_OK")
</pallas_src>

<mosaic_0001>
module attributes {stable_mosaic.version = 11 : i64} {
  func.func @_policy_kernel(%arg0: memref<20xf32, #tpu.memory_space<smem>>, %arg1: memref<32x4xf32, #tpu.memory_space<vmem>>, %arg2: memref<5x32x4xf32, #tpu.memory_space<vmem>>, %arg3: memref<5x128xf32, #tpu.memory_space<vmem>>, %arg4: memref<32x16xf32, #tpu.memory_space<vmem>>, %arg5: memref<1x4xf32, #tpu.memory_space<vmem>>, %arg6: memref<1x4xf32, #tpu.memory_space<vmem>>, %arg7: memref<4x128xbf16, #tpu.memory_space<vmem>>, %arg8: memref<16x128xbf16, #tpu.memory_space<vmem>>, %arg9: memref<128x128xbf16, #tpu.memory_space<vmem>>, %arg10: memref<1x128xf32, #tpu.memory_space<vmem>>, %arg11: memref<128x128xbf16, #tpu.memory_space<vmem>>, %arg12: memref<1x128xf32, #tpu.memory_space<vmem>>, %arg13: memref<128x4xbf16, #tpu.memory_space<vmem>>, %arg14: memref<1x4xf32, #tpu.memory_space<vmem>>, %arg15: memref<20x256xbf16, #tpu.memory_space<vmem>>, %arg16: memref<1x256xf32, #tpu.memory_space<vmem>>, %arg17: memref<256x256xbf16, #tpu.memory_space<vmem>>, %arg18: memref<1x256xf32, #tpu.memory_space<vmem>>, %arg19: memref<256x2xbf16, #tpu.memory_space<vmem>>, %arg20: memref<1x2xf32, #tpu.memory_space<vmem>>, %arg21: memref<2x4xf32, #tpu.memory_space<vmem>>, %arg22: memref<32x4xf32, #tpu.memory_space<vmem>>, %arg23: memref<2x1xf32, #tpu.memory_space<vmem>>) attributes {dimension_semantics = [], scalar_prefetch = 0 : i64, scratch_operands = 0 : i64, tpu.core_type = #tpu.core_type<tc>} {
    %c0 = arith.constant 0 : index
    %c0_0 = arith.constant 0 : index
    %0 = vector.load %arg4[%c0, %c0_0] : memref<32x16xf32, #tpu.memory_space<vmem>>, vector<32x16xf32>
    %c0_1 = arith.constant 0 : index
    %c0_2 = arith.constant 0 : index
    %1 = vector.load %arg5[%c0_1, %c0_2] : memref<1x4xf32, #tpu.memory_space<vmem>>, vector<1x4xf32>
    %c0_3 = arith.constant 0 : index
    %c0_4 = arith.constant 0 : index
    %2 = vector.load %arg6[%c0_3, %c0_4] : memref<1x4xf32, #tpu.memory_space<vmem>>, vector<1x4xf32>
    %c0_5 = arith.constant 0 : index
    %c0_6 = arith.constant 0 : index
    %3 = vector.load %arg7[%c0_5, %c0_6] : memref<4x128xbf16, #tpu.memory_space<vmem>>, vector<4x128xbf16>
    %c0_7 = arith.constant 0 : index
    %c0_8 = arith.constant 0 : index
    %4 = vector.load %arg9[%c0_7, %c0_8] : memref<128x128xbf16, #tpu.memory_space<vmem>>, vector<128x128xbf16>
    %c0_9 = arith.constant 0 : index
    %c0_10 = arith.constant 0 : index
    %5 = vector.load %arg11[%c0_9, %c0_10] : memref<128x128xbf16, #tpu.memory_space<vmem>>, vector<128x128xbf16>
    %c0_11 = arith.constant 0 : index
    %c0_12 = arith.constant 0 : index
    %6 = vector.load %arg13[%c0_11, %c0_12] : memref<128x4xbf16, #tpu.memory_space<vmem>>, vector<128x4xbf16>
    %c0_13 = arith.constant 0 : index
    %c0_14 = arith.constant 0 : index
    %7 = vector.load %arg10[%c0_13, %c0_14] : memref<1x128xf32, #tpu.memory_space<vmem>>, vector<1x128xf32>
    %c0_15 = arith.constant 0 : index
    %c0_16 = arith.constant 0 : index
    %8 = vector.load %arg12[%c0_15, %c0_16] : memref<1x128xf32, #tpu.memory_space<vmem>>, vector<1x128xf32>
    %c0_17 = arith.constant 0 : index
    %c0_18 = arith.constant 0 : index
    %9 = vector.load %arg14[%c0_17, %c0_18] : memref<1x4xf32, #tpu.memory_space<vmem>>, vector<1x4xf32>
    %10 = arith.truncf %0 : vector<32x16xf32> to vector<32x16xbf16>
    %c0_19 = arith.constant 0 : index
    %c0_20 = arith.constant 0 : index
    %11 = vector.load %arg8[%c0_19, %c0_20] : memref<16x128xbf16, #tpu.memory_space<vmem>>, vector<16x128xbf16>
    %cst = arith.constant dense<0.000000e+00> : vector<32x128xf32>
    %12 = tpu.matmul %10, %11, %cst {dimension_numbers = #tpu.dot_dimension_numbers<[1], [0], [0], [1], [0, 0, 1, 1], [], []>} : vector<32x16xbf16>, vector<16x128xbf16>, vector<32x128xf32> -> vector<32x128xf32>
    %c0_21 = arith.constant 0 : index
    %c0_22 = arith.constant 0 : index
    %13 = vector.load %arg1[%c0_21, %c0_22] : memref<32x4xf32, #tpu.memory_space<vmem>>, vector<32x4xf32>
    %c0_i32 = arith.constant 0 : i32
    %14 = arith.index_cast %c0_i32 : i32 to index
    %c0_23 = arith.constant 0 : index
    %15 = vector.load %arg3[%14, %c0_23] : memref<5x128xf32, #tpu.memory_space<vmem>>, vector<1x128xf32>
    %16 = arith.truncf %13 : vector<32x4xf32> to vector<32x4xbf16>
    %cst_24 = arith.constant dense<0.000000e+00> : vector<32x128xf32>
    %17 = tpu.matmul %16, %3, %cst_24 {dimension_numbers = #tpu.dot_dimension_numbers<[1], [0], [0], [1], [0, 0, 1, 1], [], []>} : vector<32x4xbf16>, vector<4x128xbf16>, vector<32x128xf32> -> vector<32x128xf32>
    %18 = arith.addf %17, %12 : vector<32x128xf32>
    %19 = vector.broadcast %15 : vector<1x128xf32> to vector<32x128xf32>
    %20 = arith.addf %18, %19 : vector<32x128xf32>
    %cst_25 = arith.constant 2.000000e+01 : f32
    %21 = vector.broadcast %cst_25 : f32 to vector<32x128xf32>
    %22 = arith.minimumf %20, %21 : vector<32x128xf32>
    %23 = math.exp %22 : vector<32x128xf32>
    %cst_26 = arith.constant 2.000000e+00 : f32
    %24 = vector.broadcast %cst_26 : f32 to vector<32x128xf32>
    %25 = arith.addf %23, %24 : vector<32x128xf32>
    %26 = arith.mulf %23, %25 : vector<32x128xf32>
    %cst_27 = arith.constant 2.000000e+00 : f32
    %27 = vector.broadcast %cst_27 : f32 to vector<32x128xf32>
    %28 = arith.addf %26, %27 : vector<32x128xf32>
    %29 = arith.mulf %20, %26 : vector<32x128xf32>
    %30 = tpu.reciprocal %28 {approx = true} : vector<32x128xf32> -> vector<32x128xf32>
    %31 = arith.mulf %29, %30 : vector<32x128xf32>
    %32 = arith.truncf %31 : vector<32x128xf32> to vector<32x128xbf16>
    %cst_28 = arith.constant dense<0.000000e+00> : vector<32x128xf32>
    %33 = tpu.matmul %32, %4, %cst_28 {dimension_numbers = #tpu.dot_dimension_numbers<[1], [0], [0], [1], [0, 0, 1, 1], [], []>} : vector<32x128xbf16>, vector<128x128xbf16>, vector<32x128xf32> -> vector<32x128xf32>
    %34 = vector.broadcast %7 : vector<1x128xf32> to vector<32x128xf32>
    %35 = arith.addf %33, %34 : vector<32x128xf32>
    %cst_29 = arith.constant 2.000000e+01 : f32
    %36 = vector.broadcast %cst_29 : f32 to vector<32x128xf32>
    %37 = arith.minimumf %35, %36 : vector<32x128xf32>
    %38 = math.exp %37 : vector<32x128xf32>
    %cst_30 = arith.constant 2.000000e+00 : f32
    %39 = vector.broadcast %cst_30 : f32 to vector<32x128xf32>
    %40 = arith.addf %38, %39 : vector<32x128xf32>
    %41 = arith.mulf %38, %40 : vector<32x128xf32>
    %cst_31 = arith.constant 2.000000e+00 : f32
    %42 = vector.broadcast %cst_31 : f32 to vector<32x128xf32>
    %43 = arith.addf %41, %42 : vector<32x128xf32>
    %44 = arith.mulf %35, %41 : vector<32x128xf32>
    %45 = tpu.reciprocal %43 {approx = true} : vector<32x128xf32> -> vector<32x128xf32>
    %46 = arith.mulf %44, %45 : vector<32x128xf32>
    %47 = arith.truncf %46 : vector<32x128xf32> to vector<32x128xbf16>
    %cst_32 = arith.constant dense<0.000000e+00> : vector<32x128xf32>
    %48 = tpu.matmul %47, %5, %cst_32 {dimension_numbers = #tpu.dot_dimension_numbers<[1], [0], [0], [1], [0, 0, 1, 1], [], []>} : vector<32x128xbf16>, vector<128x128xbf16>, vector<32x128xf32> -> vector<32x128xf32>
    %49 = vector.broadcast %8 : vector<1x128xf32> to vector<32x128xf32>
    %50 = arith.addf %48, %49 : vector<32x128xf32>
    %cst_33 = arith.constant 2.000000e+01 : f32
    %51 = vector.broadcast %cst_33 : f32 to vector<32x128xf32>
    %52 = arith.minimumf %50, %51 : vector<32x128xf32>
    %53 = math.exp %52 : vector<32x128xf32>
    %cst_34 = arith.constant 2.000000e+00 : f32
    %54 = vector.broadcast %cst_34 : f32 to vector<32x128xf32>
    %55 = arith.addf %53, %54 : vector<32x128xf32>
    %56 = arith.mulf %53, %55 : vector<32x128xf32>
    %cst_35 = arith.constant 2.000000e+00 : f32
    %57 = vector.broadcast %cst_35 : f32 to vector<32x128xf32>
    %58 = arith.addf %56, %57 : vector<32x128xf32>
    %59 = arith.mulf %50, %56 : vector<32x128xf32>
    %60 = tpu.reciprocal %58 {approx = true} : vector<32x128xf32> -> vector<32x128xf32>
    %61 = arith.mulf %59, %60 : vector<32x128xf32>
    %62 = arith.truncf %61 : vector<32x128xf32> to vector<32x128xbf16>
    %cst_36 = arith.constant dense<0.000000e+00> : vector<32x4xf32>
    %63 = tpu.matmul %62, %6, %cst_36 {dimension_numbers = #tpu.dot_dimension_numbers<[1], [0], [0], [1], [0, 0, 1, 1], [], []>} : vector<32x128xbf16>, vector<128x4xbf16>, vector<32x4xf32> -> vector<32x4xf32>
    %64 = vector.broadcast %9 : vector<1x4xf32> to vector<32x4xf32>
    %65 = arith.addf %63, %64 : vector<32x4xf32>
    %c4_i32 = arith.constant 4 : i32
    %66 = arith.muli %c4_i32, %c0_i32 : i32
    %67 = arith.index_cast %66 : i32 to index
    %68 = memref.load %arg0[%67] : memref<20xf32, #tpu.memory_space<smem>>
    %c4_i32_37 = arith.constant 4 : i32
    %69 = arith.muli %c4_i32_37, %c0_i32 : i32
    %c1_i32 = arith.constant 1 : i32
    %70 = arith.addi %69, %c1_i32 : i32
    %71 = arith.index_cast %70 : i32 to index
    %72 = memref.load %arg0[%71] : memref<20xf32, #tpu.memory_space<smem>>
    %c4_i32_38 = arith.constant 4 : i32
    %73 = arith.muli %c4_i32_38, %c0_i32 : i32
    %c2_i32 = arith.constant 2 : i32
    %74 = arith.addi %73, %c2_i32 : i32
    %75 = arith.index_cast %74 : i32 to index
    %76 = memref.load %arg0[%75] : memref<20xf32, #tpu.memory_space<smem>>
    %c4_i32_39 = arith.constant 4 : i32
    %77 = arith.muli %c4_i32_39, %c0_i32 : i32
    %c3_i32 = arith.constant 3 : i32
    %78 = arith.addi %77, %c3_i32 : i32
    %79 = arith.index_cast %78 : i32 to index
    %80 = memref.load %arg0[%79] : memref<20xf32, #tpu.memory_space<smem>>
    %81 = vector.broadcast %68 : f32 to vector<32x4xf32>
    %82 = arith.mulf %81, %13 : vector<32x4xf32>
    %83 = vector.broadcast %72 : f32 to vector<32x4xf32>
    %84 = arith.mulf %83, %65 : vector<32x4xf32>
    %85 = arith.subf %82, %84 : vector<32x4xf32>
    %86 = vector.broadcast %1 : vector<1x4xf32> to vector<32x4xf32>
    %87 = arith.maximumf %86, %85 : vector<32x4xf32>
    %88 = vector.broadcast %2 : vector<1x4xf32> to vector<32x4xf32>
    %89 = arith.minimumf %88, %87 : vector<32x4xf32>
    %90 = vector.broadcast %76 : f32 to vector<32x4xf32>
    %91 = arith.mulf %90, %89 : vector<32x4xf32>
    %92 = vector.broadcast %80 : f32 to vector<32x4xf32>
    %93 = arith.mulf %92, %13 : vector<32x4xf32>
    %94 = arith.addf %91, %93 : vector<32x4xf32>
    %95 = arith.index_cast %c0_i32 : i32 to index
    %c0_40 = arith.constant 0 : index
    %c0_41 = arith.constant 0 : index
    %96 = vector.load %arg2[%95, %c0_40, %c0_41] : memref<5x32x4xf32, #tpu.memory_space<vmem>>, vector<1x32x4xf32>
    %97 = vector.shape_cast %96 : vector<1x32x4xf32> to vector<32x4xf32>
    %98 = arith.addf %94, %97 : vector<32x4xf32>
    %c1_i32_42 = arith.constant 1 : i32
    %99 = arith.index_cast %c1_i32_42 : i32 to index
    %c0_43 = arith.constant 0 : index
    %100 = vector.load %arg3[%99, %c0_43] : memref<5x128xf32, #tpu.memory_space<vmem>>, vector<1x128xf32>
    %101 = arith.truncf %98 : vector<32x4xf32> to vector<32x4xbf16>
    %cst_44 = arith.constant dense<0.000000e+00> : vector<32x128xf32>
    %102 = tpu.matmul %101, %3, %cst_44 {dimension_numbers = #tpu.dot_dimension_numbers<[1], [0], [0], [1], [0, 0, 1, 1], [], []>} : vector<32x4xbf16>, vector<4x128xbf16>, vector<32x128xf32> -> vector<32x128xf32>
    %103 = arith.addf %102, %12 : vector<32x128xf32>
    %104 = vector.broadcast %100 : vector<1x128xf32> to vector<32x128xf32>
    %105 = arith.addf %103, %104 : vector<32x128xf32>
    %cst_45 = arith.constant 2.000000e+01 : f32
    %106 = vector.broadcast %cst_45 : f32 to vector<32x128xf32>
    %107 = arith.minimumf %105, %106 : vector<32x128xf32>
    %108 = math.exp %107 : vector<32x128xf32>
    %cst_46 = arith.constant 2.000000e+00 : f32
    %109 = vector.broadcast %cst_46 : f32 to vector<32x128xf32>
    %110 = arith.addf %108, %109 : vector<32x128xf32>
    %111 = arith.mulf %108, %110 : vector<32x128xf32>
    %cst_47 = arith.constant 2.000000e+00 : f32
    %112 = vector.broadcast %cst_47 : f32 to vector<32x128xf32>
    %113 = arith.addf %111, %112 : vector<32x128xf32>
    %114 = arith.mulf %105, %111 : vector<32x128xf32>
    %115 = tpu.reciprocal %113 {approx = true} : vector<32x128xf32> -> vector<32x128xf32>
    %116 = arith.mulf %114, %115 : vector<32x128xf32>
    %117 = arith.truncf %116 : vector<32x128xf32> to vector<32x128xbf16>
    %cst_48 = arith.constant dense<0.000000e+00> : vector<32x128xf32>
    %118 = tpu.matmul %117, %4, %cst_48 {dimension_numbers = #tpu.dot_dimension_numbers<[1], [0], [0], [1], [0, 0, 1, 1], [], []>} : vector<32x128xbf16>, vector<128x128xbf16>, vector<32x128xf32> -> vector<32x128xf32>
    %119 = vector.broadcast %7 : vector<1x128xf32> to vector<32x128xf32>
    %120 = arith.addf %118, %119 : vector<32x128xf32>
    %cst_49 = arith.constant 2.000000e+01 : f32
    %121 = vector.broadcast %cst_49 : f32 to vector<32x128xf32>
    %122 = arith.minimumf %120, %121 : vector<32x128xf32>
    %123 = math.exp %122 : vector<32x128xf32>
    %cst_50 = arith.constant 2.000000e+00 : f32
    %124 = vector.broadcast %cst_50 : f32 to vector<32x128xf32>
    %125 = arith.addf %123, %124 : vector<32x128xf32>
    %126 = arith.mulf %123, %125 : vector<32x128xf32>
    %cst_51 = arith.constant 2.000000e+00 : f32
    %127 = vector.broadcast %cst_51 : f32 to vector<32x128xf32>
    %128 = arith.addf %126, %127 : vector<32x128xf32>
    %129 = arith.mulf %120, %126 : vector<32x128xf32>
    %130 = tpu.reciprocal %128 {approx = true} : vector<32x128xf32> -> vector<32x128xf32>
    %131 = arith.mulf %129, %130 : vector<32x128xf32>
    %132 = arith.truncf %131 : vector<32x128xf32> to vector<32x128xbf16>
    %cst_52 = arith.constant dense<0.000000e+00> : vector<32x128xf32>
    %133 = tpu.matmul %132, %5, %cst_52 {dimension_numbers = #tpu.dot_dimension_numbers<[1], [0], [0], [1], [0, 0, 1, 1], [], []>} : vector<32x128xbf16>, vector<128x128xbf16>, vector<32x128xf32> -> vector<32x128xf32>
    %134 = vector.broadcast %8 : vector<1x128xf32> to vector<32x128xf32>
    %135 = arith.addf %133, %134 : vector<32x128xf32>
    %cst_53 = arith.constant 2.000000e+01 : f32
    %136 = vector.broadcast %cst_53 : f32 to vector<32x128xf32>
    %137 = arith.minimumf %135, %136 : vector<32x128xf32>
    %138 = math.exp %137 : vector<32x128xf32>
    %cst_54 = arith.constant 2.000000e+00 : f32
    %139 = vector.broadcast %cst_54 : f32 to vector<32x128xf32>
    %140 = arith.addf %138, %139 : vector<32x128xf32>
    %141 = arith.mulf %138, %140 : vector<32x128xf32>
    %cst_55 = arith.constant 2.000000e+00 : f32
    %142 = vector.broadcast %cst_55 : f32 to vector<32x128xf32>
    %143 = arith.addf %141, %142 : vector<32x128xf32>
    %144 = arith.mulf %135, %141 : vector<32x128xf32>
    %145 = tpu.reciprocal %143 {approx = true} : vector<32x128xf32> -> vector<32x128xf32>
    %146 = arith.mulf %144, %145 : vector<32x128xf32>
    %147 = arith.truncf %146 : vector<32x128xf32> to vector<32x128xbf16>
    %cst_56 = arith.constant dense<0.000000e+00> : vector<32x4xf32>
    %148 = tpu.matmul %147, %6, %cst_56 {dimension_numbers = #tpu.dot_dimension_numbers<[1], [0], [0], [1], [0, 0, 1, 1], [], []>} : vector<32x128xbf16>, vector<128x4xbf16>, vector<32x4xf32> -> vector<32x4xf32>
    %149 = vector.broadcast %9 : vector<1x4xf32> to vector<32x4xf32>
    %150 = arith.addf %148, %149 : vector<32x4xf32>
    %c4_i32_57 = arith.constant 4 : i32
    %151 = arith.muli %c4_i32_57, %c1_i32_42 : i32
    %152 = arith.index_cast %151 : i32 to index
    %153 = memref.load %arg0[%152] : memref<20xf32, #tpu.memory_space<smem>>
    %c4_i32_58 = arith.constant 4 : i32
    %154 = arith.muli %c4_i32_58, %c1_i32_42 : i32
    %c1_i32_59 = arith.constant 1 : i32
    %155 = arith.addi %154, %c1_i32_59 : i32
    %156 = arith.index_cast %155 : i32 to index
    %157 = memref.load %arg0[%156] : memref<20xf32, #tpu.memory_space<smem>>
    %c4_i32_60 = arith.constant 4 : i32
    %158 = arith.muli %c4_i32_60, %c1_i32_42 : i32
    %c2_i32_61 = arith.constant 2 : i32
    %159 = arith.addi %158, %c2_i32_61 : i32
    %160 = arith.index_cast %159 : i32 to index
    %161 = memref.load %arg0[%160] : memref<20xf32, #tpu.memory_space<smem>>
    %c4_i32_62 = arith.constant 4 : i32
    %162 = arith.muli %c4_i32_62, %c1_i32_42 : i32
    %c3_i32_63 = arith.constant 3 : i32
    %163 = arith.addi %162, %c3_i32_63 : i32
    %164 = arith.index_cast %163 : i32 to index
    %165 = memref.load %arg0[%164] : memref<20xf32, #tpu.memory_space<smem>>
    %166 = vector.broadcast %153 : f32 to vector<32x4xf32>
    %167 = arith.mulf %166, %98 : vector<32x4xf32>
    %168 = vector.broadcast %157 : f32 to vector<32x4xf32>
    %169 = arith.mulf %168, %150 : vector<32x4xf32>
    %170 = arith.subf %167, %169 : vector<32x4xf32>
    %171 = vector.broadcast %1 : vector<1x4xf32> to vector<32x4xf32>
    %172 = arith.maximumf %171, %170 : vector<32x4xf32>
    %173 = vector.broadcast %2 : vector<1x4xf32> to vector<32x4xf32>
    %174 = arith.minimumf %173, %172 : vector<32x4xf32>
    %175 = vector.broadcast %161 : f32 to vector<32x4xf32>
    %176 = arith.mulf %175, %174 : vector<32x4xf32>
    %177 = vector.broadcast %165 : f32 to vector<32x4xf32>
    %178 = arith.mulf %177, %98 : vector<32x4xf32>
    %179 = arith.addf %176, %178 : vector<32x4xf32>
    %180 = arith.index_cast %c1_i32_42 : i32 to index
    %c0_64 = arith.constant 0 : index
    %c0_65 = arith.constant 0 : index
    %181 = vector.load %arg2[%180, %c0_64, %c0_65] : memref<5x32x4xf32, #tpu.memory_space<vmem>>, vector<1x32x4xf32>
    %182 = vector.shape_cast %181 : vector<1x32x4xf32> to vector<32x4xf32>
    %183 = arith.addf %179, %182 : vector<32x4xf32>
    %c2_i32_66 = arith.constant 2 : i32
    %184 = arith.index_cast %c2_i32_66 : i32 to index
    %c0_67 = arith.constant 0 : index
    %185 = vector.load %arg3[%184, %c0_67] : memref<5x128xf32, #tpu.memory_space<vmem>>, vector<1x128xf32>
    %186 = arith.truncf %183 : vector<32x4xf32> to vector<32x4xbf16>
    %cst_68 = arith.constant dense<0.000000e+00> : vector<32x128xf32>
    %187 = tpu.matmul %186, %3, %cst_68 {dimension_numbers = #tpu.dot_dimension_numbers<[1], [0], [0], [1], [0, 0, 1, 1], [], []>} : vector<32x4xbf16>, vector<4x128xbf16>, vector<32x128xf32> -> vector<32x128xf32>
    %188 = arith.addf %187, %12 : vector<32x128xf32>
    %189 = vector.broadcast %185 : vector<1x128xf32> to vector<32x128xf32>
    %190 = arith.addf %188, %189 : vector<32x128xf32>
    %cst_69 = arith.constant 2.000000e+01 : f32
    %191 = vector.broadcast %cst_69 : f32 to vector<32x128xf32>
    %192 = arith.minimumf %190, %191 : vector<32x128xf32>
    %193 = math.exp %192 : vector<32x128xf32>
    %cst_70 = arith.constant 2.000000e+00 : f32
    %194 = vector.broadcast %cst_70 : f32 to vector<32x128xf32>
    %195 = arith.addf %193, %194 : vector<32x128xf32>
    %196 = arith.mulf %193, %195 : vector<32x128xf32>
    %cst_71 = arith.constant 2.000000e+00 : f32
    %197 = vector.broadcast %cst_71 : f32 to vector<32x128xf32>
    %198 = arith.addf %196, %197 : vector<32x128xf32>
    %199 = arith.mulf %190, %196 : vector<32x128xf32>
    %200 = tpu.reciprocal %198 {approx = true} : vector<32x128xf32> -> vector<32x128xf32>
    %201 = arith.mulf %199, %200 : vector<32x128xf32>
    %202 = arith.truncf %201 : vector<32x128xf32> to vector<32x128xbf16>
    %cst_72 = arith.constant dense<0.000000e+00> : vector<32x128xf32>
    %203 = tpu.matmul %202, %4, %cst_72 {dimension_numbers = #tpu.dot_dimension_numbers<[1], [0], [0], [1], [0, 0, 1, 1], [], []>} : vector<32x128xbf16>, vector<128x128xbf16>, vector<32x128xf32> -> vector<32x128xf32>
    %204 = vector.broadcast %7 : vector<1x128xf32> to vector<32x128xf32>
    %205 = arith.addf %203, %204 : vector<32x128xf32>
    %cst_73 = arith.constant 2.000000e+01 : f32
    %206 = vector.broadcast %cst_73 : f32 to vector<32x128xf32>
    %207 = arith.minimumf %205, %206 : vector<32x128xf32>
    %208 = math.exp %207 : vector<32x128xf32>
    %cst_74 = arith.constant 2.000000e+00 : f32
    %209 = vector.broadcast %cst_74 : f32 to vector<32x128xf32>
    %210 = arith.addf %208, %209 : vector<32x128xf32>
    %211 = arith.mulf %208, %210 : vector<32x128xf32>
    %cst_75 = arith.constant 2.000000e+00 : f32
    %212 = vector.broadcast %cst_75 : f32 to vector<32x128xf32>
    %213 = arith.addf %211, %212 : vector<32x128xf32>
    %214 = arith.mulf %205, %211 : vector<32x128xf32>
    %215 = tpu.reciprocal %213 {approx = true} : vector<32x128xf32> -> vector<32x128xf32>
    %216 = arith.mulf %214, %215 : vector<32x128xf32>
    %217 = arith.truncf %216 : vector<32x128xf32> to vector<32x128xbf16>
    %cst_76 = arith.constant dense<0.000000e+00> : vector<32x128xf32>
    %218 = tpu.matmul %217, %5, %cst_76 {dimension_numbers = #tpu.dot_dimension_numbers<[1], [0], [0], [1], [0, 0, 1, 1], [], []>} : vector<32x128xbf16>, vector<128x128xbf16>, vector<32x128xf32> -> vector<32x128xf32>
    %219 = vector.broadcast %8 : vector<1x128xf32> to vector<32x128xf32>
    %220 = arith.addf %218, %219 : vector<32x128xf32>
    %cst_77 = arith.constant 2.000000e+01 : f32
    %221 = vector.broadcast %cst_77 : f32 to vector<32x128xf32>
    %222 = arith.minimumf %220, %221 : vector<32x128xf32>
    %223 = math.exp %222 : vector<32x128xf32>
    %cst_78 = arith.constant 2.000000e+00 : f32
    %224 = vector.broadcast %cst_78 : f32 to vector<32x128xf32>
    %225 = arith.addf %223, %224 : vector<32x128xf32>
    %226 = arith.mulf %223, %225 : vector<32x128xf32>
    %cst_79 = arith.constant 2.000000e+00 : f32
    %227 = vector.broadcast %cst_79 : f32 to vector<32x128xf32>
    %228 = arith.addf %226, %227 : vector<32x128xf32>
    %229 = arith.mulf %220, %226 : vector<32x128xf32>
    %230 = tpu.reciprocal %228 {approx = true} : vector<32x128xf32> -> vector<32x128xf32>
    %231 = arith.mulf %229, %230 : vector<32x128xf32>
    %232 = arith.truncf %231 : vector<32x128xf32> to vector<32x128xbf16>
    %cst_80 = arith.constant dense<0.000000e+00> : vector<32x4xf32>
    %233 = tpu.matmul %232, %6, %cst_80 {dimension_numbers = #tpu.dot_dimension_numbers<[1], [0], [0], [1], [0, 0, 1, 1], [], []>} : vector<32x128xbf16>, vector<128x4xbf16>, vector<32x4xf32> -> vector<32x4xf32>
    %234 = vector.broadcast %9 : vector<1x4xf32> to vector<32x4xf32>
    %235 = arith.addf %233, %234 : vector<32x4xf32>
    %c4_i32_81 = arith.constant 4 : i32
    %236 = arith.muli %c4_i32_81, %c2_i32_66 : i32
    %237 = arith.index_cast %236 : i32 to index
    %238 = memref.load %arg0[%237] : memref<20xf32, #tpu.memory_space<smem>>
    %c4_i32_82 = arith.constant 4 : i32
    %239 = arith.muli %c4_i32_82, %c2_i32_66 : i32
    %c1_i32_83 = arith.constant 1 : i32
    %240 = arith.addi %239, %c1_i32_83 : i32
    %241 = arith.index_cast %240 : i32 to index
    %242 = memref.load %arg0[%241] : memref<20xf32, #tpu.memory_space<smem>>
    %c4_i32_84 = arith.constant 4 : i32
    %243 = arith.muli %c4_i32_84, %c2_i32_66 : i32
    %c2_i32_85 = arith.constant 2 : i32
    %244 = arith.addi %243, %c2_i32_85 : i32
    %245 = arith.index_cast %244 : i32 to index
    %246 = memref.load %arg0[%245] : memref<20xf32, #tpu.memory_space<smem>>
    %c4_i32_86 = arith.constant 4 : i32
    %247 = arith.muli %c4_i32_86, %c2_i32_66 : i32
    %c3_i32_87 = arith.constant 3 : i32
    %248 = arith.addi %247, %c3_i32_87 : i32
    %249 = arith.index_cast %248 : i32 to index
    %250 = memref.load %arg0[%249] : memref<20xf32, #tpu.memory_space<smem>>
    %251 = vector.broadcast %238 : f32 to vector<32x4xf32>
    %252 = arith.mulf %251, %183 : vector<32x4xf32>
    %253 = vector.broadcast %242 : f32 to vector<32x4xf32>
    %254 = arith.mulf %253, %235 : vector<32x4xf32>
    %255 = arith.subf %252, %254 : vector<32x4xf32>
    %256 = vector.broadcast %1 : vector<1x4xf32> to vector<32x4xf32>
    %257 = arith.maximumf %256, %255 : vector<32x4xf32>
    %258 = vector.broadcast %2 : vector<1x4xf32> to vector<32x4xf32>
    %259 = arith.minimumf %258, %257 : vector<32x4xf32>
    %260 = vector.broadcast %246 : f32 to vector<32x4xf32>
    %261 = arith.mulf %260, %259 : vector<32x4xf32>
    %262 = vector.broadcast %250 : f32 to vector<32x4xf32>
    %263 = arith.mulf %262, %183 : vector<32x4xf32>
    %264 = arith.addf %261, %263 : vector<32x4xf32>
    %265 = arith.index_cast %c2_i32_66 : i32 to index
    %c0_88 = arith.constant 0 : index
    %c0_89 = arith.constant 0 : index
    %266 = vector.load %arg2[%265, %c0_88, %c0_89] : memref<5x32x4xf32, #tpu.memory_space<vmem>>, vector<1x32x4xf32>
    %267 = vector.shape_cast %266 : vector<1x32x4xf32> to vector<32x4xf32>
    %268 = arith.addf %264, %267 : vector<32x4xf32>
    %c3_i32_90 = arith.constant 3 : i32
    %269 = arith.index_cast %c3_i32_90 : i32 to index
    %c0_91 = arith.constant 0 : index
    %270 = vector.load %arg3[%269, %c0_91] : memref<5x128xf32, #tpu.memory_space<vmem>>, vector<1x128xf32>
    %271 = arith.truncf %268 : vector<32x4xf32> to vector<32x4xbf16>
    %cst_92 = arith.constant dense<0.000000e+00> : vector<32x128xf32>
    %272 = tpu.matmul %271, %3, %cst_92 {dimension_numbers = #tpu.dot_dimension_numbers<[1], [0], [0], [1], [0, 0, 1, 1], [], []>} : vector<32x4xbf16>, vector<4x128xbf16>, vector<32x128xf32> -> vector<32x128xf32>
    %273 = arith.addf %272, %12 : vector<32x128xf32>
    %274 = vector.broadcast %270 : vector<1x128xf32> to vector<32x128xf32>
    %275 = arith.addf %273, %274 : vector<32x128xf32>
    %cst_93 = arith.constant 2.000000e+01 : f32
    %276 = vector.broadcast %cst_93 : f32 to vector<32x128xf32>
    %277 = arith.minimumf %275, %276 : vector<32x128xf32>
    %278 = math.exp %277 : vector<32x128xf32>
    %cst_94 = arith.constant 2.000000e+00 : f32
    %279 = vector.broadcast %cst_94 : f32 to vector<32x128xf32>
    %280 = arith.addf %278, %279 : vector<32x128xf32>
    %281 = arith.mulf %278, %280 : vector<32x128xf32>
    %cst_95 = arith.constant 2.000000e+00 : f32
    %282 = vector.broadcast %cst_95 : f32 to vector<32x128xf32>
    %283 = arith.addf %281, %282 : vector<32x128xf32>
    %284 = arith.mulf %275, %281 : vector<32x128xf32>
    %285 = tpu.reciprocal %283 {approx = true} : vector<32x128xf32> -> vector<32x128xf32>
    %286 = arith.mulf %284, %285 : vector<32x128xf32>
    %287 = arith.truncf %286 : vector<32x128xf32> to vector<32x128xbf16>
    %cst_96 = arith.constant dense<0.000000e+00> : vector<32x128xf32>
    %288 = tpu.matmul %287, %4, %cst_96 {dimension_numbers = #tpu.dot_dimension_numbers<[1], [0], [0], [1], [0, 0, 1, 1], [], []>} : vector<32x128xbf16>, vector<128x128xbf16>, vector<32x128xf32> -> vector<32x128xf32>
    %289 = vector.broadcast %7 : vector<1x128xf32> to vector<32x128xf32>
    %290 = arith.addf %288, %289 : vector<32x128xf32>
    %cst_97 = arith.constant 2.000000e+01 : f32
    %291 = vector.broadcast %cst_97 : f32 to vector<32x128xf32>
    %292 = arith.minimumf %290, %291 : vector<32x128xf32>
    %293 = math.exp %292 : vector<32x128xf32>
    %cst_98 = arith.constant 2.000000e+00 : f32
    %294 = vector.broadcast %cst_98 : f32 to vector<32x128xf32>
    %295 = arith.addf %293, %294 : vector<32x128xf32>
    %296 = arith.mulf %293, %295 : vector<32x128xf32>
    %cst_99 = arith.constant 2.000000e+00 : f32
    %297 = vector.broadcast %cst_99 : f32 to vector<32x128xf32>
    %298 = arith.addf %296, %297 : vector<32x128xf32>
    %299 = arith.mulf %290, %296 : vector<32x128xf32>
    %300 = tpu.reciprocal %298 {approx = true} : vector<32x128xf32> -> vector<32x128xf32>
    %301 = arith.mulf %299, %300 : vector<32x128xf32>
    %302 = arith.truncf %301 : vector<32x128xf32> to vector<32x128xbf16>
    %cst_100 = arith.constant dense<0.000000e+00> : vector<32x128xf32>
    %303 = tpu.matmul %302, %5, %cst_100 {dimension_numbers = #tpu.dot_dimension_numbers<[1], [0], [0], [1], [0, 0, 1, 1], [], []>} : vector<32x128xbf16>, vector<128x128xbf16>, vector<32x128xf32> -> vector<32x128xf32>
    %304 = vector.broadcast %8 : vector<1x128xf32> to vector<32x128xf32>
    %305 = arith.addf %303, %304 : vector<32x128xf32>
    %cst_101 = arith.constant 2.000000e+01 : f32
    %306 = vector.broadcast %cst_101 : f32 to vector<32x128xf32>
    %307 = arith.minimumf %305, %306 : vector<32x128xf32>
    %308 = math.exp %307 : vector<32x128xf32>
    %cst_102 = arith.constant 2.000000e+00 : f32
    %309 = vector.broadcast %cst_102 : f32 to vector<32x128xf32>
    %310 = arith.addf %308, %309 : vector<32x128xf32>
    %311 = arith.mulf %308, %310 : vector<32x128xf32>
    %cst_103 = arith.constant 2.000000e+00 : f32
    %312 = vector.broadcast %cst_103 : f32 to vector<32x128xf32>
    %313 = arith.addf %311, %312 : vector<32x128xf32>
    %314 = arith.mulf %305, %311 : vector<32x128xf32>
    %315 = tpu.reciprocal %313 {approx = true} : vector<32x128xf32> -> vector<32x128xf32>
    %316 = arith.mulf %314, %315 : vector<32x128xf32>
    %317 = arith.truncf %316 : vector<32x128xf32> to vector<32x128xbf16>
    %cst_104 = arith.constant dense<0.000000e+00> : vector<32x4xf32>
    %318 = tpu.matmul %317, %6, %cst_104 {dimension_numbers = #tpu.dot_dimension_numbers<[1], [0], [0], [1], [0, 0, 1, 1], [], []>} : vector<32x128xbf16>, vector<128x4xbf16>, vector<32x4xf32> -> vector<32x4xf32>
    %319 = vector.broadcast %9 : vector<1x4xf32> to vector<32x4xf32>
    %320 = arith.addf %318, %319 : vector<32x4xf32>
    %c4_i32_105 = arith.constant 4 : i32
    %321 = arith.muli %c4_i32_105, %c3_i32_90 : i32
    %322 = arith.index_cast %321 : i32 to index
    %323 = memref.load %arg0[%322] : memref<20xf32, #tpu.memory_space<smem>>
    %c4_i32_106 = arith.constant 4 : i32
    %324 = arith.muli %c4_i32_106, %c3_i32_90 : i32
    %c1_i32_107 = arith.constant 1 : i32
    %325 = arith.addi %324, %c1_i32_107 : i32
    %326 = arith.index_cast %325 : i32 to index
    %327 = memref.load %arg0[%326] : memref<20xf32, #tpu.memory_space<smem>>
    %c4_i32_108 = arith.constant 4 : i32
    %328 = arith.muli %c4_i32_108, %c3_i32_90 : i32
    %c2_i32_109 = arith.constant 2 : i32
    %329 = arith.addi %328, %c2_i32_109 : i32
    %330 = arith.index_cast %329 : i32 to index
    %331 = memref.load %arg0[%330] : memref<20xf32, #tpu.memory_space<smem>>
    %c4_i32_110 = arith.constant 4 : i32
    %332 = arith.muli %c4_i32_110, %c3_i32_90 : i32
    %c3_i32_111 = arith.constant 3 : i32
    %333 = arith.addi %332, %c3_i32_111 : i32
    %334 = arith.index_cast %333 : i32 to index
    %335 = memref.load %arg0[%334] : memref<20xf32, #tpu.memory_space<smem>>
    %336 = vector.broadcast %323 : f32 to vector<32x4xf32>
    %337 = arith.mulf %336, %268 : vector<32x4xf32>
    %338 = vector.broadcast %327 : f32 to vector<32x4xf32>
    %339 = arith.mulf %338, %320 : vector<32x4xf32>
    %340 = arith.subf %337, %339 : vector<32x4xf32>
    %341 = vector.broadcast %1 : vector<1x4xf32> to vector<32x4xf32>
    %342 = arith.maximumf %341, %340 : vector<32x4xf32>
    %343 = vector.broadcast %2 : vector<1x4xf32> to vector<32x4xf32>
    %344 = arith.minimumf %343, %342 : vector<32x4xf32>
    %345 = vector.broadcast %331 : f32 to vector<32x4xf32>
    %346 = arith.mulf %345, %344 : vector<32x4xf32>
    %347 = vector.broadcast %335 : f32 to vector<32x4xf32>
    %348 = arith.mulf %347, %268 : vector<32x4xf32>
    %349 = arith.addf %346, %348 : vector<32x4xf32>
    %350 = arith.index_cast %c3_i32_90 : i32 to index
    %c0_112 = arith.constant 0 : index
    %c0_113 = arith.constant 0 : index
    %351 = vector.load %arg2[%350, %c0_112, %c0_113] : memref<5x32x4xf32, #tpu.memory_space<vmem>>, vector<1x32x4xf32>
    %352 = vector.shape_cast %351 : vector<1x32x4xf32> to vector<32x4xf32>
    %353 = arith.addf %349, %352 : vector<32x4xf32>
    %c4_i32_114 = arith.constant 4 : i32
    %354 = arith.index_cast %c4_i32_114 : i32 to index
    %c0_115 = arith.constant 0 : index
    %355 = vector.load %arg3[%354, %c0_115] : memref<5x128xf32, #tpu.memory_space<vmem>>, vector<1x128xf32>
    %356 = arith.truncf %353 : vector<32x4xf32> to vector<32x4xbf16>
    %cst_116 = arith.constant dense<0.000000e+00> : vector<32x128xf32>
    %357 = tpu.matmul %356, %3, %cst_116 {dimension_numbers = #tpu.dot_dimension_numbers<[1], [0], [0], [1], [0, 0, 1, 1], [], []>} : vector<32x4xbf16>, vector<4x128xbf16>, vector<32x128xf32> -> vector<32x128xf32>
    %358 = arith.addf %357, %12 : vector<32x128xf32>
    %359 = vector.broadcast %355 : vector<1x128xf32> to vector<32x128xf32>
    %360 = arith.addf %358, %359 : vector<32x128xf32>
    %cst_117 = arith.constant 2.000000e+01 : f32
    %361 = vector.broadcast %cst_117 : f32 to vector<32x128xf32>
    %362 = arith.minimumf %360, %361 : vector<32x128xf32>
    %363 = math.exp %362 : vector<32x128xf32>
    %cst_118 = arith.constant 2.000000e+00 : f32
    %364 = vector.broadcast %cst_118 : f32 to vector<32x128xf32>
    %365 = arith.addf %363, %364 : vector<32x128xf32>
    %366 = arith.mulf %363, %365 : vector<32x128xf32>
    %cst_119 = arith.constant 2.000000e+00 : f32
    %367 = vector.broadcast %cst_119 : f32 to vector<32x128xf32>
    %368 = arith.addf %366, %367 : vector<32x128xf32>
    %369 = arith.mulf %360, %366 : vector<32x128xf32>
    %370 = tpu.reciprocal %368 {approx = true} : vector<32x128xf32> -> vector<32x128xf32>
    %371 = arith.mulf %369, %370 : vector<32x128xf32>
    %372 = arith.truncf %371 : vector<32x128xf32> to vector<32x128xbf16>
    %cst_120 = arith.constant dense<0.000000e+00> : vector<32x128xf32>
    %373 = tpu.matmul %372, %4, %cst_120 {dimension_numbers = #tpu.dot_dimension_numbers<[1], [0], [0], [1], [0, 0, 1, 1], [], []>} : vector<32x128xbf16>, vector<128x128xbf16>, vector<32x128xf32> -> vector<32x128xf32>
    %374 = vector.broadcast %7 : vector<1x128xf32> to vector<32x128xf32>
    %375 = arith.addf %373, %374 : vector<32x128xf32>
    %cst_121 = arith.constant 2.000000e+01 : f32
    %376 = vector.broadcast %cst_121 : f32 to vector<32x128xf32>
    %377 = arith.minimumf %375, %376 : vector<32x128xf32>
    %378 = math.exp %377 : vector<32x128xf32>
    %cst_122 = arith.constant 2.000000e+00 : f32
    %379 = vector.broadcast %cst_122 : f32 to vector<32x128xf32>
    %380 = arith.addf %378, %379 : vector<32x128xf32>
    %381 = arith.mulf %378, %380 : vector<32x128xf32>
    %cst_123 = arith.constant 2.000000e+00 : f32
    %382 = vector.broadcast %cst_123 : f32 to vector<32x128xf32>
    %383 = arith.addf %381, %382 : vector<32x128xf32>
    %384 = arith.mulf %375, %381 : vector<32x128xf32>
    %385 = tpu.reciprocal %383 {approx = true} : vector<32x128xf32> -> vector<32x128xf32>
    %386 = arith.mulf %384, %385 : vector<32x128xf32>
    %387 = arith.truncf %386 : vector<32x128xf32> to vector<32x128xbf16>
    %cst_124 = arith.constant dense<0.000000e+00> : vector<32x128xf32>
    %388 = tpu.matmul %387, %5, %cst_124 {dimension_numbers = #tpu.dot_dimension_numbers<[1], [0], [0], [1], [0, 0, 1, 1], [], []>} : vector<32x128xbf16>, vector<128x128xbf16>, vector<32x128xf32> -> vector<32x128xf32>
    %389 = vector.broadcast %8 : vector<1x128xf32> to vector<32x128xf32>
    %390 = arith.addf %388, %389 : vector<32x128xf32>
    %cst_125 = arith.constant 2.000000e+01 : f32
    %391 = vector.broadcast %cst_125 : f32 to vector<32x128xf32>
    %392 = arith.minimumf %390, %391 : vector<32x128xf32>
    %393 = math.exp %392 : vector<32x128xf32>
    %cst_126 = arith.constant 2.000000e+00 : f32
    %394 = vector.broadcast %cst_126 : f32 to vector<32x128xf32>
    %395 = arith.addf %393, %394 : vector<32x128xf32>
    %396 = arith.mulf %393, %395 : vector<32x128xf32>
    %cst_127 = arith.constant 2.000000e+00 : f32
    %397 = vector.broadcast %cst_127 : f32 to vector<32x128xf32>
    %398 = arith.addf %396, %397 : vector<32x128xf32>
    %399 = arith.mulf %390, %396 : vector<32x128xf32>
    %400 = tpu.reciprocal %398 {approx = true} : vector<32x128xf32> -> vector<32x128xf32>
    %401 = arith.mulf %399, %400 : vector<32x128xf32>
    %402 = arith.truncf %401 : vector<32x128xf32> to vector<32x128xbf16>
    %cst_128 = arith.constant dense<0.000000e+00> : vector<32x4xf32>
    %403 = tpu.matmul %402, %6, %cst_128 {dimension_numbers = #tpu.dot_dimension_numbers<[1], [0], [0], [1], [0, 0, 1, 1], [], []>} : vector<32x128xbf16>, vector<128x4xbf16>, vector<32x4xf32> -> vector<32x4xf32>
    %404 = vector.broadcast %9 : vector<1x4xf32> to vector<32x4xf32>
    %405 = arith.addf %403, %404 : vector<32x4xf32>
    %c4_i32_129 = arith.constant 4 : i32
    %406 = arith.muli %c4_i32_129, %c4_i32_114 : i32
    %407 = arith.index_cast %406 : i32 to index
    %408 = memref.load %arg0[%407] : memref<20xf32, #tpu.memory_space<smem>>
    %c4_i32_130 = arith.constant 4 : i32
    %409 = arith.muli %c4_i32_130, %c4_i32_114 : i32
    %c1_i32_131 = arith.constant 1 : i32
    %410 = arith.addi %409, %c1_i32_131 : i32
    %411 = arith.index_cast %410 : i32 to index
    %412 = memref.load %arg0[%411] : memref<20xf32, #tpu.memory_space<smem>>
    %c4_i32_132 = arith.constant 4 : i32
    %413 = arith.muli %c4_i32_132, %c4_i32_114 : i32
    %c2_i32_133 = arith.constant 2 : i32
    %414 = arith.addi %413, %c2_i32_133 : i32
    %415 = arith.index_cast %414 : i32 to index
    %416 = memref.load %arg0[%415] : memref<20xf32, #tpu.memory_space<smem>>
    %c4_i32_134 = arith.constant 4 : i32
    %417 = arith.muli %c4_i32_134, %c4_i32_114 : i32
    %c3_i32_135 = arith.constant 3 : i32
    %418 = arith.addi %417, %c3_i32_135 : i32
    %419 = arith.index_cast %418 : i32 to index
    %420 = memref.load %arg0[%419] : memref<20xf32, #tpu.memory_space<smem>>
    %421 = vector.broadcast %408 : f32 to vector<32x4xf32>
    %422 = arith.mulf %421, %353 : vector<32x4xf32>
    %423 = vector.broadcast %412 : f32 to vector<32x4xf32>
    %424 = arith.mulf %423, %405 : vector<32x4xf32>
    %425 = arith.subf %422, %424 : vector<32x4xf32>
    %426 = vector.broadcast %1 : vector<1x4xf32> to vector<32x4xf32>
    %427 = arith.maximumf %426, %425 : vector<32x4xf32>
    %428 = vector.broadcast %2 : vector<1x4xf32> to vector<32x4xf32>
    %429 = arith.minimumf %428, %427 : vector<32x4xf32>
    %430 = vector.broadcast %416 : f32 to vector<32x4xf32>
    %431 = arith.mulf %430, %429 : vector<32x4xf32>
    %432 = vector.broadcast %420 : f32 to vector<32x4xf32>
    %433 = arith.mulf %432, %353 : vector<32x4xf32>
    %434 = arith.addf %431, %433 : vector<32x4xf32>
    %435 = arith.index_cast %c4_i32_114 : i32 to index
    %c0_136 = arith.constant 0 : index
    %c0_137 = arith.constant 0 : index
    %436 = vector.load %arg2[%435, %c0_136, %c0_137] : memref<5x32x4xf32, #tpu.memory_space<vmem>>, vector<1x32x4xf32>
    %437 = vector.shape_cast %436 : vector<1x32x4xf32> to vector<32x4xf32>
    %438 = arith.addf %434, %437 : vector<32x4xf32>
    %c5_i32 = arith.constant 5 : i32
    %439 = vector.broadcast %1 : vector<1x4xf32> to vector<32x4xf32>
    %440 = arith.maximumf %439, %438 : vector<32x4xf32>
    %441 = vector.broadcast %2 : vector<1x4xf32> to vector<32x4xf32>
    %442 = arith.minimumf %441, %440 : vector<32x4xf32>
    %c0_138 = arith.constant 0 : index
    %c0_139 = arith.constant 0 : index
    %443 = vector.load %arg22[%c0_138, %c0_139] : memref<32x4xf32, #tpu.memory_space<vmem>>, vector<32x4xf32>
    tpu.vector_store %arg22[%c0_138, %c0_139], %442 {strides = array<i32>} : memref<32x4xf32, #tpu.memory_space<vmem>>, vector<32x4xf32>,
    %444 = tpu.concatenate %0, %442 in 1 : vector<32x16xf32>, vector<32x4xf32> -> vector<32x20xf32>
    %445 = arith.truncf %444 : vector<32x20xf32> to vector<32x20xbf16>
    %c0_140 = arith.constant 0 : index
    %c0_141 = arith.constant 0 : index
    %446 = vector.load %arg15[%c0_140, %c0_141] : memref<20x256xbf16, #tpu.memory_space<vmem>>, vector<20x256xbf16>
    %cst_142 = arith.constant dense<0.000000e+00> : vector<32x256xf32>
    %447 = tpu.matmul %445, %446, %cst_142 {dimension_numbers = #tpu.dot_dimension_numbers<[1], [0], [0], [1], [0, 0, 1, 1], [], []>} : vector<32x20xbf16>, vector<20x256xbf16>, vector<32x256xf32> -> vector<32x256xf32>
    %c0_143 = arith.constant 0 : index
    %c0_144 = arith.constant 0 : index
    %448 = vector.load %arg16[%c0_143, %c0_144] : memref<1x256xf32, #tpu.memory_space<vmem>>, vector<1x256xf32>
    %449 = vector.broadcast %448 : vector<1x256xf32> to vector<32x256xf32>
    %450 = arith.addf %447, %449 : vector<32x256xf32>
    %cst_145 = arith.constant 0.000000e+00 : f32
    %451 = vector.broadcast %cst_145 : f32 to vector<32x256xf32>
    %452 = arith.maximumf %450, %451 : vector<32x256xf32>
    %453 = arith.truncf %452 : vector<32x256xf32> to vector<32x256xbf16>
    %c0_146 = arith.constant 0 : index
    %c0_147 = arith.constant 0 : index
    %454 = vector.load %arg17[%c0_146, %c0_147] : memref<256x256xbf16, #tpu.memory_space<vmem>>, vector<256x256xbf16>
    %cst_148 = arith.constant dense<0.000000e+00> : vector<32x256xf32>
    %455 = tpu.matmul %453, %454, %cst_148 {dimension_numbers = #tpu.dot_dimension_numbers<[1], [0], [0], [1], [0, 0, 1, 1], [], []>} : vector<32x256xbf16>, vector<256x256xbf16>, vector<32x256xf32> -> vector<32x256xf32>
    %c0_149 = arith.constant 0 : index
    %c0_150 = arith.constant 0 : index
    %456 = vector.load %arg18[%c0_149, %c0_150] : memref<1x256xf32, #tpu.memory_space<vmem>>, vector<1x256xf32>
    %457 = vector.broadcast %456 : vector<1x256xf32> to vector<32x256xf32>
    %458 = arith.addf %455, %457 : vector<32x256xf32>
    %cst_151 = arith.constant 0.000000e+00 : f32
    %459 = vector.broadcast %cst_151 : f32 to vector<32x256xf32>
    %460 = arith.maximumf %458, %459 : vector<32x256xf32>
    %461 = arith.truncf %460 : vector<32x256xf32> to vector<32x256xbf16>
    %c0_152 = arith.constant 0 : index
    %c0_153 = arith.constant 0 : index
    %462 = vector.load %arg19[%c0_152, %c0_153] : memref<256x2xbf16, #tpu.memory_space<vmem>>, vector<256x2xbf16>
    %cst_154 = arith.constant dense<0.000000e+00> : vector<32x2xf32>
    %463 = tpu.matmul %461, %462, %cst_154 {dimension_numbers = #tpu.dot_dimension_numbers<[1], [0], [0], [1], [0, 0, 1, 1], [], []>} : vector<32x256xbf16>, vector<256x2xbf16>, vector<32x2xf32> -> vector<32x2xf32>
    %c0_155 = arith.constant 0 : index
    %c0_156 = arith.constant 0 : index
    %464 = vector.load %arg20[%c0_155, %c0_156] : memref<1x2xf32, #tpu.memory_space<vmem>>, vector<1x2xf32>
    %465 = vector.broadcast %464 : vector<1x2xf32> to vector<32x2xf32>
    %466 = arith.addf %463, %465 : vector<32x2xf32>
    %467 = tpu.transpose %466, [1, 0] : vector<32x2xf32> -> vector<2x32xf32>
    %cst_157 = arith.constant dense<0x7F800000> : vector<32xf32>
    %468 = vector.multi_reduction <minimumf>, %467, %cst_157 [0] : vector<2x32xf32> to vector<32xf32>
    %469 = vector.shape_cast %468 : vector<32xf32> to vector<1x32xf32>
    %470 = tpu.iota {dimensions = array<i32: 1>} : vector<2x32xi32>
    %471 = tpu.iota {dimensions = array<i32: 0>} : vector<2x32xi32>
    %c16_i32 = arith.constant 16 : i32
    %472 = vector.broadcast %c16_i32 : i32 to vector<2x32xi32>
    %473 = arith.muli %471, %472 : vector<2x32xi32>
    %474 = arith.cmpi sge, %470, %473 : vector<2x32xi32>
    %c1_i32_158 = arith.constant 1 : i32
    %475 = vector.broadcast %c1_i32_158 : i32 to vector<2x32xi32>
    %476 = arith.addi %471, %475 : vector<2x32xi32>
    %c16_i32_159 = arith.constant 16 : i32
    %477 = vector.broadcast %c16_i32_159 : i32 to vector<2x32xi32>
    %478 = arith.muli %476, %477 : vector<2x32xi32>
    %479 = arith.cmpi slt, %470, %478 : vector<2x32xi32>
    %480 = arith.andi %474, %479 : vector<2x32xi1>
    %cst_160 = arith.constant 0xFF800000 : f32
    %481 = vector.shape_cast %469 : vector<1x32xf32> to vector<1x32xf32>
    %482 = vector.broadcast %481 : vector<1x32xf32> to vector<2x32xf32>
    %483 = vector.broadcast %cst_160 : f32 to vector<2x32xf32>
    %484 = arith.select %480, %482, %483 : vector<2x32xi1>, vector<2x32xf32>
    %cst_161 = arith.constant dense<0xFF800000> : vector<2xf32>
    %485 = vector.multi_reduction <maximumf>, %484, %cst_161 [1] : vector<2x32xf32> to vector<2xf32>
    %486 = vector.shape_cast %485 : vector<2xf32> to vector<2x1xf32>
    %487 = arith.sitofp %470 : vector<2x32xi32> to vector<2x32xf32>
    %488 = vector.broadcast %486 : vector<2x1xf32> to vector<2x32xf32>
    %489 = arith.cmpf oge, %484, %488 : vector<2x32xf32>
    %490 = arith.andi %480, %489 : vector<2x32xi1>
    %cst_162 = arith.constant 3.200000e+01 : f32
    %491 = vector.broadcast %cst_162 : f32 to vector<2x32xf32>
    %492 = arith.select %490, %487, %491 : vector<2x32xi1>, vector<2x32xf32>
    %cst_163 = arith.constant dense<0x7F800000> : vector<2xf32>
    %493 = vector.multi_reduction <minimumf>, %492, %cst_163 [1] : vector<2x32xf32> to vector<2xf32>
    %494 = vector.shape_cast %493 : vector<2xf32> to vector<2x1xf32>
    %495 = vector.broadcast %494 : vector<2x1xf32> to vector<2x32xf32>
    %496 = arith.cmpf oeq, %487, %495 : vector<2x32xf32>
    %497 = arith.extui %496 : vector<2x32xi1> to vector<2x32xi32>
    %498 = arith.sitofp %497 : vector<2x32xi32> to vector<2x32xf32>
    %cst_164 = arith.constant dense<0.000000e+00> : vector<2x4xf32>
    %499 = tpu.matmul %498, %442, %cst_164 {dimension_numbers = #tpu.dot_dimension_numbers<[1], [0], [0], [1], [0, 0, 1, 1], [], []>} : vector<2x32xf32>, vector<32x4xf32>, vector<2x4xf32> -> vector<2x4xf32>
    %c0_165 = arith.constant 0 : index
    %c0_166 = arith.constant 0 : index
    %500 = vector.load %arg21[%c0_165, %c0_166] : memref<2x4xf32, #tpu.memory_space<vmem>>, vector<2x4xf32>
    tpu.vector_store %arg21[%c0_165, %c0_166], %499 {strides = array<i32>} : memref<2x4xf32, #tpu.memory_space<vmem>>, vector<2x4xf32>,
    %cst_167 = arith.constant 0.000000e+00 : f32
    %501 = vector.shape_cast %469 : vector<1x32xf32> to vector<1x32xf32>
    %502 = vector.broadcast %501 : vector<1x32xf32> to vector<2x32xf32>
    %503 = vector.broadcast %cst_167 : f32 to vector<2x32xf32>
    %504 = arith.select %480, %502, %503 : vector<2x32xi1>, vector<2x32xf32>
    %cst_168 = arith.constant dense<0.000000e+00> : vector<2xf32>
    %505 = vector.multi_reduction <add>, %504, %cst_168 [1] : vector<2x32xf32> to vector<2xf32>
    %506 = vector.shape_cast %505 : vector<2xf32> to vector<2x1xf32>
    %cst_169 = arith.constant 6.250000e-02 : f32
    %507 = vector.broadcast %cst_169 : f32 to vector<2x1xf32>
    %508 = arith.mulf %506, %507 : vector<2x1xf32>
    %c0_170 = arith.constant 0 : index
    %c0_171 = arith.constant 0 : index
    %509 = vector.load %arg23[%c0_170, %c0_171] : memref<2x1xf32, #tpu.memory_space<vmem>>, vector<2x1xf32>
    tpu.vector_store %arg23[%c0_170, %c0_171], %508 {strides = array<i32>} : memref<2x1xf32, #tpu.memory_space<vmem>>, vector<2x1xf32>,
    return
  }
}

</mosaic_0001>

<llo_original>
// kernel: diffusion_actor_critic_forward.3
$region0: #{diffusion_actor_critic_forward.3}
  #allocation0 [shape = 'u32[]', space=smem, size = 0x4, offset = 0x4, fixed_abs, tag = 'smem constant byte address 0x4 - core index']
  #allocation1 [shape = 'u32[144,128]{1,0:T(1,128)}', space=vmem, size = 0x12000, scoped, tag = 'internal scratch']
  %s0 = inlined_call_operand.vmem [shape: f32[20], index: 0, kind: input, shape index: {}]
  %s1 = inlined_call_operand.vmem [shape: f32[32,4], index: 1, kind: input, shape index: {}]
  %s2 = inlined_call_operand.vmem [shape: f32[5,32,4], index: 2, kind: input, shape index: {}]
  %s3 = inlined_call_operand.vmem [shape: f32[5,128], index: 3, kind: input, shape index: {}]
  %s4 = inlined_call_operand.vmem [shape: f32[32,16], index: 4, kind: input, shape index: {}]
  %s5 = inlined_call_operand.vmem [shape: f32[1,4], index: 5, kind: input, shape index: {}]
  %s6 = inlined_call_operand.vmem [shape: f32[1,4], index: 6, kind: input, shape index: {}]
  %s7 = inlined_call_operand.vmem [shape: bf16[4,128], index: 7, kind: input, shape index: {}]
  %s8 = inlined_call_operand.vmem [shape: bf16[16,128], index: 8, kind: input, shape index: {}]
  %s9 = inlined_call_operand.vmem [shape: bf16[128,128], index: 9, kind: input, shape index: {}]
  %s10 = inlined_call_operand.vmem [shape: f32[1,128], index: 10, kind: input, shape index: {}]
  %s11 = inlined_call_operand.vmem [shape: bf16[128,128], index: 11, kind: input, shape index: {}]
  %s12 = inlined_call_operand.vmem [shape: f32[1,128], index: 12, kind: input, shape index: {}]
  %s13 = inlined_call_operand.vmem [shape: bf16[128,4], index: 13, kind: input, shape index: {}]
  %s14 = inlined_call_operand.vmem [shape: f32[1,4], index: 14, kind: input, shape index: {}]
  %s15 = inlined_call_operand.vmem [shape: bf16[20,256], index: 15, kind: input, shape index: {}]
  %s16 = inlined_call_operand.vmem [shape: f32[1,256], index: 16, kind: input, shape index: {}]
  %s17 = inlined_call_operand.vmem [shape: bf16[256,256], index: 17, kind: input, shape index: {}]
  %s18 = inlined_call_operand.vmem [shape: f32[1,256], index: 18, kind: input, shape index: {}]
  %s19 = inlined_call_operand.vmem [shape: bf16[256,2], index: 19, kind: input, shape index: {}]
  %s20 = inlined_call_operand.vmem [shape: f32[1,2], index: 20, kind: input, shape index: {}]
  %s21 = inlined_call_operand.hbm [shape: f32[2,4], index: 21, kind: output, shape index: {0}]
  %s22 = inlined_call_operand.vmem [shape: f32[32,4], index: 22, kind: output, shape index: {1}]
  %s23 = inlined_call_operand.vmem [shape: f32[2,1], index: 23, kind: output, shape index: {2}]
  %24 = xla_tuple %s21, %s22, %s23
  %s25 = sld [smem:[#allocation0]]
  $region114: #{diffusion_actor_critic_forward.3} parent=0
    _
  %s27 = ssub.s32 1, %s25
  %s28 = scalar_select 0, %s27, %s25
  $region1: #{diffusion_actor_critic_forward.3} parent=0
    #allocation2 [shape = 'u8[512]{0}', space=smem, size = 0x200, scoped, tag = 'input window, operand 0, single buffered']
    #allocation3 [shape = 's32[1]{0}', space=sflag, size = 0x4, scoped, tag = 'scoped memory for diffusion_actor_critic_forward.3']
    #allocation4 [shape = 's32[1]{0}', space=sflag, size = 0x4, scoped, tag = 'scoped memory for diffusion_actor_critic_forward.3']
    #allocation5 [shape = 'u8[1024]{0}', space=vmem, size = 0x400, scoped, tag = 'output window, operand 0, single buffered']
    %29 = vsyncpa [#allocation4], 0
    %30 = vsyncpa [#allocation3], 0
    // Predicated region
    $region2: #{diffusion_actor_critic_forward.3} parent=1 // pred_check
      _
    $region3: #{diffusion_actor_critic_forward.3} parent=1 // pred_check_branch
      %32 = sbr.rel (0) target = $region5
    $region4: #{diffusion_actor_critic_forward.3} parent=1 // pred_region
      %s34 = ssub.s32 16, 16
      %35 = vsyncadd [#allocation4], %s34
      %s37 = sshll.u32 %s0, 4
      %s38 = int_to_ptr.vmem [resolvable:$true] %s37
      %40 = dma.vmem_to_smem %s38, 16, [#allocation2], [#allocation4]
    $region5: #{diffusion_actor_critic_forward.3} parent=1 // pred_fallthru
      _
    // Predicated region
    $region6: #{diffusion_actor_critic_forward.3} parent=1 // pred_check
      _
    $region7: #{diffusion_actor_critic_forward.3} parent=1 // pred_check_branch
      %42 = sbr.rel (0) target = $region9
    $region8: #{diffusion_actor_critic_forward.3} parent=1 // pred_region
      _
    $region9: #{diffusion_actor_critic_forward.3} parent=1 // pred_fallthru
      _
    // Predicated region
    $region10: #{diffusion_actor_critic_forward.3} parent=1 // pred_check
      _
    $region11: #{diffusion_actor_critic_forward.3} parent=1 // pred_check_branch
      %44 = sbr.rel (0) target = $region13
    $region12: #{diffusion_actor_critic_forward.3} parent=1 // pred_region
      _
    $region13: #{diffusion_actor_critic_forward.3} parent=1 // pred_fallthru
      _
    // Predicated region
    $region14: #{diffusion_actor_critic_forward.3} parent=1 // pred_check
      _
    $region15: #{diffusion_actor_critic_forward.3} parent=1 // pred_check_branch
      %46 = sbr.rel (0) target = $region17
    $region16: #{diffusion_actor_critic_forward.3} parent=1 // pred_region
      _
    $region17: #{diffusion_actor_critic_forward.3} parent=1 // pred_fallthru
      _
    // Predicated region
    $region18: #{diffusion_actor_critic_forward.3} parent=1 // pred_check
      _
    $region19: #{diffusion_actor_critic_forward.3} parent=1 // pred_check_branch
      %48 = sbr.rel (0) target = $region21
    $region20: #{diffusion_actor_critic_forward.3} parent=1 // pred_region
      _
    $region21: #{diffusion_actor_critic_forward.3} parent=1 // pred_fallthru
      _
    // Predicated region
    $region22: #{diffusion_actor_critic_forward.3} parent=1 // pred_check
      _
    $region23: #{diffusion_actor_critic_forward.3} parent=1 // pred_check_branch
      %50 = sbr.rel (0) target = $region25
    $region24: #{diffusion_actor_critic_forward.3} parent=1 // pred_region
      _
    $region25: #{diffusion_actor_critic_forward.3} parent=1 // pred_fallthru
      _
    // Predicated region
    $region26: #{diffusion_actor_critic_forward.3} parent=1 // pred_check
      _
    $region27: #{diffusion_actor_critic_forward.3} parent=1 // pred_check_branch
      %52 = sbr.rel (0) target = $region29
    $region28: #{diffusion_actor_critic_forward.3} parent=1 // pred_region
      _
    $region29: #{diffusion_actor_critic_forward.3} parent=1 // pred_fallthru
      _
    // Predicated region
    $region30: #{diffusion_actor_critic_forward.3} parent=1 // pred_check
      _
    $region31: #{diffusion_actor_critic_forward.3} parent=1 // pred_check_branch
      %54 = sbr.rel (0) target = $region33
    $region32: #{diffusion_actor_critic_forward.3} parent=1 // pred_region
      _
    $region33: #{diffusion_actor_critic_forward.3} parent=1 // pred_fallthru
      _
    // Predicated region
    $region34: #{diffusion_actor_critic_forward.3} parent=1 // pred_check
      _
    $region35: #{diffusion_actor_critic_forward.3} parent=1 // pred_check_branch
      %56 = sbr.rel (0) target = $region37
    $region36: #{diffusion_actor_critic_forward.3} parent=1 // pred_region
      _
    $region37: #{diffusion_actor_critic_forward.3} parent=1 // pred_fallthru
      _
    // Predicated region
    $region38: #{diffusion_actor_critic_forward.3} parent=1 // pred_check
      _
    $region39: #{diffusion_actor_critic_forward.3} parent=1 // pred_check_branch
      %58 = sbr.rel (0) target = $region41
    $region40: #{diffusion_actor_critic_forward.3} parent=1 // pred_region
      _
    $region41: #{diffusion_actor_critic_forward.3} parent=1 // pred_fallthru
      _
    // Predicated region
    $region42: #{diffusion_actor_critic_forward.3} parent=1 // pred_check
      _
    $region43: #{diffusion_actor_critic_forward.3} parent=1 // pred_check_branch
      %60 = sbr.rel (0) target = $region45
    $region44: #{diffusion_actor_critic_forward.3} parent=1 // pred_region
      _
    $region45: #{diffusion_actor_critic_forward.3} parent=1 // pred_fallthru
      _
    // Predicated region
    $region46: #{diffusion_actor_critic_forward.3} parent=1 // pred_check
      _
    $region47: #{diffusion_actor_critic_forward.3} parent=1 // pred_check_branch
      %62 = sbr.rel (0) target = $region49
    $region48: #{diffusion_actor_critic_forward.3} parent=1 // pred_region
      _
    $region49: #{diffusion_actor_critic_forward.3} parent=1 // pred_fallthru
      _
    // Predicated region
    $region50: #{diffusion_actor_critic_forward.3} parent=1 // pred_check
      _
    $region51: #{diffusion_actor_critic_forward.3} parent=1 // pred_check_branch
      %64 = sbr.rel (0) target = $region53
    $region52: #{diffusion_actor_critic_forward.3} parent=1 // pred_region
      _
    $region53: #{diffusion_actor_critic_forward.3} parent=1 // pred_fallthru
      _
    // Predicated region
    $region54: #{diffusion_actor_critic_forward.3} parent=1 // pred_check
      _
    $region55: #{diffusion_actor_critic_forward.3} parent=1 // pred_check_branch
      %66 = sbr.rel (0) target = $region57
    $region56: #{diffusion_actor_critic_forward.3} parent=1 // pred_region
      _
    $region57: #{diffusion_actor_critic_forward.3} parent=1 // pred_fallthru
      _
    // Predicated region
    $region58: #{diffusion_actor_critic_forward.3} parent=1 // pred_check
      _
    $region59: #{diffusion_actor_critic_forward.3} parent=1 // pred_check_branch
      %68 = sbr.rel (0) target = $region61
    $region60: #{diffusion_actor_critic_forward.3} parent=1 // pred_region
      _
    $region61: #{diffusion_actor_critic_forward.3} parent=1 // pred_fallthru
      _
    // Predicated region
    $region62: #{diffusion_actor_critic_forward.3} parent=1 // pred_check
      _
    $region63: #{diffusion_actor_critic_forward.3} parent=1 // pred_check_branch
      %70 = sbr.rel (0) target = $region65
    $region64: #{diffusion_actor_critic_forward.3} parent=1 // pred_region
      _
    $region65: #{diffusion_actor_critic_forward.3} parent=1 // pred_fallthru
      _
    // Predicated region
    $region66: #{diffusion_actor_critic_forward.3} parent=1 // pred_check
      _
    $region67: #{diffusion_actor_critic_forward.3} parent=1 // pred_check_branch
      %72 = sbr.rel (0) target = $region69
    $region68: #{diffusion_actor_critic_forward.3} parent=1 // pred_region
      _
    $region69: #{diffusion_actor_critic_forward.3} parent=1 // pred_fallthru
      _
    // Predicated region
    $region70: #{diffusion_actor_critic_forward.3} parent=1 // pred_check
      _
    $region71: #{diffusion_actor_critic_forward.3} parent=1 // pred_check_branch
      %74 = sbr.rel (0) target = $region73
    $region72: #{diffusion_actor_critic_forward.3} parent=1 // pred_region
      _
    $region73: #{diffusion_actor_critic_forward.3} parent=1 // pred_fallthru
      _
    // Predicated region
    $region74: #{diffusion_actor_critic_forward.3} parent=1 // pred_check
      _
    $region75: #{diffusion_actor_critic_forward.3} parent=1 // pred_check_branch
      %76 = sbr.rel (0) target = $region77
    $region76: #{diffusion_actor_critic_forward.3} parent=1 // pred_region
      _
    $region77: #{diffusion_actor_critic_forward.3} parent=1 // pred_fallthru
      _
    // Predicated region
    $region78: #{diffusion_actor_critic_forward.3} parent=1 // pred_check
      _
    $region79: #{diffusion_actor_critic_forward.3} parent=1 // pred_check_branch
      %78 = sbr.rel (0) target = $region81
    $region80: #{diffusion_actor_critic_forward.3} parent=1 // pred_region
      _
    $region81: #{diffusion_actor_critic_forward.3} parent=1 // pred_fallthru
      _
    // Predicated region
    $region82: #{diffusion_actor_critic_forward.3} parent=1 // pred_check
      _
    $region83: #{diffusion_actor_critic_forward.3} parent=1 // pred_check_branch
      %80 = sbr.rel (0) target = $region85
    $region84: #{diffusion_actor_critic_forward.3} parent=1 // pred_region
      _
    $region85: #{diffusion_actor_critic_forward.3} parent=1 // pred_fallthru
      _
    // Predicated region
    $region86: #{diffusion_actor_critic_forward.3} parent=1 // pred_check
      _
    $region87: #{diffusion_actor_critic_forward.3} parent=1 // pred_check_branch
      %82 = sbr.rel (0) target = $region89
    $region88: #{diffusion_actor_critic_forward.3} parent=1 // pred_region
      %83 = dma.done [#allocation4], 16
    $region89: #{diffusion_actor_critic_forward.3} parent=1 // pred_fallthru
      _
    %84 = sfence
    %v86 = vld [vmem:[%s4] sm:$0xff]
    %v87 = vld [vmem:[%s4 + $0x8] sm:$0xff]
    %v88 = vld [vmem:[%s4 + $0x10] sm:$0xff]
    %v89 = vld [vmem:[%s4 + $0x18] sm:$0xff]
    %v90 = vld [vmem:[%s5] sm:$0x1]
    %v91 = vld [vmem:[%s6] sm:$0x1]
    %v92 = vld [vmem:[%s7] sm:$0x3]
    %v93 = vld [vmem:[%s9] sm:$0xf]
    %v94 = vld [vmem:[%s9 + $0x4] sm:$0xf]
    %v95 = vld [vmem:[%s9 + $0x8] sm:$0xf]
    %v96 = vld [vmem:[%s9 + $0xc] sm:$0xf]
    %v97 = vld [vmem:[%s9 + $0x10] sm:$0xf]
    %v98 = vld [vmem:[%s9 + $0x14] sm:$0xf]
    %v99 = vld [vmem:[%s9 + $0x18] sm:$0xf]
    %v100 = vld [vmem:[%s9 + $0x1c] sm:$0xf]
    %v101 = vld [vmem:[%s9 + $0x20] sm:$0xf]
    %v102 = vld [vmem:[%s9 + $0x24] sm:$0xf]
    %v103 = vld [vmem:[%s9 + $0x28] sm:$0xf]
    %v104 = vld [vmem:[%s9 + $0x2c] sm:$0xf]
    %v105 = vld [vmem:[%s9 + $0x30] sm:$0xf]
    %v106 = vld [vmem:[%s9 + $0x34] sm:$0xf]
    %v107 = vld [vmem:[%s9 + $0x38] sm:$0xf]
    %v108 = vld [vmem:[%s9 + $0x3c] sm:$0xf]
    %v109 = vld [vmem:[%s11] sm:$0xf]
    %v110 = vld [vmem:[%s11 + $0x4] sm:$0xf]
    %v111 = vld [vmem:[%s11 + $0x8] sm:$0xf]
    %v112 = vld [vmem:[%s11 + $0xc] sm:$0xf]
    %v113 = vld [vmem:[%s11 + $0x10] sm:$0xf]
    %v114 = vld [vmem:[%s11 + $0x14] sm:$0xf]
    %v115 = vld [vmem:[%s11 + $0x18] sm:$0xf]
    %v116 = vld [vmem:[%s11 + $0x1c] sm:$0xf]
    %v117 = vld [vmem:[%s11 + $0x20] sm:$0xf]
    %v118 = vld [vmem:[%s11 + $0x24] sm:$0xf]
    %v119 = vld [vmem:[%s11 + $0x28] sm:$0xf]
    %v120 = vld [vmem:[%s11 + $0x2c] sm:$0xf]
    %v121 = vld [vmem:[%s11 + $0x30] sm:$0xf]
    %v122 = vld [vmem:[%s11 + $0x34] sm:$0xf]
    %v123 = vld [vmem:[%s11 + $0x38] sm:$0xf]
    %v124 = vld [vmem:[%s11 + $0x3c] sm:$0xf]
    %v125 = vld [vmem:[%s13] sm:$0xf]
    %v126 = vld [vmem:[%s13 + $0x4] sm:$0xf]
    %v127 = vld [vmem:[%s13 + $0x8] sm:$0xf]
    %v128 = vld [vmem:[%s13 + $0xc] sm:$0xf]
    %v129 = vld [vmem:[%s13 + $0x10] sm:$0xf]
    %v130 = vld [vmem:[%s13 + $0x14] sm:$0xf]
    %v131 = vld [vmem:[%s13 + $0x18] sm:$0xf]
    %v132 = vld [vmem:[%s13 + $0x1c] sm:$0xf]
    %v133 = vld [vmem:[%s13 + $0x20] sm:$0xf]
    %v134 = vld [vmem:[%s13 + $0x24] sm:$0xf]
    %v135 = vld [vmem:[%s13 + $0x28] sm:$0xf]
    %v136 = vld [vmem:[%s13 + $0x2c] sm:$0xf]
    %v137 = vld [vmem:[%s13 + $0x30] sm:$0xf]
    %v138 = vld [vmem:[%s13 + $0x34] sm:$0xf]
    %v139 = vld [vmem:[%s13 + $0x38] sm:$0xf]
    %v140 = vld [vmem:[%s13 + $0x3c] sm:$0xf]
    %v141 = vld [vmem:[%s10] sm:$0x1]
    %v142 = vld [vmem:[%s12] sm:$0x1]
    %v143 = vld [vmem:[%s14] sm:$0x1]
    %v144 = vpack.c.bf16 %v87, %v86
    %v145 = vpack.c.bf16 %v89, %v88
    %v146 = vld [vmem:[%s8] sm:$0xf]
    %v147 = vld [vmem:[%s8 + $0x4] sm:$0xf]
    %v150 = vunpack.c.l.b16 %v146
    %v151 = vunpack.c.l.b16 %v147
    %v152 = vpack.c.b16 %v151, %v150
    %vm154 = vcmask 130048
    %v156 = vsel %vm154, %v144, 0
    %v159 = vsel %vm154, %v145, 0
    %161 = vmatprep.subr.bf16.mxu0 0
    %162 = vmatpush1.bf16.msra.mxu0 0
    %163 = vmatprep.subr.bf16.mxu0 0
    %164 = vmatpush1.bf16.msra.mxu0 0
    %165 = vmatprep.subr.bf16.mxu0 0
    %166 = vmatpush1.bf16.msra.mxu0 0
    %167 = vmatprep.subr.bf16.mxu0 0
    %168 = vmatpush1.bf16.msra.mxu0 0
    %169 = vmatprep.subr.bf16.mxu0 0
    %170 = vmatpush1.bf16.msra.mxu0 0
    %171 = vmatprep.subr.bf16.mxu0 0
    %172 = vmatpush1.bf16.msra.mxu0 0
    %173 = vmatprep.subr.bf16.mxu0 0
    %174 = vmatpush1.bf16.msra.mxu0 0
    %175 = vmatprep.subr.bf16.mxu0 0
    %176 = vmatpush1.bf16.msra.mxu0 %v152
    %177 = vmatprep.subr.bf16.mxu0 0
    %178 = vmatpush2.bf16.msra.mxu0 0
    %179 = vmatprep.subr.bf16.mxu0 0
    %180 = vmatpush2.bf16.msra.mxu0 0
    %181 = vmatprep.subr.bf16.mxu0 0
    %182 = vmatpush2.bf16.msra.mxu0 0
    %183 = vmatprep.subr.bf16.mxu0 0
    %184 = vmatpush2.bf16.msra.mxu0 0
    %185 = vmatprep.subr.bf16.mxu0 0
    %186 = vmatpush2.bf16.msra.mxu0 0
    %187 = vmatprep.subr.bf16.mxu0 0
    %188 = vmatpush2.bf16.msra.mxu0 0
    %189 = vmatprep.subr.bf16.mxu0 0
    %190 = vmatpush2.bf16.msra.mxu0 0
    %191 = vmatprep.subr.bf16.mxu0 0
    %192 = vmatpush2.bf16.msra.mxu0 0
    %193 = vmatprep.mubr.bf16.mxu0 0
    %194 = vmatmul.mubr.bf16.gmra.mxu0 %v156
    %v195 = vpop.f32.mrf.mxu0
    %v196 = vadd.f32 0.0, %v195
    %v197 = vpop.f32.mrf.mxu0
    %v198 = vpop.f32.mrf.mxu0
    %v199 = vadd.f32 0.0, %v198
    %v200 = vpop.f32.mrf.mxu0
    %201 = vmatprep.mubr.bf16.mxu0 0
    %202 = vmatmul.mubr.bf16.gmra.mxu0 %v159
    %v203 = vpop.f32.mrf.mxu0
    %v204 = vadd.f32 0.0, %v203
    %v205 = vpop.f32.mrf.mxu0
    %v206 = vpop.f32.mrf.mxu0
    %v207 = vadd.f32 0.0, %v206
    %v208 = vpop.f32.mrf.mxu0
    %209 = vdwg.mxu0
    %v210 = vld [vmem:[%s1] sm:$0xff]
    %v211 = vld [vmem:[%s1 + $0x8] sm:$0xff]
    %v212 = vld [vmem:[%s1 + $0x10] sm:$0xff]
    %v213 = vld [vmem:[%s1 + $0x18] sm:$0xff]
    %v214 = vld [vmem:[%s3] sm:$0x1]
    %v215 = vpack.c.bf16 %v211, %v210
    %v216 = vpack.c.bf16 %v213, %v212
    %vm217 = vcmask 31744
    %v219 = vsel %vm217, %v215, 0
    %v222 = vsel %vm217, %v216, 0
    %vm224 = vcmask 1041408
    %v226 = vsel %vm224, %v92, 0
    %228 = vmatprep.subr.bf16.mxu0 0
    %229 = vmatpush1.bf16.msra.mxu0 0
    %230 = vmatprep.subr.bf16.mxu0 0
    %231 = vmatpush1.bf16.msra.mxu0 0
    %232 = vmatprep.subr.bf16.mxu0 0
    %233 = vmatpush1.bf16.msra.mxu0 0
    %234 = vmatprep.subr.bf16.mxu0 0
    %235 = vmatpush1.bf16.msra.mxu0 0
    %236 = vmatprep.subr.bf16.mxu0 0
    %237 = vmatpush1.bf16.msra.mxu0 0
    %238 = vmatprep.subr.bf16.mxu0 0
    %239 = vmatpush1.bf16.msra.mxu0 0
    %240 = vmatprep.subr.bf16.mxu0 0
    %241 = vmatpush1.bf16.msra.mxu0 0
    %242 = vmatprep.subr.bf16.mxu0 0
    %243 = vmatpush1.bf16.msra.mxu0 %v226
    %244 = vmatprep.subr.bf16.mxu0 0
    %245 = vmatpush2.bf16.msra.mxu0 0
    %246 = vmatprep.subr.bf16.mxu0 0
    %247 = vmatpush2.bf16.msra.mxu0 0
    %248 = vmatprep.subr.bf16.mxu0 0
    %249 = vmatpush2.bf16.msra.mxu0 0
    %250 = vmatprep.subr.bf16.mxu0 0
    %251 = vmatpush2.bf16.msra.mxu0 0
    %252 = vmatprep.subr.bf16.mxu0 0
    %253 = vmatpush2.bf16.msra.mxu0 0
    %254 = vmatprep.subr.bf16.mxu0 0
    %255 = vmatpush2.bf16.msra.mxu0 0
    %256 = vmatprep.subr.bf16.mxu0 0
    %257 = vmatpush2.bf16.msra.mxu0 0
    %258 = vmatprep.subr.bf16.mxu0 0
    %259 = vmatpush2.bf16.msra.mxu0 0
    %260 = vmatprep.mubr.bf16.mxu0 0
    %261 = vmatmul.mubr.bf16.gmra.mxu0 %v219
    %v262 = vpop.f32.mrf.mxu0
    %v263 = vadd.f32 %v196, %v262
    %v264 = vpop.f32.mrf.mxu0
    %v265 = vpop.f32.mrf.mxu0
    %v266 = vadd.f32 %v199, %v265
    %v267 = vpop.f32.mrf.mxu0
    %268 = vmatprep.mubr.bf16.mxu0 0
    %269 = vmatmul.mubr.bf16.gmra.mxu0 %v222
    %v270 = vpop.f32.mrf.mxu0
    %v271 = vadd.f32 %v204, %v270
    %v272 = vpop.f32.mrf.mxu0
    %v273 = vpop.f32.mrf.mxu0
    %v274 = vadd.f32 %v207, %v273
    %v275 = vpop.f32.mrf.mxu0
    %276 = vdwg.mxu0
    %v277 = vlaneseq
    %v278 = vshrl.u32 %v277, 7
    %v279 = vsub.s32 0, %v278
    %v280 = vrot.slane %v214, %v279
    %v281 = vadd.f32 %v263, %v280
    %v282 = vadd.f32 %v266, %v280
    %v283 = vadd.f32 %v271, %v280
    %v284 = vadd.f32 %v274, %v280
    %v285 = vmin.f32 %v281, 20.0
    %v286 = vmin.f32 %v282, 20.0
    %v287 = vmin.f32 %v283, 20.0
    %v288 = vmin.f32 %v284, 20.0
    %v289 = vmul.f32 %v285, 1.442695
    %v290 = vpow.pop %v289
    %v291 = vmul.f32 %v286, 1.442695
    %v292 = vpow.pop %v291
    %v293 = vmul.f32 %v287, 1.442695
    %v294 = vpow.pop %v293
    %v295 = vmul.f32 %v288, 1.442695
    %v296 = vpow.pop %v295
    %v297 = vadd.f32 %v290, 2.0
    %v298 = vadd.f32 %v292, 2.0
    %v299 = vadd.f32 %v294, 2.0
    %v300 = vadd.f32 %v296, 2.0
    %v301 = vmul.f32 %v290, %v297
    %v302 = vmul.f32 %v292, %v298
    %v303 = vmul.f32 %v294, %v299
    %v304 = vmul.f32 %v296, %v300
    %v305 = vadd.f32 %v301, 2.0
    %v306 = vadd.f32 %v302, 2.0
    %v307 = vadd.f32 %v303, 2.0
    %v308 = vadd.f32 %v304, 2.0
    %v309 = vmul.f32 %v281, %v301
    %v310 = vmul.f32 %v282, %v302
    %v311 = vmul.f32 %v283, %v303
    %v312 = vmul.f32 %v284, %v304
    %v313 = vrcp.pop %v305
    %v314 = vrcp.pop %v306
    %v315 = vrcp.pop %v307
    %v316 = vrcp.pop %v308
    %v317 = vmul.f32 %v309, %v313
    %v318 = vmul.f32 %v310, %v314
    %v319 = vmul.f32 %v311, %v315
    %v320 = vmul.f32 %v312, %v316
    %v321 = vpack.c.bf16 %v318, %v317
    %v322 = vpack.c.bf16 %v320, %v319
    %v324 = vlaneseq
    %v325 = vshrl.u32 %v324, 7
    %v326 = vsub.s32 0, %v325
    %v327 = vrot.slane %v141, %v326
    %v345 = vunpack.c.l.b16 %v93
    %v346 = vunpack.c.l.b16 %v94
    %v347 = vunpack.c.l.b16 %v95
    %v348 = vunpack.c.l.b16 %v96
    %v349 = vunpack.c.l.b16 %v97
    %v350 = vunpack.c.l.b16 %v98
    %v351 = vunpack.c.l.b16 %v99
    %v352 = vunpack.c.l.b16 %v100
    %v353 = vunpack.c.l.b16 %v101
    %v354 = vunpack.c.l.b16 %v102
    %v355 = vunpack.c.l.b16 %v103
    %v356 = vunpack.c.l.b16 %v104
    %v357 = vunpack.c.l.b16 %v105
    %v358 = vunpack.c.l.b16 %v106
    %v359 = vunpack.c.l.b16 %v107
    %v360 = vunpack.c.l.b16 %v108
    %v361 = vpack.c.b16 %v346, %v345
    %v362 = vpack.c.b16 %v348, %v347
    %v363 = vpack.c.b16 %v350, %v349
    %v364 = vpack.c.b16 %v352, %v351
    %v365 = vpack.c.b16 %v354, %v353
    %v366 = vpack.c.b16 %v356, %v355
    %v367 = vpack.c.b16 %v358, %v357
    %v368 = vpack.c.b16 %v360, %v359
    %377 = vmatprep.subr.bf16.mxu0 0
    %378 = vmatpush1.bf16.msra.mxu0 %v368
    %379 = vmatprep.subr.bf16.mxu0 0
    %380 = vmatpush1.bf16.msra.mxu0 %v367
    %381 = vmatprep.subr.bf16.mxu0 0
    %382 = vmatpush1.bf16.msra.mxu0 %v366
    %383 = vmatprep.subr.bf16.mxu0 0
    %384 = vmatpush1.bf16.msra.mxu0 %v365
    %385 = vmatprep.subr.bf16.mxu0 0
    %386 = vmatpush1.bf16.msra.mxu0 %v364
    %387 = vmatprep.subr.bf16.mxu0 0
    %388 = vmatpush1.bf16.msra.mxu0 %v363
    %389 = vmatprep.subr.bf16.mxu0 0
    %390 = vmatpush1.bf16.msra.mxu0 %v362
    %391 = vmatprep.subr.bf16.mxu0 0
    %392 = vmatpush1.bf16.msra.mxu0 %v361
    %393 = vmatprep.subr.bf16.mxu0 0
    %394 = vmatpush2.bf16.msra.mxu0 0
    %395 = vmatprep.subr.bf16.mxu0 0
    %396 = vmatpush2.bf16.msra.mxu0 0
    %397 = vmatprep.subr.bf16.mxu0 0
    %398 = vmatpush2.bf16.msra.mxu0 0
    %399 = vmatprep.subr.bf16.mxu0 0
    %400 = vmatpush2.bf16.msra.mxu0 0
    %401 = vmatprep.subr.bf16.mxu0 0
    %402 = vmatpush2.bf16.msra.mxu0 0
    %403 = vmatprep.subr.bf16.mxu0 0
    %404 = vmatpush2.bf16.msra.mxu0 0
    %405 = vmatprep.subr.bf16.mxu0 0
    %406 = vmatpush2.bf16.msra.mxu0 0
    %407 = vmatprep.subr.bf16.mxu0 0
    %408 = vmatpush2.bf16.msra.mxu0 0
    %409 = vmatprep.mubr.bf16.mxu0 0
    %410 = vmatmul.mubr.bf16.gmra.mxu0 %v321
    %v411 = vpop.f32.mrf.mxu0
    %v412 = vadd.f32 %v327, %v411
    %v413 = vpop.f32.mrf.mxu0
    %v414 = vpop.f32.mrf.mxu0
    %v415 = vadd.f32 %v327, %v414
    %v416 = vpop.f32.mrf.mxu0
    %417 = vmatprep.mubr.bf16.mxu0 0
    %418 = vmatmul.mubr.bf16.gmra.mxu0 %v322
    %v419 = vpop.f32.mrf.mxu0
    %v420 = vadd.f32 %v327, %v419
    %v421 = vpop.f32.mrf.mxu0
    %v422 = vpop.f32.mrf.mxu0
    %v423 = vadd.f32 %v327, %v422
    %v424 = vpop.f32.mrf.mxu0
    %425 = vdwg.mxu0
    %v426 = vmin.f32 %v412, 20.0
    %v427 = vmin.f32 %v415, 20.0
    %v428 = vmin.f32 %v420, 20.0
    %v429 = vmin.f32 %v423, 20.0
    %v430 = vmul.f32 %v426, 1.442695
    %v431 = vpow.pop %v430
    %v432 = vmul.f32 %v427, 1.442695
    %v433 = vpow.pop %v432
    %v434 = vmul.f32 %v428, 1.442695
    %v435 = vpow.pop %v434
    %v436 = vmul.f32 %v429, 1.442695
    %v437 = vpow.pop %v436
    %v438 = vadd.f32 %v431, 2.0
    %v439 = vadd.f32 %v433, 2.0
    %v440 = vadd.f32 %v435, 2.0
    %v441 = vadd.f32 %v437, 2.0
    %v442 = vmul.f32 %v431, %v438
    %v443 = vmul.f32 %v433, %v439
    %v444 = vmul.f32 %v435, %v440
    %v445 = vmul.f32 %v437, %v441
    %v446 = vadd.f32 %v442, 2.0
    %v447 = vadd.f32 %v443, 2.0
    %v448 = vadd.f32 %v444, 2.0
    %v449 = vadd.f32 %v445, 2.0
    %v450 = vmul.f32 %v412, %v442
    %v451 = vmul.f32 %v415, %v443
    %v452 = vmul.f32 %v420, %v444
    %v453 = vmul.f32 %v423, %v445
    %v454 = vrcp.pop %v446
    %v455 = vrcp.pop %v447
    %v456 = vrcp.pop %v448
    %v457 = vrcp.pop %v449
    %v458 = vmul.f32 %v450, %v454
    %v459 = vmul.f32 %v451, %v455
    %v460 = vmul.f32 %v452, %v456
    %v461 = vmul.f32 %v453, %v457
    %v462 = vpack.c.bf16 %v459, %v458
    %v463 = vpack.c.bf16 %v461, %v460
    %v465 = vlaneseq
    %v466 = vshrl.u32 %v465, 7
    %v467 = vsub.s32 0, %v466
    %v468 = vrot.slane %v142, %v467
    %v486 = vunpack.c.l.b16 %v109
    %v487 = vunpack.c.l.b16 %v110
    %v488 = vunpack.c.l.b16 %v111
    %v489 = vunpack.c.l.b16 %v112
    %v490 = vunpack.c.l.b16 %v113
    %v491 = vunpack.c.l.b16 %v114
    %v492 = vunpack.c.l.b16 %v115
    %v493 = vunpack.c.l.b16 %v116
    %v494 = vunpack.c.l.b16 %v117
    %v495 = vunpack.c.l.b16 %v118
    %v496 = vunpack.c.l.b16 %v119
    %v497 = vunpack.c.l.b16 %v120
    %v498 = vunpack.c.l.b16 %v121
    %v499 = vunpack.c.l.b16 %v122
    %v500 = vunpack.c.l.b16 %v123
    %v501 = vunpack.c.l.b16 %v124
    %v502 = vpack.c.b16 %v487, %v486
    %v503 = vpack.c.b16 %v489, %v488
    %v504 = vpack.c.b16 %v491, %v490
    %v505 = vpack.c.b16 %v493, %v492
    %v506 = vpack.c.b16 %v495, %v494
    %v507 = vpack.c.b16 %v497, %v496
    %v508 = vpack.c.b16 %v499, %v498
    %v509 = vpack.c.b16 %v501, %v500
    %518 = vmatprep.subr.bf16.mxu0 0
    %519 = vmatpush1.bf16.msra.mxu0 %v509
    %520 = vmatprep.subr.bf16.mxu0 0
    %521 = vmatpush1.bf16.msra.mxu0 %v508
    %522 = vmatprep.subr.bf16.mxu0 0
    %523 = vmatpush1.bf16.msra.mxu0 %v507
    %524 = vmatprep.subr.bf16.mxu0 0
    %525 = vmatpush1.bf16.msra.mxu0 %v506
    %526 = vmatprep.subr.bf16.mxu0 0
    %527 = vmatpush1.bf16.msra.mxu0 %v505
    %528 = vmatprep.subr.bf16.mxu0 0
    %529 = vmatpush1.bf16.msra.mxu0 %v504
    %530 = vmatprep.subr.bf16.mxu0 0
    %531 = vmatpush1.bf16.msra.mxu0 %v503
    %532 = vmatprep.subr.bf16.mxu0 0
    %533 = vmatpush1.bf16.msra.mxu0 %v502
    %534 = vmatprep.subr.bf16.mxu0 0
    %535 = vmatpush2.bf16.msra.mxu0 0
    %536 = vmatprep.subr.bf16.mxu0 0
    %537 = vmatpush2.bf16.msra.mxu0 0
    %538 = vmatprep.subr.bf16.mxu0 0
    %539 = vmatpush2.bf16.msra.mxu0 0
    %540 = vmatprep.subr.bf16.mxu0 0
    %541 = vmatpush2.bf16.msra.mxu0 0
    %542 = vmatprep.subr.bf16.mxu0 0
    %543 = vmatpush2.bf16.msra.mxu0 0
    %544 = vmatprep.subr.bf16.mxu0 0
    %545 = vmatpush2.bf16.msra.mxu0 0
    %546 = vmatprep.subr.bf16.mxu0 0
    %547 = vmatpush2.bf16.msra.mxu0 0
    %548 = vmatprep.subr.bf16.mxu0 0
    %549 = vmatpush2.bf16.msra.mxu0 0
    %550 = vmatprep.mubr.bf16.mxu0 0
    %551 = vmatmul.mubr.bf16.gmra.mxu0 %v462
    %v552 = vpop.f32.mrf.mxu0
    %v553 = vadd.f32 %v468, %v552
    %v554 = vpop.f32.mrf.mxu0
    %v555 = vpop.f32.mrf.mxu0
    %v556 = vadd.f32 %v468, %v555
    %v557 = vpop.f32.mrf.mxu0
    %558 = vmatprep.mubr.bf16.mxu0 0
    %559 = vmatmul.mubr.bf16.gmra.mxu0 %v463
    %v560 = vpop.f32.mrf.mxu0
    %v561 = vadd.f32 %v468, %v560
    %v562 = vpop.f32.mrf.mxu0
    %v563 = vpop.f32.mrf.mxu0
    %v564 = vadd.f32 %v468, %v563
    %v565 = vpop.f32.mrf.mxu0
    %566 = vdwg.mxu0
    %v567 = vmin.f32 %v553, 20.0
    %v568 = vmin.f32 %v556, 20.0
    %v569 = vmin.f32 %v561, 20.0
    %v570 = vmin.f32 %v564, 20.0
    %v571 = vmul.f32 %v567, 1.442695
    %v572 = vpow.pop %v571
    %v573 = vmul.f32 %v568, 1.442695
    %v574 = vpow.pop %v573
    %v575 = vmul.f32 %v569, 1.442695
    %v576 = vpow.pop %v575
    %v577 = vmul.f32 %v570, 1.442695
    %v578 = vpow.pop %v577
    %v579 = vadd.f32 %v572, 2.0
    %v580 = vadd.f32 %v574, 2.0
    %v581 = vadd.f32 %v576, 2.0
    %v582 = vadd.f32 %v578, 2.0
    %v583 = vmul.f32 %v572, %v579
    %v584 = vmul.f32 %v574, %v580
    %v585 = vmul.f32 %v576, %v581
    %v586 = vmul.f32 %v578, %v582
    %v587 = vadd.f32 %v583, 2.0
    %v588 = vadd.f32 %v584, 2.0
    %v589 = vadd.f32 %v585, 2.0
    %v590 = vadd.f32 %v586, 2.0
    %v591 = vmul.f32 %v553, %v583
    %v592 = vmul.f32 %v556, %v584
    %v593 = vmul.f32 %v561, %v585
    %v594 = vmul.f32 %v564, %v586
    %v595 = vrcp.pop %v587
    %v596 = vrcp.pop %v588
    %v597 = vrcp.pop %v589
    %v598 = vrcp.pop %v590
    %v599 = vmul.f32 %v591, %v595
    %v600 = vmul.f32 %v592, %v596
    %v601 = vmul.f32 %v593, %v597
    %v602 = vmul.f32 %v594, %v598
    %v603 = vpack.c.bf16 %v600, %v599
    %v604 = vpack.c.bf16 %v602, %v601
    %v606 = vlaneseq
    %v607 = vshrl.u32 %v606, 7
    %v608 = vsub.s32 0, %v607
    %v609 = vrot.slane %v143, %v608
    %v627 = vunpack.c.l.b16 %v125
    %v628 = vunpack.c.l.b16 %v126
    %v629 = vunpack.c.l.b16 %v127
    %v630 = vunpack.c.l.b16 %v128
    %v631 = vunpack.c.l.b16 %v129
    %v632 = vunpack.c.l.b16 %v130
    %v633 = vunpack.c.l.b16 %v131
    %v634 = vunpack.c.l.b16 %v132
    %v635 = vunpack.c.l.b16 %v133
    %v636 = vunpack.c.l.b16 %v134
    %v637 = vunpack.c.l.b16 %v135
    %v638 = vunpack.c.l.b16 %v136
    %v639 = vunpack.c.l.b16 %v137
    %v640 = vunpack.c.l.b16 %v138
    %v641 = vunpack.c.l.b16 %v139
    %v642 = vunpack.c.l.b16 %v140
    %v643 = vpack.c.b16 %v628, %v627
    %v644 = vpack.c.b16 %v630, %v629
    %v645 = vpack.c.b16 %v632, %v631
    %v646 = vpack.c.b16 %v634, %v633
    %v647 = vpack.c.b16 %v636, %v635
    %v648 = vpack.c.b16 %v638, %v637
    %v649 = vpack.c.b16 %v640, %v639
    %v650 = vpack.c.b16 %v642, %v641
    %659 = vmatprep.subr.bf16.mxu0 0
    %660 = vmatpush1.bf16.msra.mxu0 %v650
    %661 = vmatprep.subr.bf16.mxu0 0
    %662 = vmatpush1.bf16.msra.mxu0 %v649
    %663 = vmatprep.subr.bf16.mxu0 0
    %664 = vmatpush1.bf16.msra.mxu0 %v648
    %665 = vmatprep.subr.bf16.mxu0 0
    %666 = vmatpush1.bf16.msra.mxu0 %v647
    %667 = vmatprep.subr.bf16.mxu0 0
    %668 = vmatpush1.bf16.msra.mxu0 %v646
    %669 = vmatprep.subr.bf16.mxu0 0
    %670 = vmatpush1.bf16.msra.mxu0 %v645
    %671 = vmatprep.subr.bf16.mxu0 0
    %672 = vmatpush1.bf16.msra.mxu0 %v644
    %673 = vmatprep.subr.bf16.mxu0 0
    %674 = vmatpush1.bf16.msra.mxu0 %v643
    %675 = vmatprep.subr.bf16.mxu0 0
    %676 = vmatpush2.bf16.msra.mxu0 0
    %677 = vmatprep.subr.bf16.mxu0 0
    %678 = vmatpush2.bf16.msra.mxu0 0
    %679 = vmatprep.subr.bf16.mxu0 0
    %680 = vmatpush2.bf16.msra.mxu0 0
    %681 = vmatprep.subr.bf16.mxu0 0
    %682 = vmatpush2.bf16.msra.mxu0 0
    %683 = vmatprep.subr.bf16.mxu0 0
    %684 = vmatpush2.bf16.msra.mxu0 0
    %685 = vmatprep.subr.bf16.mxu0 0
    %686 = vmatpush2.bf16.msra.mxu0 0
    %687 = vmatprep.subr.bf16.mxu0 0
    %688 = vmatpush2.bf16.msra.mxu0 0
    %689 = vmatprep.subr.bf16.mxu0 0
    %690 = vmatpush2.bf16.msra.mxu0 0
    %691 = vmatprep.mubr.bf16.mxu0 0
    %692 = vmatmul.mubr.bf16.gmra.mxu0 %v603
    %v693 = vpop.f32.mrf.mxu0
    %v694 = vadd.f32 %v609, %v693
    %v695 = vpop.f32.mrf.mxu0
    %v696 = vpop.f32.mrf.mxu0
    %v697 = vadd.f32 %v609, %v696
    %v698 = vpop.f32.mrf.mxu0
    %699 = vmatprep.mubr.bf16.mxu0 0
    %700 = vmatmul.mubr.bf16.gmra.mxu0 %v604
    %v701 = vpop.f32.mrf.mxu0
    %v702 = vadd.f32 %v609, %v701
    %v703 = vpop.f32.mrf.mxu0
    %v704 = vpop.f32.mrf.mxu0
    %v705 = vadd.f32 %v609, %v704
    %v706 = vpop.f32.mrf.mxu0
    %707 = vdwg.mxu0
    %s708 = sld [smem:[#allocation2]]
    %s709 = sld [smem:[#allocation2 + $0x1]]
    %s710 = sld [smem:[#allocation2 + $0x2]]
    %s711 = sld [smem:[#allocation2 + $0x3]]
    %v712 = vstv %s708
    %v713 = vmul.f32 %v712, %v210
    %v714 = vmul.f32 %v712, %v211
    %v715 = vmul.f32 %v712, %v212
    %v716 = vmul.f32 %v712, %v213
    %v717 = vstv %s709
    %v718 = vmul.f32 %v717, %v694
    %v719 = vmul.f32 %v717, %v697
    %v720 = vmul.f32 %v717, %v702
    %v721 = vmul.f32 %v717, %v705
    %v722 = vsub.f32 %v713, %v718
    %v723 = vsub.f32 %v714, %v719
    %v724 = vsub.f32 %v715, %v720
    %v725 = vsub.f32 %v716, %v721
    %v727 = vlaneseq
    %v728 = vshrl.u32 %v727, 7
    %v729 = vsub.s32 0, %v728
    %v730 = vrot.slane %v90, %v729
    %v732 = vmax.f32 %v730, %v722
    %v733 = vmax.f32 %v730, %v723
    %v734 = vmax.f32 %v730, %v724
    %v735 = vmax.f32 %v730, %v725
    %v737 = vlaneseq
    %v738 = vshrl.u32 %v737, 7
    %v739 = vsub.s32 0, %v738
    %v740 = vrot.slane %v91, %v739
    %v742 = vmin.f32 %v740, %v732
    %v743 = vmin.f32 %v740, %v733
    %v744 = vmin.f32 %v740, %v734
    %v745 = vmin.f32 %v740, %v735
    %v746 = vstv %s710
    %v747 = vmul.f32 %v746, %v742
    %v748 = vmul.f32 %v746, %v743
    %v749 = vmul.f32 %v746, %v744
    %v750 = vmul.f32 %v746, %v745
    %v751 = vstv %s711
    %v752 = vmul.f32 %v751, %v210
    %v753 = vmul.f32 %v751, %v211
    %v754 = vmul.f32 %v751, %v212
    %v755 = vmul.f32 %v751, %v213
    %v756 = vadd.f32 %v747, %v752
    %v757 = vadd.f32 %v748, %v753
    %v758 = vadd.f32 %v749, %v754
    %v759 = vadd.f32 %v750, %v755
    %v760 = vld [vmem:[%s2] sm:$0xff]
    %v761 = vld [vmem:[%s2 + $0x8] sm:$0xff]
    %v762 = vld [vmem:[%s2 + $0x10] sm:$0xff]
    %v763 = vld [vmem:[%s2 + $0x18] sm:$0xff]
    %v764 = vadd.f32 %v756, %v760
    %v765 = vadd.f32 %v757, %v761
    %v766 = vadd.f32 %v758, %v762
    %v767 = vadd.f32 %v759, %v763
    %v768 = vld [vmem:[%s3 + $0x1] sm:$0x1]
    %v769 = vpack.c.bf16 %v765, %v764
    %v770 = vpack.c.bf16 %v767, %v766
    %v772 = vsel %vm217, %v769, 0
    %v775 = vsel %vm217, %v770, 0
    %777 = vmatprep.subr.bf16.mxu0 0
    %778 = vmatpush1.bf16.msra.mxu0 0
    %779 = vmatprep.subr.bf16.mxu0 0
    %780 = vmatpush1.bf16.msra.mxu0 0
    %781 = vmatprep.subr.bf16.mxu0 0
    %782 = vmatpush1.bf16.msra.mxu0 0
    %783 = vmatprep.subr.bf16.mxu0 0
    %784 = vmatpush1.bf16.msra.mxu0 0
    %785 = vmatprep.subr.bf16.mxu0 0
    %786 = vmatpush1.bf16.msra.mxu0 0
    %787 = vmatprep.subr.bf16.mxu0 0
    %788 = vmatpush1.bf16.msra.mxu0 0
    %789 = vmatprep.subr.bf16.mxu0 0
    %790 = vmatpush1.bf16.msra.mxu0 0
    %791 = vmatprep.subr.bf16.mxu0 0
    %792 = vmatpush1.bf16.msra.mxu0 %v226
    %793 = vmatprep.subr.bf16.mxu0 0
    %794 = vmatpush2.bf16.msra.mxu0 0
    %795 = vmatprep.subr.bf16.mxu0 0
    %796 = vmatpush2.bf16.msra.mxu0 0
    %797 = vmatprep.subr.bf16.mxu0 0
    %798 = vmatpush2.bf16.msra.mxu0 0
    %799 = vmatprep.subr.bf16.mxu0 0
    %800 = vmatpush2.bf16.msra.mxu0 0
    %801 = vmatprep.subr.bf16.mxu0 0
    %802 = vmatpush2.bf16.msra.mxu0 0
    %803 = vmatprep.subr.bf16.mxu0 0
    %804 = vmatpush2.bf16.msra.mxu0 0
    %805 = vmatprep.subr.bf16.mxu0 0
    %806 = vmatpush2.bf16.msra.mxu0 0
    %807 = vmatprep.subr.bf16.mxu0 0
    %808 = vmatpush2.bf16.msra.mxu0 0
    %809 = vmatprep.mubr.bf16.mxu0 0
    %810 = vmatmul.mubr.bf16.gmra.mxu0 %v772
    %v811 = vpop.f32.mrf.mxu0
    %v812 = vadd.f32 %v196, %v811
    %v813 = vpop.f32.mrf.mxu0
    %v814 = vpop.f32.mrf.mxu0
    %v815 = vadd.f32 %v199, %v814
    %v816 = vpop.f32.mrf.mxu0
    %817 = vmatprep.mubr.bf16.mxu0 0
    %818 = vmatmul.mubr.bf16.gmra.mxu0 %v775
    %v819 = vpop.f32.mrf.mxu0
    %v820 = vadd.f32 %v204, %v819
    %v821 = vpop.f32.mrf.mxu0
    %v822 = vpop.f32.mrf.mxu0
    %v823 = vadd.f32 %v207, %v822
    %v824 = vpop.f32.mrf.mxu0
    %825 = vdwg.mxu0
    %v826 = vlaneseq
    %v827 = vshrl.u32 %v826, 7
    %v828 = vsub.s32 0, %v827
    %v829 = vrot.slane %v768, %v828
    %v830 = vadd.f32 %v812, %v829
    %v831 = vadd.f32 %v815, %v829
    %v832 = vadd.f32 %v820, %v829
    %v833 = vadd.f32 %v823, %v829
    %v834 = vmin.f32 %v830, 20.0
    %v835 = vmin.f32 %v831, 20.0
    %v836 = vmin.f32 %v832, 20.0
    %v837 = vmin.f32 %v833, 20.0
    %v838 = vmul.f32 %v834, 1.442695
    %v839 = vpow.pop %v838
    %v840 = vmul.f32 %v835, 1.442695
    %v841 = vpow.pop %v840
    %v842 = vmul.f32 %v836, 1.442695
    %v843 = vpow.pop %v842
    %v844 = vmul.f32 %v837, 1.442695
    %v845 = vpow.pop %v844
    %v846 = vadd.f32 %v839, 2.0
    %v847 = vadd.f32 %v841, 2.0
    %v848 = vadd.f32 %v843, 2.0
    %v849 = vadd.f32 %v845, 2.0
    %v850 = vmul.f32 %v839, %v846
    %v851 = vmul.f32 %v841, %v847
    %v852 = vmul.f32 %v843, %v848
    %v853 = vmul.f32 %v845, %v849
    %v854 = vadd.f32 %v850, 2.0
    %v855 = vadd.f32 %v851, 2.0
    %v856 = vadd.f32 %v852, 2.0
    %v857 = vadd.f32 %v853, 2.0
    %v858 = vmul.f32 %v830, %v850
    %v859 = vmul.f32 %v831, %v851
    %v860 = vmul.f32 %v832, %v852
    %v861 = vmul.f32 %v833, %v853
    %v862 = vrcp.pop %v854
    %v863 = vrcp.pop %v855
    %v864 = vrcp.pop %v856
    %v865 = vrcp.pop %v857
    %v866 = vmul.f32 %v858, %v862
    %v867 = vmul.f32 %v859, %v863
    %v868 = vmul.f32 %v860, %v864
    %v869 = vmul.f32 %v861, %v865
    %v870 = vpack.c.bf16 %v867, %v866
    %v871 = vpack.c.bf16 %v869, %v868
    %872 = vmatprep.subr.bf16.mxu0 0
    %873 = vmatpush1.bf16.msra.mxu0 %v368
    %874 = vmatprep.subr.bf16.mxu0 0
    %875 = vmatpush1.bf16.msra.mxu0 %v367
    %876 = vmatprep.subr.bf16.mxu0 0
    %877 = vmatpush1.bf16.msra.mxu0 %v366
    %878 = vmatprep.subr.bf16.mxu0 0
    %879 = vmatpush1.bf16.msra.mxu0 %v365
    %880 = vmatprep.subr.bf16.mxu0 0
    %881 = vmatpush1.bf16.msra.mxu0 %v364
    %882 = vmatprep.subr.bf16.mxu0 0
    %883 = vmatpush1.bf16.msra.mxu0 %v363
    %884 = vmatprep.subr.bf16.mxu0 0
    %885 = vmatpush1.bf16.msra.mxu0 %v362
    %886 = vmatprep.subr.bf16.mxu0 0
    %887 = vmatpush1.bf16.msra.mxu0 %v361
    %888 = vmatprep.subr.bf16.mxu0 0
    %889 = vmatpush2.bf16.msra.mxu0 0
    %890 = vmatprep.subr.bf16.mxu0 0
    %891 = vmatpush2.bf16.msra.mxu0 0
    %892 = vmatprep.subr.bf16.mxu0 0
    %893 = vmatpush2.bf16.msra.mxu0 0
    %894 = vmatprep.subr.bf16.mxu0 0
    %895 = vmatpush2.bf16.msra.mxu0 0
    %896 = vmatprep.subr.bf16.mxu0 0
    %897 = vmatpush2.bf16.msra.mxu0 0
    %898 = vmatprep.subr.bf16.mxu0 0
    %899 = vmatpush2.bf16.msra.mxu0 0
    %900 = vmatprep.subr.bf16.mxu0 0
    %901 = vmatpush2.bf16.msra.mxu0 0
    %902 = vmatprep.subr.bf16.mxu0 0
    %903 = vmatpush2.bf16.msra.mxu0 0
    %904 = vmatprep.mubr.bf16.mxu0 0
    %905 = vmatmul.mubr.bf16.gmra.mxu0 %v870
    %v906 = vpop.f32.mrf.mxu0
    %v907 = vadd.f32 %v327, %v906
    %v908 = vpop.f32.mrf.mxu0
    %v909 = vpop.f32.mrf.mxu0
    %v910 = vadd.f32 %v327, %v909
    %v911 = vpop.f32.mrf.mxu0
    %912 = vmatprep.mubr.bf16.mxu0 0
    %913 = vmatmul.mubr.bf16.gmra.mxu0 %v871
    %v914 = vpop.f32.mrf.mxu0
    %v915 = vadd.f32 %v327, %v914
    %v916 = vpop.f32.mrf.mxu0
    %v917 = vpop.f32.mrf.mxu0
    %v918 = vadd.f32 %v327, %v917
    %v919 = vpop.f32.mrf.mxu0
    %920 = vdwg.mxu0
    %v921 = vmin.f32 %v907, 20.0
    %v922 = vmin.f32 %v910, 20.0
    %v923 = vmin.f32 %v915, 20.0
    %v924 = vmin.f32 %v918, 20.0
    %v925 = vmul.f32 %v921, 1.442695
    %v926 = vpow.pop %v925
    %v927 = vmul.f32 %v922, 1.442695
    %v928 = vpow.pop %v927
    %v929 = vmul.f32 %v923, 1.442695
    %v930 = vpow.pop %v929
    %v931 = vmul.f32 %v924, 1.442695
    %v932 = vpow.pop %v931
    %v933 = vadd.f32 %v926, 2.0
    %v934 = vadd.f32 %v928, 2.0
    %v935 = vadd.f32 %v930, 2.0
    %v936 = vadd.f32 %v932, 2.0
    %v937 = vmul.f32 %v926, %v933
    %v938 = vmul.f32 %v928, %v934
    %v939 = vmul.f32 %v930, %v935
    %v940 = vmul.f32 %v932, %v936
    %v941 = vadd.f32 %v937, 2.0
    %v942 = vadd.f32 %v938, 2.0
    %v943 = vadd.f32 %v939, 2.0
    %v944 = vadd.f32 %v940, 2.0
    %v945 = vmul.f32 %v907, %v937
    %v946 = vmul.f32 %v910, %v938
    %v947 = vmul.f32 %v915, %v939
    %v948 = vmul.f32 %v918, %v940
    %v949 = vrcp.pop %v941
    %v950 = vrcp.pop %v942
    %v951 = vrcp.pop %v943
    %v952 = vrcp.pop %v944
    %v953 = vmul.f32 %v945, %v949
    %v954 = vmul.f32 %v946, %v950
    %v955 = vmul.f32 %v947, %v951
    %v956 = vmul.f32 %v948, %v952
    %v957 = vpack.c.bf16 %v954, %v953
    %v958 = vpack.c.bf16 %v956, %v955
    %959 = vmatprep.subr.bf16.mxu0 0
    %960 = vmatpush1.bf16.msra.mxu0 %v509
    %961 = vmatprep.subr.bf16.mxu0 0
    %962 = vmatpush1.bf16.msra.mxu0 %v508
    %963 = vmatprep.subr.bf16.mxu0 0
    %964 = vmatpush1.bf16.msra.mxu0 %v507
    %965 = vmatprep.subr.bf16.mxu0 0
    %966 = vmatpush1.bf16.msra.mxu0 %v506
    %967 = vmatprep.subr.bf16.mxu0 0
    %968 = vmatpush1.bf16.msra.mxu0 %v505
    %969 = vmatprep.subr.bf16.mxu0 0
    %970 = vmatpush1.bf16.msra.mxu0 %v504
    %971 = vmatprep.subr.bf16.mxu0 0
    %972 = vmatpush1.bf16.msra.mxu0 %v503
    %973 = vmatprep.subr.bf16.mxu0 0
    %974 = vmatpush1.bf16.msra.mxu0 %v502
    %975 = vmatprep.subr.bf16.mxu0 0
    %976 = vmatpush2.bf16.msra.mxu0 0
    %977 = vmatprep.subr.bf16.mxu0 0
    %978 = vmatpush2.bf16.msra.mxu0 0
    %979 = vmatprep.subr.bf16.mxu0 0
    %980 = vmatpush2.bf16.msra.mxu0 0
    %981 = vmatprep.subr.bf16.mxu0 0
    %982 = vmatpush2.bf16.msra.mxu0 0
    %983 = vmatprep.subr.bf16.mxu0 0
    %984 = vmatpush2.bf16.msra.mxu0 0
    %985 = vmatprep.subr.bf16.mxu0 0
    %986 = vmatpush2.bf16.msra.mxu0 0
    %987 = vmatprep.subr.bf16.mxu0 0
    %988 = vmatpush2.bf16.msra.mxu0 0
    %989 = vmatprep.subr.bf16.mxu0 0
    %990 = vmatpush2.bf16.msra.mxu0 0
    %991 = vmatprep.mubr.bf16.mxu0 0
    %992 = vmatmul.mubr.bf16.gmra.mxu0 %v957
    %v993 = vpop.f32.mrf.mxu0
    %v994 = vadd.f32 %v468, %v993
    %v995 = vpop.f32.mrf.mxu0
    %v996 = vpop.f32.mrf.mxu0
    %v997 = vadd.f32 %v468, %v996
    %v998 = vpop.f32.mrf.mxu0
    %999 = vmatprep.mubr.bf16.mxu0 0
    %1000 = vmatmul.mubr.bf16.gmra.mxu0 %v958
    %v1001 = vpop.f32.mrf.mxu0
    %v1002 = vadd.f32 %v468, %v1001
    %v1003 = vpop.f32.mrf.mxu0
    %v1004 = vpop.f32.mrf.mxu0
    %v1005 = vadd.f32 %v468, %v1004
    %v1006 = vpop.f32.mrf.mxu0
    %1007 = vdwg.mxu0
    %v1008 = vmin.f32 %v994, 20.0
    %v1009 = vmin.f32 %v997, 20.0
    %v1010 = vmin.f32 %v1002, 20.0
    %v1011 = vmin.f32 %v1005, 20.0
    %v1012 = vmul.f32 %v1008, 1.442695
    %v1013 = vpow.pop %v1012
    %v1014 = vmul.f32 %v1009, 1.442695
    %v1015 = vpow.pop %v1014
    %v1016 = vmul.f32 %v1010, 1.442695
    %v1017 = vpow.pop %v1016
    %v1018 = vmul.f32 %v1011, 1.442695
    %v1019 = vpow.pop %v1018
    %v1020 = vadd.f32 %v1013, 2.0
    %v1021 = vadd.f32 %v1015, 2.0
    %v1022 = vadd.f32 %v1017, 2.0
    %v1023 = vadd.f32 %v1019, 2.0
    %v1024 = vmul.f32 %v1013, %v1020
    %v1025 = vmul.f32 %v1015, %v1021
    %v1026 = vmul.f32 %v1017, %v1022
    %v1027 = vmul.f32 %v1019, %v1023
    %v1028 = vadd.f32 %v1024, 2.0
    %v1029 = vadd.f32 %v1025, 2.0
    %v1030 = vadd.f32 %v1026, 2.0
    %v1031 = vadd.f32 %v1027, 2.0
    %v1032 = vmul.f32 %v994, %v1024
    %v1033 = vmul.f32 %v997, %v1025
    %v1034 = vmul.f32 %v1002, %v1026
    %v1035 = vmul.f32 %v1005, %v1027
    %v1036 = vrcp.pop %v1028
    %v1037 = vrcp.pop %v1029
    %v1038 = vrcp.pop %v1030
    %v1039 = vrcp.pop %v1031
    %v1040 = vmul.f32 %v1032, %v1036
    %v1041 = vmul.f32 %v1033, %v1037
    %v1042 = vmul.f32 %v1034, %v1038
    %v1043 = vmul.f32 %v1035, %v1039
    %v1044 = vpack.c.bf16 %v1041, %v1040
    %v1045 = vpack.c.bf16 %v1043, %v1042
    %1046 = vmatprep.subr.bf16.mxu0 0
    %1047 = vmatpush1.bf16.msra.mxu0 %v650
    %1048 = vmatprep.subr.bf16.mxu0 0
    %1049 = vmatpush1.bf16.msra.mxu0 %v649
    %1050 = vmatprep.subr.bf16.mxu0 0
    %1051 = vmatpush1.bf16.msra.mxu0 %v648
    %1052 = vmatprep.subr.bf16.mxu0 0
    %1053 = vmatpush1.bf16.msra.mxu0 %v647
    %1054 = vmatprep.subr.bf16.mxu0 0
    %1055 = vmatpush1.bf16.msra.mxu0 %v646
    %1056 = vmatprep.subr.bf16.mxu0 0
    %1057 = vmatpush1.bf16.msra.mxu0 %v645
    %1058 = vmatprep.subr.bf16.mxu0 0
    %1059 = vmatpush1.bf16.msra.mxu0 %v644
    %1060 = vmatprep.subr.bf16.mxu0 0
    %1061 = vmatpush1.bf16.msra.mxu0 %v643
    %1062 = vmatprep.subr.bf16.mxu0 0
    %1063 = vmatpush2.bf16.msra.mxu0 0
    %1064 = vmatprep.subr.bf16.mxu0 0
    %1065 = vmatpush2.bf16.msra.mxu0 0
    %1066 = vmatprep.subr.bf16.mxu0 0
    %1067 = vmatpush2.bf16.msra.mxu0 0
    %1068 = vmatprep.subr.bf16.mxu0 0
    %1069 = vmatpush2.bf16.msra.mxu0 0
    %1070 = vmatprep.subr.bf16.mxu0 0
    %1071 = vmatpush2.bf16.msra.mxu0 0
    %1072 = vmatprep.subr.bf16.mxu0 0
    %1073 = vmatpush2.bf16.msra.mxu0 0
    %1074 = vmatprep.subr.bf16.mxu0 0
    %1075 = vmatpush2.bf16.msra.mxu0 0
    %1076 = vmatprep.subr.bf16.mxu0 0
    %1077 = vmatpush2.bf16.msra.mxu0 0
    %1078 = vmatprep.mubr.bf16.mxu0 0
    %1079 = vmatmul.mubr.bf16.gmra.mxu0 %v1044
    %v1080 = vpop.f32.mrf.mxu0
    %v1081 = vadd.f32 %v609, %v1080
    %v1082 = vpop.f32.mrf.mxu0
    %v1083 = vpop.f32.mrf.mxu0
    %v1084 = vadd.f32 %v609, %v1083
    %v1085 = vpop.f32.mrf.mxu0
    %1086 = vmatprep.mubr.bf16.mxu0 0
    %1087 = vmatmul.mubr.bf16.gmra.mxu0 %v1045
    %v1088 = vpop.f32.mrf.mxu0
    %v1089 = vadd.f32 %v609, %v1088
    %v1090 = vpop.f32.mrf.mxu0
    %v1091 = vpop.f32.mrf.mxu0
    %v1092 = vadd.f32 %v609, %v1091
    %v1093 = vpop.f32.mrf.mxu0
    %1094 = vdwg.mxu0
    %s1095 = sld [smem:[#allocation2 + $0x4]]
    %s1096 = sld [smem:[#allocation2 + $0x5]]
    %s1097 = sld [smem:[#allocation2 + $0x6]]
    %s1098 = sld [smem:[#allocation2 + $0x7]]
    %v1099 = vstv %s1095
    %v1100 = vmul.f32 %v1099, %v764
    %v1101 = vmul.f32 %v1099, %v765
    %v1102 = vmul.f32 %v1099, %v766
    %v1103 = vmul.f32 %v1099, %v767
    %v1104 = vstv %s1096
    %v1105 = vmul.f32 %v1104, %v1081
    %v1106 = vmul.f32 %v1104, %v1084
    %v1107 = vmul.f32 %v1104, %v1089
    %v1108 = vmul.f32 %v1104, %v1092
    %v1109 = vsub.f32 %v1100, %v1105
    %v1110 = vsub.f32 %v1101, %v1106
    %v1111 = vsub.f32 %v1102, %v1107
    %v1112 = vsub.f32 %v1103, %v1108
    %v1113 = vmax.f32 %v730, %v1109
    %v1114 = vmax.f32 %v730, %v1110
    %v1115 = vmax.f32 %v730, %v1111
    %v1116 = vmax.f32 %v730, %v1112
    %v1117 = vmin.f32 %v740, %v1113
    %v1118 = vmin.f32 %v740, %v1114
    %v1119 = vmin.f32 %v740, %v1115
    %v1120 = vmin.f32 %v740, %v1116
    %v1121 = vstv %s1097
    %v1122 = vmul.f32 %v1121, %v1117
    %v1123 = vmul.f32 %v1121, %v1118
    %v1124 = vmul.f32 %v1121, %v1119
    %v1125 = vmul.f32 %v1121, %v1120
    %v1126 = vstv %s1098
    %v1127 = vmul.f32 %v1126, %v764
    %v1128 = vmul.f32 %v1126, %v765
    %v1129 = vmul.f32 %v1126, %v766
    %v1130 = vmul.f32 %v1126, %v767
    %v1131 = vadd.f32 %v1122, %v1127
    %v1132 = vadd.f32 %v1123, %v1128
    %v1133 = vadd.f32 %v1124, %v1129
    %v1134 = vadd.f32 %v1125, %v1130
    %s1135 = scalar_lea.vmem %s2, 32
    %v1136 = vld [vmem:[%s1135] sm:$0xff]
    %v1137 = vld [vmem:[%s1135 + $0x8] sm:$0xff]
    %v1138 = vld [vmem:[%s1135 + $0x10] sm:$0xff]
    %v1139 = vld [vmem:[%s1135 + $0x18] sm:$0xff]
    %v1140 = vadd.f32 %v1131, %v1136
    %v1141 = vadd.f32 %v1132, %v1137
    %v1142 = vadd.f32 %v1133, %v1138
    %v1143 = vadd.f32 %v1134, %v1139
    %v1144 = vld [vmem:[%s3 + $0x2] sm:$0x1]
    %v1145 = vpack.c.bf16 %v1141, %v1140
    %v1146 = vpack.c.bf16 %v1143, %v1142
    %v1148 = vsel %vm217, %v1145, 0
    %v1151 = vsel %vm217, %v1146, 0
    %1153 = vmatprep.subr.bf16.mxu0 0
    %1154 = vmatpush1.bf16.msra.mxu0 0
    %1155 = vmatprep.subr.bf16.mxu0 0
    %1156 = vmatpush1.bf16.msra.mxu0 0
    %1157 = vmatprep.subr.bf16.mxu0 0
    %1158 = vmatpush1.bf16.msra.mxu0 0
    %1159 = vmatprep.subr.bf16.mxu0 0
    %1160 = vmatpush1.bf16.msra.mxu0 0
    %1161 = vmatprep.subr.bf16.mxu0 0
    %1162 = vmatpush1.bf16.msra.mxu0 0
    %1163 = vmatprep.subr.bf16.mxu0 0
    %1164 = vmatpush1.bf16.msra.mxu0 0
    %1165 = vmatprep.subr.bf16.mxu0 0
    %1166 = vmatpush1.bf16.msra.mxu0 0
    %1167 = vmatprep.subr.bf16.mxu0 0
    %1168 = vmatpush1.bf16.msra.mxu0 %v226
    %1169 = vmatprep.subr.bf16.mxu0 0
    %1170 = vmatpush2.bf16.msra.mxu0 0
    %1171 = vmatprep.subr.bf16.mxu0 0
    %1172 = vmatpush2.bf16.msra.mxu0 0
    %1173 = vmatprep.subr.bf16.mxu0 0
    %1174 = vmatpush2.bf16.msra.mxu0 0
    %1175 = vmatprep.subr.bf16.mxu0 0
    %1176 = vmatpush2.bf16.msra.mxu0 0
    %1177 = vmatprep.subr.bf16.mxu0 0
    %1178 = vmatpush2.bf16.msra.mxu0 0
    %1179 = vmatprep.subr.bf16.mxu0 0
    %1180 = vmatpush2.bf16.msra.mxu0 0
    %1181 = vmatprep.subr.bf16.mxu0 0
    %1182 = vmatpush2.bf16.msra.mxu0 0
    %1183 = vmatprep.subr.bf16.mxu0 0
    %1184 = vmatpush2.bf16.msra.mxu0 0
    %1185 = vmatprep.mubr.bf16.mxu0 0
    %1186 = vmatmul.mubr.bf16.gmra.mxu0 %v1148
    %v1187 = vpop.f32.mrf.mxu0
    %v1188 = vadd.f32 %v196, %v1187
    %v1189 = vpop.f32.mrf.mxu0
    %v1190 = vpop.f32.mrf.mxu0
    %v1191 = vadd.f32 %v199, %v1190
    %v1192 = vpop.f32.mrf.mxu0
    %1193 = vmatprep.mubr.bf16.mxu0 0
    %1194 = vmatmul.mubr.bf16.gmra.mxu0 %v1151
    %v1195 = vpop.f32.mrf.mxu0
    %v1196 = vadd.f32 %v204, %v1195
    %v1197 = vpop.f32.mrf.mxu0
    %v1198 = vpop.f32.mrf.mxu0
    %v1199 = vadd.f32 %v207, %v1198
    %v1200 = vpop.f32.mrf.mxu0
    %1201 = vdwg.mxu0
    %v1202 = vlaneseq
    %v1203 = vshrl.u32 %v1202, 7
    %v1204 = vsub.s32 0, %v1203
    %v1205 = vrot.slane %v1144, %v1204
    %v1206 = vadd.f32 %v1188, %v1205
    %v1207 = vadd.f32 %v1191, %v1205
    %v1208 = vadd.f32 %v1196, %v1205
    %v1209 = vadd.f32 %v1199, %v1205
    %v1210 = vmin.f32 %v1206, 20.0
    %v1211 = vmin.f32 %v1207, 20.0
    %v1212 = vmin.f32 %v1208, 20.0
    %v1213 = vmin.f32 %v1209, 20.0
    %v1214 = vmul.f32 %v1210, 1.442695
    %v1215 = vpow.pop %v1214
    %v1216 = vmul.f32 %v1211, 1.442695
    %v1217 = vpow.pop %v1216
    %v1218 = vmul.f32 %v1212, 1.442695
    %v1219 = vpow.pop %v1218
    %v1220 = vmul.f32 %v1213, 1.442695
    %v1221 = vpow.pop %v1220
    %v1222 = vadd.f32 %v1215, 2.0
    %v1223 = vadd.f32 %v1217, 2.0
    %v1224 = vadd.f32 %v1219, 2.0
    %v1225 = vadd.f32 %v1221, 2.0
    %v1226 = vmul.f32 %v1215, %v1222
    %v1227 = vmul.f32 %v1217, %v1223
    %v1228 = vmul.f32 %v1219, %v1224
    %v1229 = vmul.f32 %v1221, %v1225
    %v1230 = vadd.f32 %v1226, 2.0
    %v1231 = vadd.f32 %v1227, 2.0
    %v1232 = vadd.f32 %v1228, 2.0
    %v1233 = vadd.f32 %v1229, 2.0
    %v1234 = vmul.f32 %v1206, %v1226
    %v1235 = vmul.f32 %v1207, %v1227
    %v1236 = vmul.f32 %v1208, %v1228
    %v1237 = vmul.f32 %v1209, %v1229
    %v1238 = vrcp.pop %v1230
    %v1239 = vrcp.pop %v1231
    %v1240 = vrcp.pop %v1232
    %v1241 = vrcp.pop %v1233
    %v1242 = vmul.f32 %v1234, %v1238
    %v1243 = vmul.f32 %v1235, %v1239
    %v1244 = vmul.f32 %v1236, %v1240
    %v1245 = vmul.f32 %v1237, %v1241
    %v1246 = vpack.c.bf16 %v1243, %v1242
    %v1247 = vpack.c.bf16 %v1245, %v1244
    %1248 = vmatprep.subr.bf16.mxu0 0
    %1249 = vmatpush1.bf16.msra.mxu0 %v368
    %1250 = vmatprep.subr.bf16.mxu0 0
    %1251 = vmatpush1.bf16.msra.mxu0 %v367
    %1252 = vmatprep.subr.bf16.mxu0 0
    %1253 = vmatpush1.bf16.msra.mxu0 %v366
    %1254 = vmatprep.subr.bf16.mxu0 0
    %1255 = vmatpush1.bf16.msra.mxu0 %v365
    %1256 = vmatprep.subr.bf16.mxu0 0
    %1257 = vmatpush1.bf16.msra.mxu0 %v364
    %1258 = vmatprep.subr.bf16.mxu0 0
    %1259 = vmatpush1.bf16.msra.mxu0 %v363
    %1260 = vmatprep.subr.bf16.mxu0 0
    %1261 = vmatpush1.bf16.msra.mxu0 %v362
    %1262 = vmatprep.subr.bf16.mxu0 0
    %1263 = vmatpush1.bf16.msra.mxu0 %v361
    %1264 = vmatprep.subr.bf16.mxu0 0
    %1265 = vmatpush2.bf16.msra.mxu0 0
    %1266 = vmatprep.subr.bf16.mxu0 0
    %1267 = vmatpush2.bf16.msra.mxu0 0
    %1268 = vmatprep.subr.bf16.mxu0 0
    %1269 = vmatpush2.bf16.msra.mxu0 0
    %1270 = vmatprep.subr.bf16.mxu0 0
    %1271 = vmatpush2.bf16.msra.mxu0 0
    %1272 = vmatprep.subr.bf16.mxu0 0
    %1273 = vmatpush2.bf16.msra.mxu0 0
    %1274 = vmatprep.subr.bf16.mxu0 0
    %1275 = vmatpush2.bf16.msra.mxu0 0
    %1276 = vmatprep.subr.bf16.mxu0 0
    %1277 = vmatpush2.bf16.msra.mxu0 0
    %1278 = vmatprep.subr.bf16.mxu0 0
    %1279 = vmatpush2.bf16.msra.mxu0 0
    %1280 = vmatprep.mubr.bf16.mxu0 0
    %1281 = vmatmul.mubr.bf16.gmra.mxu0 %v1246
    %v1282 = vpop.f32.mrf.mxu0
    %v1283 = vadd.f32 %v327, %v1282
    %v1284 = vpop.f32.mrf.mxu0
    %v1285 = vpop.f32.mrf.mxu0
    %v1286 = vadd.f32 %v327, %v1285
    %v1287 = vpop.f32.mrf.mxu0
    %1288 = vmatprep.mubr.bf16.mxu0 0
    %1289 = vmatmul.mubr.bf16.gmra.mxu0 %v1247
    %v1290 = vpop.f32.mrf.mxu0
    %v1291 = vadd.f32 %v327, %v1290
    %v1292 = vpop.f32.mrf.mxu0
    %v1293 = vpop.f32.mrf.mxu0
    %v1294 = vadd.f32 %v327, %v1293
    %v1295 = vpop.f32.mrf.mxu0
    %1296 = vdwg.mxu0
    %v1297 = vmin.f32 %v1283, 20.0
    %v1298 = vmin.f32 %v1286, 20.0
    %v1299 = vmin.f32 %v1291, 20.0
    %v1300 = vmin.f32 %v1294, 20.0
    %v1301 = vmul.f32 %v1297, 1.442695
    %v1302 = vpow.pop %v1301
    %v1303 = vmul.f32 %v1298, 1.442695
    %v1304 = vpow.pop %v1303
    %v1305 = vmul.f32 %v1299, 1.442695
    %v1306 = vpow.pop %v1305
    %v1307 = vmul.f32 %v1300, 1.442695
    %v1308 = vpow.pop %v1307
    %v1309 = vadd.f32 %v1302, 2.0
    %v1310 = vadd.f32 %v1304, 2.0
    %v1311 = vadd.f32 %v1306, 2.0
    %v1312 = vadd.f32 %v1308, 2.0
    %v1313 = vmul.f32 %v1302, %v1309
    %v1314 = vmul.f32 %v1304, %v1310
    %v1315 = vmul.f32 %v1306, %v1311
    %v1316 = vmul.f32 %v1308, %v1312
    %v1317 = vadd.f32 %v1313, 2.0
    %v1318 = vadd.f32 %v1314, 2.0
    %v1319 = vadd.f32 %v1315, 2.0
    %v1320 = vadd.f32 %v1316, 2.0
    %v1321 = vmul.f32 %v1283, %v1313
    %v1322 = vmul.f32 %v1286, %v1314
    %v1323 = vmul.f32 %v1291, %v1315
    %v1324 = vmul.f32 %v1294, %v1316
    %v1325 = vrcp.pop %v1317
    %v1326 = vrcp.pop %v1318
    %v1327 = vrcp.pop %v1319
    %v1328 = vrcp.pop %v1320
    %v1329 = vmul.f32 %v1321, %v1325
    %v1330 = vmul.f32 %v1322, %v1326
    %v1331 = vmul.f32 %v1323, %v1327
    %v1332 = vmul.f32 %v1324, %v1328
    %v1333 = vpack.c.bf16 %v1330, %v1329
    %v1334 = vpack.c.bf16 %v1332, %v1331
    %1335 = vmatprep.subr.bf16.mxu0 0
    %1336 = vmatpush1.bf16.msra.mxu0 %v509
    %1337 = vmatprep.subr.bf16.mxu0 0
    %1338 = vmatpush1.bf16.msra.mxu0 %v508
    %1339 = vmatprep.subr.bf16.mxu0 0
    %1340 = vmatpush1.bf16.msra.mxu0 %v507
    %1341 = vmatprep.subr.bf16.mxu0 0
    %1342 = vmatpush1.bf16.msra.mxu0 %v506
    %1343 = vmatprep.subr.bf16.mxu0 0
    %1344 = vmatpush1.bf16.msra.mxu0 %v505
    %1345 = vmatprep.subr.bf16.mxu0 0
    %1346 = vmatpush1.bf16.msra.mxu0 %v504
    %1347 = vmatprep.subr.bf16.mxu0 0
    %1348 = vmatpush1.bf16.msra.mxu0 %v503
    %1349 = vmatprep.subr.bf16.mxu0 0
    %1350 = vmatpush1.bf16.msra.mxu0 %v502
    %1351 = vmatprep.subr.bf16.mxu0 0
    %1352 = vmatpush2.bf16.msra.mxu0 0
    %1353 = vmatprep.subr.bf16.mxu0 0
    %1354 = vmatpush2.bf16.msra.mxu0 0
    %1355 = vmatprep.subr.bf16.mxu0 0
    %1356 = vmatpush2.bf16.msra.mxu0 0
    %1357 = vmatprep.subr.bf16.mxu0 0
    %1358 = vmatpush2.bf16.msra.mxu0 0
    %1359 = vmatprep.subr.bf16.mxu0 0
    %1360 = vmatpush2.bf16.msra.mxu0 0
    %1361 = vmatprep.subr.bf16.mxu0 0
    %1362 = vmatpush2.bf16.msra.mxu0 0
    %1363 = vmatprep.subr.bf16.mxu0 0
    %1364 = vmatpush2.bf16.msra.mxu0 0
    %1365 = vmatprep.subr.bf16.mxu0 0
    %1366 = vmatpush2.bf16.msra.mxu0 0
    %1367 = vmatprep.mubr.bf16.mxu0 0
    %1368 = vmatmul.mubr.bf16.gmra.mxu0 %v1333
    %v1369 = vpop.f32.mrf.mxu0
    %v1370 = vadd.f32 %v468, %v1369
    %v1371 = vpop.f32.mrf.mxu0
    %v1372 = vpop.f32.mrf.mxu0
    %v1373 = vadd.f32 %v468, %v1372
    %v1374 = vpop.f32.mrf.mxu0
    %1375 = vmatprep.mubr.bf16.mxu0 0
    %1376 = vmatmul.mubr.bf16.gmra.mxu0 %v1334
    %v1377 = vpop.f32.mrf.mxu0
    %v1378 = vadd.f32 %v468, %v1377
    %v1379 = vpop.f32.mrf.mxu0
    %v1380 = vpop.f32.mrf.mxu0
    %v1381 = vadd.f32 %v468, %v1380
    %v1382 = vpop.f32.mrf.mxu0
    %1383 = vdwg.mxu0
    %v1384 = vmin.f32 %v1370, 20.0
    %v1385 = vmin.f32 %v1373, 20.0
    %v1386 = vmin.f32 %v1378, 20.0
    %v1387 = vmin.f32 %v1381, 20.0
    %v1388 = vmul.f32 %v1384, 1.442695
    %v1389 = vpow.pop %v1388
    %v1390 = vmul.f32 %v1385, 1.442695
    %v1391 = vpow.pop %v1390
    %v1392 = vmul.f32 %v1386, 1.442695
    %v1393 = vpow.pop %v1392
    %v1394 = vmul.f32 %v1387, 1.442695
    %v1395 = vpow.pop %v1394
    %v1396 = vadd.f32 %v1389, 2.0
    %v1397 = vadd.f32 %v1391, 2.0
    %v1398 = vadd.f32 %v1393, 2.0
    %v1399 = vadd.f32 %v1395, 2.0
    %v1400 = vmul.f32 %v1389, %v1396
    %v1401 = vmul.f32 %v1391, %v1397
    %v1402 = vmul.f32 %v1393, %v1398
    %v1403 = vmul.f32 %v1395, %v1399
    %v1404 = vadd.f32 %v1400, 2.0
    %v1405 = vadd.f32 %v1401, 2.0
    %v1406 = vadd.f32 %v1402, 2.0
    %v1407 = vadd.f32 %v1403, 2.0
    %v1408 = vmul.f32 %v1370, %v1400
    %v1409 = vmul.f32 %v1373, %v1401
    %v1410 = vmul.f32 %v1378, %v1402
    %v1411 = vmul.f32 %v1381, %v1403
    %v1412 = vrcp.pop %v1404
    %v1413 = vrcp.pop %v1405
    %v1414 = vrcp.pop %v1406
    %v1415 = vrcp.pop %v1407
    %v1416 = vmul.f32 %v1408, %v1412
    %v1417 = vmul.f32 %v1409, %v1413
    %v1418 = vmul.f32 %v1410, %v1414
    %v1419 = vmul.f32 %v1411, %v1415
    %v1420 = vpack.c.bf16 %v1417, %v1416
    %v1421 = vpack.c.bf16 %v1419, %v1418
    %1422 = vmatprep.subr.bf16.mxu0 0
    %1423 = vmatpush1.bf16.msra.mxu0 %v650
    %1424 = vmatprep.subr.bf16.mxu0 0
    %1425 = vmatpush1.bf16.msra.mxu0 %v649
    %1426 = vmatprep.subr.bf16.mxu0 0
    %1427 = vmatpush1.bf16.msra.mxu0 %v648
    %1428 = vmatprep.subr.bf16.mxu0 0
    %1429 = vmatpush1.bf16.msra.mxu0 %v647
    %1430 = vmatprep.subr.bf16.mxu0 0
    %1431 = vmatpush1.bf16.msra.mxu0 %v646
    %1432 = vmatprep.subr.bf16.mxu0 0
    %1433 = vmatpush1.bf16.msra.mxu0 %v645
    %1434 = vmatprep.subr.bf16.mxu0 0
    %1435 = vmatpush1.bf16.msra.mxu0 %v644
    %1436 = vmatprep.subr.bf16.mxu0 0
    %1437 = vmatpush1.bf16.msra.mxu0 %v643
    %1438 = vmatprep.subr.bf16.mxu0 0
    %1439 = vmatpush2.bf16.msra.mxu0 0
    %1440 = vmatprep.subr.bf16.mxu0 0
    %1441 = vmatpush2.bf16.msra.mxu0 0
    %1442 = vmatprep.subr.bf16.mxu0 0
    %1443 = vmatpush2.bf16.msra.mxu0 0
    %1444 = vmatprep.subr.bf16.mxu0 0
    %1445 = vmatpush2.bf16.msra.mxu0 0
    %1446 = vmatprep.subr.bf16.mxu0 0
    %1447 = vmatpush2.bf16.msra.mxu0 0
    %1448 = vmatprep.subr.bf16.mxu0 0
    %1449 = vmatpush2.bf16.msra.mxu0 0
    %1450 = vmatprep.subr.bf16.mxu0 0
    %1451 = vmatpush2.bf16.msra.mxu0 0
    %1452 = vmatprep.subr.bf16.mxu0 0
    %1453 = vmatpush2.bf16.msra.mxu0 0
    %1454 = vmatprep.mubr.bf16.mxu0 0
    %1455 = vmatmul.mubr.bf16.gmra.mxu0 %v1420
    %v1456 = vpop.f32.mrf.mxu0
    %v1457 = vadd.f32 %v609, %v1456
    %v1458 = vpop.f32.mrf.mxu0
    %v1459 = vpop.f32.mrf.mxu0
    %v1460 = vadd.f32 %v609, %v1459
    %v1461 = vpop.f32.mrf.mxu0
    %1462 = vmatprep.mubr.bf16.mxu0 0
    %1463 = vmatmul.mubr.bf16.gmra.mxu0 %v1421
    %v1464 = vpop.f32.mrf.mxu0
    %v1465 = vadd.f32 %v609, %v1464
    %v1466 = vpop.f32.mrf.mxu0
    %v1467 = vpop.f32.mrf.mxu0
    %v1468 = vadd.f32 %v609, %v1467
    %v1469 = vpop.f32.mrf.mxu0
    %1470 = vdwg.mxu0
    %s1471 = sld [smem:[#allocation2 + $0x8]]
    %s1472 = sld [smem:[#allocation2 + $0x9]]
    %s1473 = sld [smem:[#allocation2 + $0xa]]
    %s1474 = sld [smem:[#allocation2 + $0xb]]
    %v1475 = vstv %s1471
    %v1476 = vmul.f32 %v1475, %v1140
    %v1477 = vmul.f32 %v1475, %v1141
    %v1478 = vmul.f32 %v1475, %v1142
    %v1479 = vmul.f32 %v1475, %v1143
    %v1480 = vstv %s1472
    %v1481 = vmul.f32 %v1480, %v1457
    %v1482 = vmul.f32 %v1480, %v1460
    %v1483 = vmul.f32 %v1480, %v1465
    %v1484 = vmul.f32 %v1480, %v1468
    %v1485 = vsub.f32 %v1476, %v1481
    %v1486 = vsub.f32 %v1477, %v1482
    %v1487 = vsub.f32 %v1478, %v1483
    %v1488 = vsub.f32 %v1479, %v1484
    %v1489 = vmax.f32 %v730, %v1485
    %v1490 = vmax.f32 %v730, %v1486
    %v1491 = vmax.f32 %v730, %v1487
    %v1492 = vmax.f32 %v730, %v1488
    %v1493 = vmin.f32 %v740, %v1489
    %v1494 = vmin.f32 %v740, %v1490
    %v1495 = vmin.f32 %v740, %v1491
    %v1496 = vmin.f32 %v740, %v1492
    %v1497 = vstv %s1473
    %v1498 = vmul.f32 %v1497, %v1493
    %v1499 = vmul.f32 %v1497, %v1494
    %v1500 = vmul.f32 %v1497, %v1495
    %v1501 = vmul.f32 %v1497, %v1496
    %v1502 = vstv %s1474
    %v1503 = vmul.f32 %v1502, %v1140
    %v1504 = vmul.f32 %v1502, %v1141
    %v1505 = vmul.f32 %v1502, %v1142
    %v1506 = vmul.f32 %v1502, %v1143
    %v1507 = vadd.f32 %v1498, %v1503
    %v1508 = vadd.f32 %v1499, %v1504
    %v1509 = vadd.f32 %v1500, %v1505
    %v1510 = vadd.f32 %v1501, %v1506
    %s1511 = scalar_lea.vmem %s2, 64
    %v1512 = vld [vmem:[%s1511] sm:$0xff]
    %v1513 = vld [vmem:[%s1511 + $0x8] sm:$0xff]
    %v1514 = vld [vmem:[%s1511 + $0x10] sm:$0xff]
    %v1515 = vld [vmem:[%s1511 + $0x18] sm:$0xff]
    %v1516 = vadd.f32 %v1507, %v1512
    %v1517 = vadd.f32 %v1508, %v1513
    %v1518 = vadd.f32 %v1509, %v1514
    %v1519 = vadd.f32 %v1510, %v1515
    %v1520 = vld [vmem:[%s3 + $0x3] sm:$0x1]
    %v1521 = vpack.c.bf16 %v1517, %v1516
    %v1522 = vpack.c.bf16 %v1519, %v1518
    %v1524 = vsel %vm217, %v1521, 0
    %v1527 = vsel %vm217, %v1522, 0
    %1529 = vmatprep.subr.bf16.mxu0 0
    %1530 = vmatpush1.bf16.msra.mxu0 0
    %1531 = vmatprep.subr.bf16.mxu0 0
    %1532 = vmatpush1.bf16.msra.mxu0 0
    %1533 = vmatprep.subr.bf16.mxu0 0
    %1534 = vmatpush1.bf16.msra.mxu0 0
    %1535 = vmatprep.subr.bf16.mxu0 0
    %1536 = vmatpush1.bf16.msra.mxu0 0
    %1537 = vmatprep.subr.bf16.mxu0 0
    %1538 = vmatpush1.bf16.msra.mxu0 0
    %1539 = vmatprep.subr.bf16.mxu0 0
    %1540 = vmatpush1.bf16.msra.mxu0 0
    %1541 = vmatprep.subr.bf16.mxu0 0
    %1542 = vmatpush1.bf16.msra.mxu0 0
    %1543 = vmatprep.subr.bf16.mxu0 0
    %1544 = vmatpush1.bf16.msra.mxu0 %v226
    %1545 = vmatprep.subr.bf16.mxu0 0
    %1546 = vmatpush2.bf16.msra.mxu0 0
    %1547 = vmatprep.subr.bf16.mxu0 0
    %1548 = vmatpush2.bf16.msra.mxu0 0
    %1549 = vmatprep.subr.bf16.mxu0 0
    %1550 = vmatpush2.bf16.msra.mxu0 0
    %1551 = vmatprep.subr.bf16.mxu0 0
    %1552 = vmatpush2.bf16.msra.mxu0 0
    %1553 = vmatprep.subr.bf16.mxu0 0
    %1554 = vmatpush2.bf16.msra.mxu0 0
    %1555 = vmatprep.subr.bf16.mxu0 0
    %1556 = vmatpush2.bf16.msra.mxu0 0
    %1557 = vmatprep.subr.bf16.mxu0 0
    %1558 = vmatpush2.bf16.msra.mxu0 0
    %1559 = vmatprep.subr.bf16.mxu0 0
    %1560 = vmatpush2.bf16.msra.mxu0 0
    %1561 = vmatprep.mubr.bf16.mxu0 0
    %1562 = vmatmul.mubr.bf16.gmra.mxu0 %v1524
    %v1563 = vpop.f32.mrf.mxu0
    %v1564 = vadd.f32 %v196, %v1563
    %v1565 = vpop.f32.mrf.mxu0
    %v1566 = vpop.f32.mrf.mxu0
    %v1567 = vadd.f32 %v199, %v1566
    %v1568 = vpop.f32.mrf.mxu0
    %1569 = vmatprep.mubr.bf16.mxu0 0
    %1570 = vmatmul.mubr.bf16.gmra.mxu0 %v1527
    %v1571 = vpop.f32.mrf.mxu0
    %v1572 = vadd.f32 %v204, %v1571
    %v1573 = vpop.f32.mrf.mxu0
    %v1574 = vpop.f32.mrf.mxu0
    %v1575 = vadd.f32 %v207, %v1574
    %v1576 = vpop.f32.mrf.mxu0
    %1577 = vdwg.mxu0
    %v1578 = vlaneseq
    %v1579 = vshrl.u32 %v1578, 7
    %v1580 = vsub.s32 0, %v1579
    %v1581 = vrot.slane %v1520, %v1580
    %v1582 = vadd.f32 %v1564, %v1581
    %v1583 = vadd.f32 %v1567, %v1581
    %v1584 = vadd.f32 %v1572, %v1581
    %v1585 = vadd.f32 %v1575, %v1581
    %v1586 = vmin.f32 %v1582, 20.0
    %v1587 = vmin.f32 %v1583, 20.0
    %v1588 = vmin.f32 %v1584, 20.0
    %v1589 = vmin.f32 %v1585, 20.0
    %v1590 = vmul.f32 %v1586, 1.442695
    %v1591 = vpow.pop %v1590
    %v1592 = vmul.f32 %v1587, 1.442695
    %v1593 = vpow.pop %v1592
    %v1594 = vmul.f32 %v1588, 1.442695
    %v1595 = vpow.pop %v1594
    %v1596 = vmul.f32 %v1589, 1.442695
    %v1597 = vpow.pop %v1596
    %v1598 = vadd.f32 %v1591, 2.0
    %v1599 = vadd.f32 %v1593, 2.0
    %v1600 = vadd.f32 %v1595, 2.0
    %v1601 = vadd.f32 %v1597, 2.0
    %v1602 = vmul.f32 %v1591, %v1598
    %v1603 = vmul.f32 %v1593, %v1599
    %v1604 = vmul.f32 %v1595, %v1600
    %v1605 = vmul.f32 %v1597, %v1601
    %v1606 = vadd.f32 %v1602, 2.0
    %v1607 = vadd.f32 %v1603, 2.0
    %v1608 = vadd.f32 %v1604, 2.0
    %v1609 = vadd.f32 %v1605, 2.0
    %v1610 = vmul.f32 %v1582, %v1602
    %v1611 = vmul.f32 %v1583, %v1603
    %v1612 = vmul.f32 %v1584, %v1604
    %v1613 = vmul.f32 %v1585, %v1605
    %v1614 = vrcp.pop %v1606
    %v1615 = vrcp.pop %v1607
    %v1616 = vrcp.pop %v1608
    %v1617 = vrcp.pop %v1609
    %v1618 = vmul.f32 %v1610, %v1614
    %v1619 = vmul.f32 %v1611, %v1615
    %v1620 = vmul.f32 %v1612, %v1616
    %v1621 = vmul.f32 %v1613, %v1617
    %v1622 = vpack.c.bf16 %v1619, %v1618
    %v1623 = vpack.c.bf16 %v1621, %v1620
    %1624 = vmatprep.subr.bf16.mxu0 0
    %1625 = vmatpush1.bf16.msra.mxu0 %v368
    %1626 = vmatprep.subr.bf16.mxu0 0
    %1627 = vmatpush1.bf16.msra.mxu0 %v367
    %1628 = vmatprep.subr.bf16.mxu0 0
    %1629 = vmatpush1.bf16.msra.mxu0 %v366
    %1630 = vmatprep.subr.bf16.mxu0 0
    %1631 = vmatpush1.bf16.msra.mxu0 %v365
    %1632 = vmatprep.subr.bf16.mxu0 0
    %1633 = vmatpush1.bf16.msra.mxu0 %v364
    %1634 = vmatprep.subr.bf16.mxu0 0
    %1635 = vmatpush1.bf16.msra.mxu0 %v363
    %1636 = vmatprep.subr.bf16.mxu0 0
    %1637 = vmatpush1.bf16.msra.mxu0 %v362
    %1638 = vmatprep.subr.bf16.mxu0 0
    %1639 = vmatpush1.bf16.msra.mxu0 %v361
    %1640 = vmatprep.subr.bf16.mxu0 0
    %1641 = vmatpush2.bf16.msra.mxu0 0
    %1642 = vmatprep.subr.bf16.mxu0 0
    %1643 = vmatpush2.bf16.msra.mxu0 0
    %1644 = vmatprep.subr.bf16.mxu0 0
    %1645 = vmatpush2.bf16.msra.mxu0 0
    %1646 = vmatprep.subr.bf16.mxu0 0
    %1647 = vmatpush2.bf16.msra.mxu0 0
    %1648 = vmatprep.subr.bf16.mxu0 0
    %1649 = vmatpush2.bf16.msra.mxu0 0
    %1650 = vmatprep.subr.bf16.mxu0 0
    %1651 = vmatpush2.bf16.msra.mxu0 0
    %1652 = vmatprep.subr.bf16.mxu0 0
    %1653 = vmatpush2.bf16.msra.mxu0 0
    %1654 = vmatprep.subr.bf16.mxu0 0
    %1655 = vmatpush2.bf16.msra.mxu0 0
    %1656 = vmatprep.mubr.bf16.mxu0 0
    %1657 = vmatmul.mubr.bf16.gmra.mxu0 %v1622
    %v1658 = vpop.f32.mrf.mxu0
    %v1659 = vadd.f32 %v327, %v1658
    %v1660 = vpop.f32.mrf.mxu0
    %v1661 = vpop.f32.mrf.mxu0
    %v1662 = vadd.f32 %v327, %v1661
    %v1663 = vpop.f32.mrf.mxu0
    %1664 = vmatprep.mubr.bf16.mxu0 0
    %1665 = vmatmul.mubr.bf16.gmra.mxu0 %v1623
    %v1666 = vpop.f32.mrf.mxu0
    %v1667 = vadd.f32 %v327, %v1666
    %v1668 = vpop.f32.mrf.mxu0
    %v1669 = vpop.f32.mrf.mxu0
    %v1670 = vadd.f32 %v327, %v1669
    %v1671 = vpop.f32.mrf.mxu0
    %1672 = vdwg.mxu0
    %v1673 = vmin.f32 %v1659, 20.0
    %v1674 = vmin.f32 %v1662, 20.0
    %v1675 = vmin.f32 %v1667, 20.0
    %v1676 = vmin.f32 %v1670, 20.0
    %v1677 = vmul.f32 %v1673, 1.442695
    %v1678 = vpow.pop %v1677
    %v1679 = vmul.f32 %v1674, 1.442695
    %v1680 = vpow.pop %v1679
    %v1681 = vmul.f32 %v1675, 1.442695
    %v1682 = vpow.pop %v1681
    %v1683 = vmul.f32 %v1676, 1.442695
    %v1684 = vpow.pop %v1683
    %v1685 = vadd.f32 %v1678, 2.0
    %v1686 = vadd.f32 %v1680, 2.0
    %v1687 = vadd.f32 %v1682, 2.0
    %v1688 = vadd.f32 %v1684, 2.0
    %v1689 = vmul.f32 %v1678, %v1685
    %v1690 = vmul.f32 %v1680, %v1686
    %v1691 = vmul.f32 %v1682, %v1687
    %v1692 = vmul.f32 %v1684, %v1688
    %v1693 = vadd.f32 %v1689, 2.0
    %v1694 = vadd.f32 %v1690, 2.0
    %v1695 = vadd.f32 %v1691, 2.0
    %v1696 = vadd.f32 %v1692, 2.0
    %v1697 = vmul.f32 %v1659, %v1689
    %v1698 = vmul.f32 %v1662, %v1690
    %v1699 = vmul.f32 %v1667, %v1691
    %v1700 = vmul.f32 %v1670, %v1692
    %v1701 = vrcp.pop %v1693
    %v1702 = vrcp.pop %v1694
    %v1703 = vrcp.pop %v1695
    %v1704 = vrcp.pop %v1696
    %v1705 = vmul.f32 %v1697, %v1701
    %v1706 = vmul.f32 %v1698, %v1702
    %v1707 = vmul.f32 %v1699, %v1703
    %v1708 = vmul.f32 %v1700, %v1704
    %v1709 = vpack.c.bf16 %v1706, %v1705
    %v1710 = vpack.c.bf16 %v1708, %v1707
    %1711 = vmatprep.subr.bf16.mxu0 0
    %1712 = vmatpush1.bf16.msra.mxu0 %v509
    %1713 = vmatprep.subr.bf16.mxu0 0
    %1714 = vmatpush1.bf16.msra.mxu0 %v508
    %1715 = vmatprep.subr.bf16.mxu0 0
    %1716 = vmatpush1.bf16.msra.mxu0 %v507
    %1717 = vmatprep.subr.bf16.mxu0 0
    %1718 = vmatpush1.bf16.msra.mxu0 %v506
    %1719 = vmatprep.subr.bf16.mxu0 0
    %1720 = vmatpush1.bf16.msra.mxu0 %v505
    %1721 = vmatprep.subr.bf16.mxu0 0
    %1722 = vmatpush1.bf16.msra.mxu0 %v504
    %1723 = vmatprep.subr.bf16.mxu0 0
    %1724 = vmatpush1.bf16.msra.mxu0 %v503
    %1725 = vmatprep.subr.bf16.mxu0 0
    %1726 = vmatpush1.bf16.msra.mxu0 %v502
    %1727 = vmatprep.subr.bf16.mxu0 0
    %1728 = vmatpush2.bf16.msra.mxu0 0
    %1729 = vmatprep.subr.bf16.mxu0 0
    %1730 = vmatpush2.bf16.msra.mxu0 0
    %1731 = vmatprep.subr.bf16.mxu0 0
    %1732 = vmatpush2.bf16.msra.mxu0 0
    %1733 = vmatprep.subr.bf16.mxu0 0
    %1734 = vmatpush2.bf16.msra.mxu0 0
    %1735 = vmatprep.subr.bf16.mxu0 0
    %1736 = vmatpush2.bf16.msra.mxu0 0
    %1737 = vmatprep.subr.bf16.mxu0 0
    %1738 = vmatpush2.bf16.msra.mxu0 0
    %1739 = vmatprep.subr.bf16.mxu0 0
    %1740 = vmatpush2.bf16.msra.mxu0 0
    %1741 = vmatprep.subr.bf16.mxu0 0
    %1742 = vmatpush2.bf16.msra.mxu0 0
    %1743 = vmatprep.mubr.bf16.mxu0 0
    %1744 = vmatmul.mubr.bf16.gmra.mxu0 %v1709
    %v1745 = vpop.f32.mrf.mxu0
    %v1746 = vadd.f32 %v468, %v1745
    %v1747 = vpop.f32.mrf.mxu0
    %v1748 = vpop.f32.mrf.mxu0
    %v1749 = vadd.f32 %v468, %v1748
    %v1750 = vpop.f32.mrf.mxu0
    %1751 = vmatprep.mubr.bf16.mxu0 0
    %1752 = vmatmul.mubr.bf16.gmra.mxu0 %v1710
    %v1753 = vpop.f32.mrf.mxu0
    %v1754 = vadd.f32 %v468, %v1753
    %v1755 = vpop.f32.mrf.mxu0
    %v1756 = vpop.f32.mrf.mxu0
    %v1757 = vadd.f32 %v468, %v1756
    %v1758 = vpop.f32.mrf.mxu0
    %1759 = vdwg.mxu0
    %v1760 = vmin.f32 %v1746, 20.0
    %v1761 = vmin.f32 %v1749, 20.0
    %v1762 = vmin.f32 %v1754, 20.0
    %v1763 = vmin.f32 %v1757, 20.0
    %v1764 = vmul.f32 %v1760, 1.442695
    %v1765 = vpow.pop %v1764
    %v1766 = vmul.f32 %v1761, 1.442695
    %v1767 = vpow.pop %v1766
    %v1768 = vmul.f32 %v1762, 1.442695
    %v1769 = vpow.pop %v1768
    %v1770 = vmul.f32 %v1763, 1.442695
    %v1771 = vpow.pop %v1770
    %v1772 = vadd.f32 %v1765, 2.0
    %v1773 = vadd.f32 %v1767, 2.0
    %v1774 = vadd.f32 %v1769, 2.0
    %v1775 = vadd.f32 %v1771, 2.0
    %v1776 = vmul.f32 %v1765, %v1772
    %v1777 = vmul.f32 %v1767, %v1773
    %v1778 = vmul.f32 %v1769, %v1774
    %v1779 = vmul.f32 %v1771, %v1775
    %v1780 = vadd.f32 %v1776, 2.0
    %v1781 = vadd.f32 %v1777, 2.0
    %v1782 = vadd.f32 %v1778, 2.0
    %v1783 = vadd.f32 %v1779, 2.0
    %v1784 = vmul.f32 %v1746, %v1776
    %v1785 = vmul.f32 %v1749, %v1777
    %v1786 = vmul.f32 %v1754, %v1778
    %v1787 = vmul.f32 %v1757, %v1779
    %v1788 = vrcp.pop %v1780
    %v1789 = vrcp.pop %v1781
    %v1790 = vrcp.pop %v1782
    %v1791 = vrcp.pop %v1783
    %v1792 = vmul.f32 %v1784, %v1788
    %v1793 = vmul.f32 %v1785, %v1789
    %v1794 = vmul.f32 %v1786, %v1790
    %v1795 = vmul.f32 %v1787, %v1791
    %v1796 = vpack.c.bf16 %v1793, %v1792
    %v1797 = vpack.c.bf16 %v1795, %v1794
    %1798 = vmatprep.subr.bf16.mxu0 0
    %1799 = vmatpush1.bf16.msra.mxu0 %v650
    %1800 = vmatprep.subr.bf16.mxu0 0
    %1801 = vmatpush1.bf16.msra.mxu0 %v649
    %1802 = vmatprep.subr.bf16.mxu0 0
    %1803 = vmatpush1.bf16.msra.mxu0 %v648
    %1804 = vmatprep.subr.bf16.mxu0 0
    %1805 = vmatpush1.bf16.msra.mxu0 %v647
    %1806 = vmatprep.subr.bf16.mxu0 0
    %1807 = vmatpush1.bf16.msra.mxu0 %v646
    %1808 = vmatprep.subr.bf16.mxu0 0
    %1809 = vmatpush1.bf16.msra.mxu0 %v645
    %1810 = vmatprep.subr.bf16.mxu0 0
    %1811 = vmatpush1.bf16.msra.mxu0 %v644
    %1812 = vmatprep.subr.bf16.mxu0 0
    %1813 = vmatpush1.bf16.msra.mxu0 %v643
    %1814 = vmatprep.subr.bf16.mxu0 0
    %1815 = vmatpush2.bf16.msra.mxu0 0
    %1816 = vmatprep.subr.bf16.mxu0 0
    %1817 = vmatpush2.bf16.msra.mxu0 0
    %1818 = vmatprep.subr.bf16.mxu0 0
    %1819 = vmatpush2.bf16.msra.mxu0 0
    %1820 = vmatprep.subr.bf16.mxu0 0
    %1821 = vmatpush2.bf16.msra.mxu0 0
    %1822 = vmatprep.subr.bf16.mxu0 0
    %1823 = vmatpush2.bf16.msra.mxu0 0
    %1824 = vmatprep.subr.bf16.mxu0 0
    %1825 = vmatpush2.bf16.msra.mxu0 0
    %1826 = vmatprep.subr.bf16.mxu0 0
    %1827 = vmatpush2.bf16.msra.mxu0 0
    %1828 = vmatprep.subr.bf16.mxu0 0
    %1829 = vmatpush2.bf16.msra.mxu0 0
    %1830 = vmatprep.mubr.bf16.mxu0 0
    %1831 = vmatmul.mubr.bf16.gmra.mxu0 %v1796
    %v1832 = vpop.f32.mrf.mxu0
    %v1833 = vadd.f32 %v609, %v1832
    %v1834 = vpop.f32.mrf.mxu0
    %v1835 = vpop.f32.mrf.mxu0
    %v1836 = vadd.f32 %v609, %v1835
    %v1837 = vpop.f32.mrf.mxu0
    %1838 = vmatprep.mubr.bf16.mxu0 0
    %1839 = vmatmul.mubr.bf16.gmra.mxu0 %v1797
    %v1840 = vpop.f32.mrf.mxu0
    %v1841 = vadd.f32 %v609, %v1840
    %v1842 = vpop.f32.mrf.mxu0
    %v1843 = vpop.f32.mrf.mxu0
    %v1844 = vadd.f32 %v609, %v1843
    %v1845 = vpop.f32.mrf.mxu0
    %1846 = vdwg.mxu0
    %s1847 = sld [smem:[#allocation2 + $0xc]]
    %s1848 = sld [smem:[#allocation2 + $0xd]]
    %s1849 = sld [smem:[#allocation2 + $0xe]]
    %s1850 = sld [smem:[#allocation2 + $0xf]]
    %v1851 = vstv %s1847
    %v1852 = vmul.f32 %v1851, %v1516
    %v1853 = vmul.f32 %v1851, %v1517
    %v1854 = vmul.f32 %v1851, %v1518
    %v1855 = vmul.f32 %v1851, %v1519
    %v1856 = vstv %s1848
    %v1857 = vmul.f32 %v1856, %v1833
    %v1858 = vmul.f32 %v1856, %v1836
    %v1859 = vmul.f32 %v1856, %v1841
    %v1860 = vmul.f32 %v1856, %v1844
    %v1861 = vsub.f32 %v1852, %v1857
    %v1862 = vsub.f32 %v1853, %v1858
    %v1863 = vsub.f32 %v1854, %v1859
    %v1864 = vsub.f32 %v1855, %v1860
    %v1865 = vmax.f32 %v730, %v1861
    %v1866 = vmax.f32 %v730, %v1862
    %v1867 = vmax.f32 %v730, %v1863
    %v1868 = vmax.f32 %v730, %v1864
    %v1869 = vmin.f32 %v740, %v1865
    %v1870 = vmin.f32 %v740, %v1866
    %v1871 = vmin.f32 %v740, %v1867
    %v1872 = vmin.f32 %v740, %v1868
    %v1873 = vstv %s1849
    %v1874 = vmul.f32 %v1873, %v1869
    %v1875 = vmul.f32 %v1873, %v1870
    %v1876 = vmul.f32 %v1873, %v1871
    %v1877 = vmul.f32 %v1873, %v1872
    %v1878 = vstv %s1850
    %v1879 = vmul.f32 %v1878, %v1516
    %v1880 = vmul.f32 %v1878, %v1517
    %v1881 = vmul.f32 %v1878, %v1518
    %v1882 = vmul.f32 %v1878, %v1519
    %v1883 = vadd.f32 %v1874, %v1879
    %v1884 = vadd.f32 %v1875, %v1880
    %v1885 = vadd.f32 %v1876, %v1881
    %v1886 = vadd.f32 %v1877, %v1882
    %s1887 = scalar_lea.vmem %s2, 96
    %v1888 = vld [vmem:[%s1887] sm:$0xff]
    %v1889 = vld [vmem:[%s1887 + $0x8] sm:$0xff]
    %v1890 = vld [vmem:[%s1887 + $0x10] sm:$0xff]
    %v1891 = vld [vmem:[%s1887 + $0x18] sm:$0xff]
    %v1892 = vadd.f32 %v1883, %v1888
    %v1893 = vadd.f32 %v1884, %v1889
    %v1894 = vadd.f32 %v1885, %v1890
    %v1895 = vadd.f32 %v1886, %v1891
    %v1896 = vld [vmem:[%s3 + $0x4] sm:$0x1]
    %v1897 = vpack.c.bf16 %v1893, %v1892
    %v1898 = vpack.c.bf16 %v1895, %v1894
    %v1900 = vsel %vm217, %v1897, 0
    %v1903 = vsel %vm217, %v1898, 0
    %1905 = vmatprep.subr.bf16.mxu0 0
    %1906 = vmatpush1.bf16.msra.mxu0 0
    %1907 = vmatprep.subr.bf16.mxu0 0
    %1908 = vmatpush1.bf16.msra.mxu0 0
    %1909 = vmatprep.subr.bf16.mxu0 0
    %1910 = vmatpush1.bf16.msra.mxu0 0
    %1911 = vmatprep.subr.bf16.mxu0 0
    %1912 = vmatpush1.bf16.msra.mxu0 0
    %1913 = vmatprep.subr.bf16.mxu0 0
    %1914 = vmatpush1.bf16.msra.mxu0 0
    %1915 = vmatprep.subr.bf16.mxu0 0
    %1916 = vmatpush1.bf16.msra.mxu0 0
    %1917 = vmatprep.subr.bf16.mxu0 0
    %1918 = vmatpush1.bf16.msra.mxu0 0
    %1919 = vmatprep.subr.bf16.mxu0 0
    %1920 = vmatpush1.bf16.msra.mxu0 %v226
    %1921 = vmatprep.subr.bf16.mxu0 0
    %1922 = vmatpush2.bf16.msra.mxu0 0
    %1923 = vmatprep.subr.bf16.mxu0 0
    %1924 = vmatpush2.bf16.msra.mxu0 0
    %1925 = vmatprep.subr.bf16.mxu0 0
    %1926 = vmatpush2.bf16.msra.mxu0 0
    %1927 = vmatprep.subr.bf16.mxu0 0
    %1928 = vmatpush2.bf16.msra.mxu0 0
    %1929 = vmatprep.subr.bf16.mxu0 0
    %1930 = vmatpush2.bf16.msra.mxu0 0
    %1931 = vmatprep.subr.bf16.mxu0 0
    %1932 = vmatpush2.bf16.msra.mxu0 0
    %1933 = vmatprep.subr.bf16.mxu0 0
    %1934 = vmatpush2.bf16.msra.mxu0 0
    %1935 = vmatprep.subr.bf16.mxu0 0
    %1936 = vmatpush2.bf16.msra.mxu0 0
    %1937 = vmatprep.mubr.bf16.mxu0 0
    %1938 = vmatmul.mubr.bf16.gmra.mxu0 %v1900
    %v1939 = vpop.f32.mrf.mxu0
    %v1940 = vadd.f32 %v196, %v1939
    %v1941 = vpop.f32.mrf.mxu0
    %v1942 = vpop.f32.mrf.mxu0
    %v1943 = vadd.f32 %v199, %v1942
    %v1944 = vpop.f32.mrf.mxu0
    %1945 = vmatprep.mubr.bf16.mxu0 0
    %1946 = vmatmul.mubr.bf16.gmra.mxu0 %v1903
    %v1947 = vpop.f32.mrf.mxu0
    %v1948 = vadd.f32 %v204, %v1947
    %v1949 = vpop.f32.mrf.mxu0
    %v1950 = vpop.f32.mrf.mxu0
    %v1951 = vadd.f32 %v207, %v1950
    %v1952 = vpop.f32.mrf.mxu0
    %1953 = vdwg.mxu0
    %v1954 = vlaneseq
    %v1955 = vshrl.u32 %v1954, 7
    %v1956 = vsub.s32 0, %v1955
    %v1957 = vrot.slane %v1896, %v1956
    %v1958 = vadd.f32 %v1940, %v1957
    %v1959 = vadd.f32 %v1943, %v1957
    %v1960 = vadd.f32 %v1948, %v1957
    %v1961 = vadd.f32 %v1951, %v1957
    %v1962 = vmin.f32 %v1958, 20.0
    %v1963 = vmin.f32 %v1959, 20.0
    %v1964 = vmin.f32 %v1960, 20.0
    %v1965 = vmin.f32 %v1961, 20.0
    %v1966 = vmul.f32 %v1962, 1.442695
    %v1967 = vpow.pop %v1966
    %v1968 = vmul.f32 %v1963, 1.442695
    %v1969 = vpow.pop %v1968
    %v1970 = vmul.f32 %v1964, 1.442695
    %v1971 = vpow.pop %v1970
    %v1972 = vmul.f32 %v1965, 1.442695
    %v1973 = vpow.pop %v1972
    %v1974 = vadd.f32 %v1967, 2.0
    %v1975 = vadd.f32 %v1969, 2.0
    %v1976 = vadd.f32 %v1971, 2.0
    %v1977 = vadd.f32 %v1973, 2.0
    %v1978 = vmul.f32 %v1967, %v1974
    %v1979 = vmul.f32 %v1969, %v1975
    %v1980 = vmul.f32 %v1971, %v1976
    %v1981 = vmul.f32 %v1973, %v1977
    %v1982 = vadd.f32 %v1978, 2.0
    %v1983 = vadd.f32 %v1979, 2.0
    %v1984 = vadd.f32 %v1980, 2.0
    %v1985 = vadd.f32 %v1981, 2.0
    %v1986 = vmul.f32 %v1958, %v1978
    %v1987 = vmul.f32 %v1959, %v1979
    %v1988 = vmul.f32 %v1960, %v1980
    %v1989 = vmul.f32 %v1961, %v1981
    %v1990 = vrcp.pop %v1982
    %v1991 = vrcp.pop %v1983
    %v1992 = vrcp.pop %v1984
    %v1993 = vrcp.pop %v1985
    %v1994 = vmul.f32 %v1986, %v1990
    %v1995 = vmul.f32 %v1987, %v1991
    %v1996 = vmul.f32 %v1988, %v1992
    %v1997 = vmul.f32 %v1989, %v1993
    %v1998 = vpack.c.bf16 %v1995, %v1994
    %v1999 = vpack.c.bf16 %v1997, %v1996
    %2000 = vmatprep.subr.bf16.mxu0 0
    %2001 = vmatpush1.bf16.msra.mxu0 %v368
    %2002 = vmatprep.subr.bf16.mxu0 0
    %2003 = vmatpush1.bf16.msra.mxu0 %v367
    %2004 = vmatprep.subr.bf16.mxu0 0
    %2005 = vmatpush1.bf16.msra.mxu0 %v366
    %2006 = vmatprep.subr.bf16.mxu0 0
    %2007 = vmatpush1.bf16.msra.mxu0 %v365
    %2008 = vmatprep.subr.bf16.mxu0 0
    %2009 = vmatpush1.bf16.msra.mxu0 %v364
    %2010 = vmatprep.subr.bf16.mxu0 0
    %2011 = vmatpush1.bf16.msra.mxu0 %v363
    %2012 = vmatprep.subr.bf16.mxu0 0
    %2013 = vmatpush1.bf16.msra.mxu0 %v362
    %2014 = vmatprep.subr.bf16.mxu0 0
    %2015 = vmatpush1.bf16.msra.mxu0 %v361
    %2016 = vmatprep.subr.bf16.mxu0 0
    %2017 = vmatpush2.bf16.msra.mxu0 0
    %2018 = vmatprep.subr.bf16.mxu0 0
    %2019 = vmatpush2.bf16.msra.mxu0 0
    %2020 = vmatprep.subr.bf16.mxu0 0
    %2021 = vmatpush2.bf16.msra.mxu0 0
    %2022 = vmatprep.subr.bf16.mxu0 0
    %2023 = vmatpush2.bf16.msra.mxu0 0
    %2024 = vmatprep.subr.bf16.mxu0 0
    %2025 = vmatpush2.bf16.msra.mxu0 0
    %2026 = vmatprep.subr.bf16.mxu0 0
    %2027 = vmatpush2.bf16.msra.mxu0 0
    %2028 = vmatprep.subr.bf16.mxu0 0
    %2029 = vmatpush2.bf16.msra.mxu0 0
    %2030 = vmatprep.subr.bf16.mxu0 0
    %2031 = vmatpush2.bf16.msra.mxu0 0
    %2032 = vmatprep.mubr.bf16.mxu0 0
    %2033 = vmatmul.mubr.bf16.gmra.mxu0 %v1998
    %v2034 = vpop.f32.mrf.mxu0
    %v2035 = vadd.f32 %v327, %v2034
    %v2036 = vpop.f32.mrf.mxu0
    %v2037 = vpop.f32.mrf.mxu0
    %v2038 = vadd.f32 %v327, %v2037
    %v2039 = vpop.f32.mrf.mxu0
    %2040 = vmatprep.mubr.bf16.mxu0 0
    %2041 = vmatmul.mubr.bf16.gmra.mxu0 %v1999
    %v2042 = vpop.f32.mrf.mxu0
    %v2043 = vadd.f32 %v327, %v2042
    %v2044 = vpop.f32.mrf.mxu0
    %v2045 = vpop.f32.mrf.mxu0
    %v2046 = vadd.f32 %v327, %v2045
    %v2047 = vpop.f32.mrf.mxu0
    %2048 = vdwg.mxu0
    %v2049 = vmin.f32 %v2035, 20.0
    %v2050 = vmin.f32 %v2038, 20.0
    %v2051 = vmin.f32 %v2043, 20.0
    %v2052 = vmin.f32 %v2046, 20.0
    %v2053 = vmul.f32 %v2049, 1.442695
    %v2054 = vpow.pop %v2053
    %v2055 = vmul.f32 %v2050, 1.442695
    %v2056 = vpow.pop %v2055
    %v2057 = vmul.f32 %v2051, 1.442695
    %v2058 = vpow.pop %v2057
    %v2059 = vmul.f32 %v2052, 1.442695
    %v2060 = vpow.pop %v2059
    %v2061 = vadd.f32 %v2054, 2.0
    %v2062 = vadd.f32 %v2056, 2.0
    %v2063 = vadd.f32 %v2058, 2.0
    %v2064 = vadd.f32 %v2060, 2.0
    %v2065 = vmul.f32 %v2054, %v2061
    %v2066 = vmul.f32 %v2056, %v2062
    %v2067 = vmul.f32 %v2058, %v2063
    %v2068 = vmul.f32 %v2060, %v2064
    %v2069 = vadd.f32 %v2065, 2.0
    %v2070 = vadd.f32 %v2066, 2.0
    %v2071 = vadd.f32 %v2067, 2.0
    %v2072 = vadd.f32 %v2068, 2.0
    %v2073 = vmul.f32 %v2035, %v2065
    %v2074 = vmul.f32 %v2038, %v2066
    %v2075 = vmul.f32 %v2043, %v2067
    %v2076 = vmul.f32 %v2046, %v2068
    %v2077 = vrcp.pop %v2069
    %v2078 = vrcp.pop %v2070
    %v2079 = vrcp.pop %v2071
    %v2080 = vrcp.pop %v2072
    %v2081 = vmul.f32 %v2073, %v2077
    %v2082 = vmul.f32 %v2074, %v2078
    %v2083 = vmul.f32 %v2075, %v2079
    %v2084 = vmul.f32 %v2076, %v2080
    %v2085 = vpack.c.bf16 %v2082, %v2081
    %v2086 = vpack.c.bf16 %v2084, %v2083
    %2087 = vmatprep.subr.bf16.mxu0 0
    %2088 = vmatpush1.bf16.msra.mxu0 %v509
    %2089 = vmatprep.subr.bf16.mxu0 0
    %2090 = vmatpush1.bf16.msra.mxu0 %v508
    %2091 = vmatprep.subr.bf16.mxu0 0
    %2092 = vmatpush1.bf16.msra.mxu0 %v507
    %2093 = vmatprep.subr.bf16.mxu0 0
    %2094 = vmatpush1.bf16.msra.mxu0 %v506
    %2095 = vmatprep.subr.bf16.mxu0 0
    %2096 = vmatpush1.bf16.msra.mxu0 %v505
    %2097 = vmatprep.subr.bf16.mxu0 0
    %2098 = vmatpush1.bf16.msra.mxu0 %v504
    %2099 = vmatprep.subr.bf16.mxu0 0
    %2100 = vmatpush1.bf16.msra.mxu0 %v503
    %2101 = vmatprep.subr.bf16.mxu0 0
    %2102 = vmatpush1.bf16.msra.mxu0 %v502
    %2103 = vmatprep.subr.bf16.mxu0 0
    %2104 = vmatpush2.bf16.msra.mxu0 0
    %2105 = vmatprep.subr.bf16.mxu0 0
    %2106 = vmatpush2.bf16.msra.mxu0 0
    %2107 = vmatprep.subr.bf16.mxu0 0
    %2108 = vmatpush2.bf16.msra.mxu0 0
    %2109 = vmatprep.subr.bf16.mxu0 0
    %2110 = vmatpush2.bf16.msra.mxu0 0
    %2111 = vmatprep.subr.bf16.mxu0 0
    %2112 = vmatpush2.bf16.msra.mxu0 0
    %2113 = vmatprep.subr.bf16.mxu0 0
    %2114 = vmatpush2.bf16.msra.mxu0 0
    %2115 = vmatprep.subr.bf16.mxu0 0
    %2116 = vmatpush2.bf16.msra.mxu0 0
    %2117 = vmatprep.subr.bf16.mxu0 0
    %2118 = vmatpush2.bf16.msra.mxu0 0
    %2119 = vmatprep.mubr.bf16.mxu0 0
    %2120 = vmatmul.mubr.bf16.gmra.mxu0 %v2085
    %v2121 = vpop.f32.mrf.mxu0
    %v2122 = vadd.f32 %v468, %v2121
    %v2123 = vpop.f32.mrf.mxu0
    %v2124 = vpop.f32.mrf.mxu0
    %v2125 = vadd.f32 %v468, %v2124
    %v2126 = vpop.f32.mrf.mxu0
    %2127 = vmatprep.mubr.bf16.mxu0 0
    %2128 = vmatmul.mubr.bf16.gmra.mxu0 %v2086
    %v2129 = vpop.f32.mrf.mxu0
    %v2130 = vadd.f32 %v468, %v2129
    %v2131 = vpop.f32.mrf.mxu0
    %v2132 = vpop.f32.mrf.mxu0
    %v2133 = vadd.f32 %v468, %v2132
    %v2134 = vpop.f32.mrf.mxu0
    %2135 = vdwg.mxu0
    %v2136 = vmin.f32 %v2122, 20.0
    %v2137 = vmin.f32 %v2125, 20.0
    %v2138 = vmin.f32 %v2130, 20.0
    %v2139 = vmin.f32 %v2133, 20.0
    %v2140 = vmul.f32 %v2136, 1.442695
    %v2141 = vpow.pop %v2140
    %v2142 = vmul.f32 %v2137, 1.442695
    %v2143 = vpow.pop %v2142
    %v2144 = vmul.f32 %v2138, 1.442695
    %v2145 = vpow.pop %v2144
    %v2146 = vmul.f32 %v2139, 1.442695
    %v2147 = vpow.pop %v2146
    %v2148 = vadd.f32 %v2141, 2.0
    %v2149 = vadd.f32 %v2143, 2.0
    %v2150 = vadd.f32 %v2145, 2.0
    %v2151 = vadd.f32 %v2147, 2.0
    %v2152 = vmul.f32 %v2141, %v2148
    %v2153 = vmul.f32 %v2143, %v2149
    %v2154 = vmul.f32 %v2145, %v2150
    %v2155 = vmul.f32 %v2147, %v2151
    %v2156 = vadd.f32 %v2152, 2.0
    %v2157 = vadd.f32 %v2153, 2.0
    %v2158 = vadd.f32 %v2154, 2.0
    %v2159 = vadd.f32 %v2155, 2.0
    %v2160 = vmul.f32 %v2122, %v2152
    %v2161 = vmul.f32 %v2125, %v2153
    %v2162 = vmul.f32 %v2130, %v2154
    %v2163 = vmul.f32 %v2133, %v2155
    %v2164 = vrcp.pop %v2156
    %v2165 = vrcp.pop %v2157
    %v2166 = vrcp.pop %v2158
    %v2167 = vrcp.pop %v2159
    %v2168 = vmul.f32 %v2160, %v2164
    %v2169 = vmul.f32 %v2161, %v2165
    %v2170 = vmul.f32 %v2162, %v2166
    %v2171 = vmul.f32 %v2163, %v2167
    %v2172 = vpack.c.bf16 %v2169, %v2168
    %v2173 = vpack.c.bf16 %v2171, %v2170
    %2174 = vmatprep.subr.bf16.mxu0 0
    %2175 = vmatpush1.bf16.msra.mxu0 %v650
    %2176 = vmatprep.subr.bf16.mxu0 0
    %2177 = vmatpush1.bf16.msra.mxu0 %v649
    %2178 = vmatprep.subr.bf16.mxu0 0
    %2179 = vmatpush1.bf16.msra.mxu0 %v648
    %2180 = vmatprep.subr.bf16.mxu0 0
    %2181 = vmatpush1.bf16.msra.mxu0 %v647
    %2182 = vmatprep.subr.bf16.mxu0 0
    %2183 = vmatpush1.bf16.msra.mxu0 %v646
    %2184 = vmatprep.subr.bf16.mxu0 0
    %2185 = vmatpush1.bf16.msra.mxu0 %v645
    %2186 = vmatprep.subr.bf16.mxu0 0
    %2187 = vmatpush1.bf16.msra.mxu0 %v644
    %2188 = vmatprep.subr.bf16.mxu0 0
    %2189 = vmatpush1.bf16.msra.mxu0 %v643
    %2190 = vmatprep.subr.bf16.mxu0 0
    %2191 = vmatpush2.bf16.msra.mxu0 0
    %2192 = vmatprep.subr.bf16.mxu0 0
    %2193 = vmatpush2.bf16.msra.mxu0 0
    %2194 = vmatprep.subr.bf16.mxu0 0
    %2195 = vmatpush2.bf16.msra.mxu0 0
    %2196 = vmatprep.subr.bf16.mxu0 0
    %2197 = vmatpush2.bf16.msra.mxu0 0
    %2198 = vmatprep.subr.bf16.mxu0 0
    %2199 = vmatpush2.bf16.msra.mxu0 0
    %2200 = vmatprep.subr.bf16.mxu0 0
    %2201 = vmatpush2.bf16.msra.mxu0 0
    %2202 = vmatprep.subr.bf16.mxu0 0
    %2203 = vmatpush2.bf16.msra.mxu0 0
    %2204 = vmatprep.subr.bf16.mxu0 0
    %2205 = vmatpush2.bf16.msra.mxu0 0
    %2206 = vmatprep.mubr.bf16.mxu0 0
    %2207 = vmatmul.mubr.bf16.gmra.mxu0 %v2172
    %v2208 = vpop.f32.mrf.mxu0
    %v2209 = vadd.f32 %v609, %v2208
    %v2210 = vpop.f32.mrf.mxu0
    %v2211 = vpop.f32.mrf.mxu0
    %v2212 = vadd.f32 %v609, %v2211
    %v2213 = vpop.f32.mrf.mxu0
    %2214 = vmatprep.mubr.bf16.mxu0 0
    %2215 = vmatmul.mubr.bf16.gmra.mxu0 %v2173
    %v2216 = vpop.f32.mrf.mxu0
    %v2217 = vadd.f32 %v609, %v2216
    %v2218 = vpop.f32.mrf.mxu0
    %v2219 = vpop.f32.mrf.mxu0
    %v2220 = vadd.f32 %v609, %v2219
    %v2221 = vpop.f32.mrf.mxu0
    %2222 = vdwg.mxu0
    %s2223 = sld [smem:[#allocation2 + $0x10]]
    %s2224 = sld [smem:[#allocation2 + $0x11]]
    %s2225 = sld [smem:[#allocation2 + $0x12]]
    %s2226 = sld [smem:[#allocation2 + $0x13]]
    %v2227 = vstv %s2223
    %v2228 = vmul.f32 %v2227, %v1892
    %v2229 = vmul.f32 %v2227, %v1893
    %v2230 = vmul.f32 %v2227, %v1894
    %v2231 = vmul.f32 %v2227, %v1895
    %v2232 = vstv %s2224
    %v2233 = vmul.f32 %v2232, %v2209
    %v2234 = vmul.f32 %v2232, %v2212
    %v2235 = vmul.f32 %v2232, %v2217
    %v2236 = vmul.f32 %v2232, %v2220
    %v2237 = vsub.f32 %v2228, %v2233
    %v2238 = vsub.f32 %v2229, %v2234
    %v2239 = vsub.f32 %v2230, %v2235
    %v2240 = vsub.f32 %v2231, %v2236
    %v2241 = vmax.f32 %v730, %v2237
    %v2242 = vmax.f32 %v730, %v2238
    %v2243 = vmax.f32 %v730, %v2239
    %v2244 = vmax.f32 %v730, %v2240
    %v2245 = vmin.f32 %v740, %v2241
    %v2246 = vmin.f32 %v740, %v2242
    %v2247 = vmin.f32 %v740, %v2243
    %v2248 = vmin.f32 %v740, %v2244
    %v2249 = vstv %s2225
    %v2250 = vmul.f32 %v2249, %v2245
    %v2251 = vmul.f32 %v2249, %v2246
    %v2252 = vmul.f32 %v2249, %v2247
    %v2253 = vmul.f32 %v2249, %v2248
    %v2254 = vstv %s2226
    %v2255 = vmul.f32 %v2254, %v1892
    %v2256 = vmul.f32 %v2254, %v1893
    %v2257 = vmul.f32 %v2254, %v1894
    %v2258 = vmul.f32 %v2254, %v1895
    %v2259 = vadd.f32 %v2250, %v2255
    %v2260 = vadd.f32 %v2251, %v2256
    %v2261 = vadd.f32 %v2252, %v2257
    %v2262 = vadd.f32 %v2253, %v2258
    %s2263 = scalar_lea.vmem %s2, 128
    %v2264 = vld [vmem:[%s2263] sm:$0xff]
    %v2265 = vld [vmem:[%s2263 + $0x8] sm:$0xff]
    %v2266 = vld [vmem:[%s2263 + $0x10] sm:$0xff]
    %v2267 = vld [vmem:[%s2263 + $0x18] sm:$0xff]
    %v2268 = vadd.f32 %v2259, %v2264
    %v2269 = vadd.f32 %v2260, %v2265
    %v2270 = vadd.f32 %v2261, %v2266
    %v2271 = vadd.f32 %v2262, %v2267
    %v2272 = vmax.f32 %v730, %v2268
    %v2273 = vmax.f32 %v730, %v2269
    %v2274 = vmax.f32 %v730, %v2270
    %v2275 = vmax.f32 %v730, %v2271
    %v2276 = vmin.f32 %v740, %v2272
    %v2277 = vmin.f32 %v740, %v2273
    %v2278 = vmin.f32 %v740, %v2274
    %v2279 = vmin.f32 %v740, %v2275
    %2280 = vst.msk [vmem:[%s22] sm:$0xff] %vm217, %v2276
    %2281 = vst.msk [vmem:[%s22 + $0x8] sm:$0xff] %vm217, %v2277
    %2282 = vst.msk [vmem:[%s22 + $0x10] sm:$0xff] %vm217, %v2278
    %2283 = vst.msk [vmem:[%s22 + $0x18] sm:$0xff] %vm217, %v2279
    %2288 = vrot.lane.b32.xlu0 %v2276, 16
    %v2289 = vpop.permute.xlu0 %2288
    %2290 = vrot.lane.b32.xlu0 %v2277, 16
    %v2291 = vpop.permute.xlu0 %2290
    %2292 = vrot.lane.b32.xlu0 %v2278, 16
    %v2293 = vpop.permute.xlu0 %2292
    %2294 = vrot.lane.b32.xlu0 %v2279, 16
    %v2295 = vpop.permute.xlu0 %2294
    %v2300 = vsel %vm154, %v86, %v2289
    %v2301 = vsel %vm154, %v87, %v2291
    %v2302 = vsel %vm154, %v88, %v2293
    %v2303 = vsel %vm154, %v89, %v2295
    %v2304 = vpack.c.bf16 %v2301, %v2300
    %v2305 = vpack.c.bf16 %v2303, %v2302
    %v2306 = vld [vmem:[%s15] sm:$0xff]
    %v2307 = vld [vmem:[%s15 + $0x8] sm:$0xff]
    %v2308 = vld [vmem:[%s15 + $0x10] sm:$0x33]
    %v2309 = vld [vmem:[%s16] sm:$0x3]
    %v2311 = vlaneseq
    %v2312 = vshrl.u32 %v2311, 7
    %v2313 = vsub.s32 0, %v2312
    %v2314 = vrot.slane %v2309, %v2313
    %v2315 = vlaneseq
    %v2316 = vshrl.u32 %v2315, 7
    %v2317 = vsub.s32 1, %v2316
    %v2318 = vrot.slane %v2309, %v2317
    %v2324 = vunpack.c.l.b16 %v2306
    %v2325 = vunpack.c.h.b16 %v2306
    %v2326 = vunpack.c.l.b16 %v2307
    %v2327 = vunpack.c.h.b16 %v2307
    %v2328 = vunpack.c.l.b16 %v2308
    %v2329 = vunpack.c.h.b16 %v2308
    %v2330 = vpack.c.b16 %v2326, %v2324
    %v2331 = vpack.c.b16 %v2327, %v2325
    %v2332 = vpack.c.b16 %v2328, %v2328
    %v2333 = vpack.c.b16 %v2329, %v2329
    %vm2336 = vcmask 162816
    %v2338 = vsel %vm2336, %v2304, 0
    %v2341 = vsel %vm2336, %v2305, 0
    %v2344 = vsel %vm224, %v2332, 0
    %v2347 = vsel %vm224, %v2333, 0
    %2349 = vmatprep.subr.bf16.mxu0 0
    %2350 = vmatpush1.bf16.msra.mxu0 0
    %2351 = vmatprep.subr.bf16.mxu0 0
    %2352 = vmatpush1.bf16.msra.mxu0 0
    %2353 = vmatprep.subr.bf16.mxu0 0
    %2354 = vmatpush1.bf16.msra.mxu0 0
    %2355 = vmatprep.subr.bf16.mxu0 0
    %2356 = vmatpush1.bf16.msra.mxu0 0
    %2357 = vmatprep.subr.bf16.mxu0 0
    %2358 = vmatpush1.bf16.msra.mxu0 0
    %2359 = vmatprep.subr.bf16.mxu0 0
    %2360 = vmatpush1.bf16.msra.mxu0 0
    %2361 = vmatprep.subr.bf16.mxu0 %v2347
    %2362 = vmatpush1.bf16.msra.mxu0 %v2344
    %2363 = vmatprep.subr.bf16.mxu0 %v2331
    %2364 = vmatpush1.bf16.msra.mxu0 %v2330
    %2365 = vmatprep.subr.bf16.mxu0 0
    %2366 = vmatpush2.bf16.msra.mxu0 0
    %2367 = vmatprep.subr.bf16.mxu0 0
    %2368 = vmatpush2.bf16.msra.mxu0 0
    %2369 = vmatprep.subr.bf16.mxu0 0
    %2370 = vmatpush2.bf16.msra.mxu0 0
    %2371 = vmatprep.subr.bf16.mxu0 0
    %2372 = vmatpush2.bf16.msra.mxu0 0
    %2373 = vmatprep.subr.bf16.mxu0 0
    %2374 = vmatpush2.bf16.msra.mxu0 0
    %2375 = vmatprep.subr.bf16.mxu0 0
    %2376 = vmatpush2.bf16.msra.mxu0 0
    %2377 = vmatprep.subr.bf16.mxu0 0
    %2378 = vmatpush2.bf16.msra.mxu0 0
    %2379 = vmatprep.subr.bf16.mxu0 0
    %2380 = vmatpush2.bf16.msra.mxu0 0
    %2381 = vmatprep.mubr.bf16.mxu0 0
    %2382 = vmatmul.mubr.bf16.gmra.mxu0 %v2338
    %v2383 = vpop.f32.mrf.mxu0
    %v2384 = vadd.f32 %v2314, %v2383
    %v2385 = vpop.f32.mrf.mxu0
    %v2386 = vadd.f32 %v2318, %v2385
    %v2387 = vpop.f32.mrf.mxu0
    %v2388 = vadd.f32 %v2314, %v2387
    %v2389 = vpop.f32.mrf.mxu0
    %v2390 = vadd.f32 %v2318, %v2389
    %2391 = vmatprep.mubr.bf16.mxu0 0
    %2392 = vmatmul.mubr.bf16.gmra.mxu0 %v2341
    %v2393 = vpop.f32.mrf.mxu0
    %v2394 = vadd.f32 %v2314, %v2393
    %v2395 = vpop.f32.mrf.mxu0
    %v2396 = vadd.f32 %v2318, %v2395
    %v2397 = vpop.f32.mrf.mxu0
    %v2398 = vadd.f32 %v2314, %v2397
    %v2399 = vpop.f32.mrf.mxu0
    %v2400 = vadd.f32 %v2318, %v2399
    %2401 = vdwg.mxu0
    %v2402 = vmax.f32 %v2384, 0.0
    %v2403 = vmax.f32 %v2386, 0.0
    %v2404 = vmax.f32 %v2388, 0.0
    %v2405 = vmax.f32 %v2390, 0.0
    %v2406 = vmax.f32 %v2394, 0.0
    %v2407 = vmax.f32 %v2396, 0.0
    %v2408 = vmax.f32 %v2398, 0.0
    %v2409 = vmax.f32 %v2400, 0.0
    %v2410 = vpack.c.bf16 %v2404, %v2402
    %v2411 = vpack.c.bf16 %v2405, %v2403
    %v2412 = vpack.c.bf16 %v2408, %v2406
    %v2413 = vpack.c.bf16 %v2409, %v2407
    %v2414 = vld [vmem:[%s17] sm:$0xff]
    %v2415 = vld [vmem:[%s17 + $0x8] sm:$0xff]
    %v2416 = vld [vmem:[%s17 + $0x10] sm:$0xff]
    %v2417 = vld [vmem:[%s17 + $0x18] sm:$0xff]
    %v2418 = vld [vmem:[%s17 + $0x20] sm:$0xff]
    %v2419 = vld [vmem:[%s17 + $0x28] sm:$0xff]
    %v2420 = vld [vmem:[%s17 + $0x30] sm:$0xff]
    %v2421 = vld [vmem:[%s17 + $0x38] sm:$0xff]
    %v2422 = vld [vmem:[%s17 + $0x40] sm:$0xff]
    %v2423 = vld [vmem:[%s17 + $0x48] sm:$0xff]
    %v2424 = vld [vmem:[%s17 + $0x50] sm:$0xff]
    %v2425 = vld [vmem:[%s17 + $0x58] sm:$0xff]
    %v2426 = vld [vmem:[%s17 + $0x60] sm:$0xff]
    %v2427 = vld [vmem:[%s17 + $0x68] sm:$0xff]
    %v2428 = vld [vmem:[%s17 + $0x70] sm:$0xff]
    %v2429 = vld [vmem:[%s17 + $0x78] sm:$0xff]
    %v2430 = vld [vmem:[%s17 + $0x80] sm:$0xff]
    %v2431 = vld [vmem:[%s17 + $0x88] sm:$0xff]
    %v2432 = vld [vmem:[%s17 + $0x90] sm:$0xff]
    %v2433 = vld [vmem:[%s17 + $0x98] sm:$0xff]
    %v2434 = vld [vmem:[%s17 + $0xa0] sm:$0xff]
    %v2435 = vld [vmem:[%s17 + $0xa8] sm:$0xff]
    %v2436 = vld [vmem:[%s17 + $0xb0] sm:$0xff]
    %v2437 = vld [vmem:[%s17 + $0xb8] sm:$0xff]
    %v2438 = vld [vmem:[%s17 + $0xc0] sm:$0xff]
    %v2439 = vld [vmem:[%s17 + $0xc8] sm:$0xff]
    %v2440 = vld [vmem:[%s17 + $0xd0] sm:$0xff]
    %v2441 = vld [vmem:[%s17 + $0xd8] sm:$0xff]
    %v2442 = vld [vmem:[%s17 + $0xe0] sm:$0xff]
    %v2443 = vld [vmem:[%s17 + $0xe8] sm:$0xff]
    %v2444 = vld [vmem:[%s17 + $0xf0] sm:$0xff]
    %v2445 = vld [vmem:[%s17 + $0xf8] sm:$0xff]
    %v2446 = vld [vmem:[%s18] sm:$0x3]
    %v2448 = vlaneseq
    %v2449 = vshrl.u32 %v2448, 7
    %v2450 = vsub.s32 0, %v2449
    %v2451 = vrot.slane %v2446, %v2450
    %v2452 = vlaneseq
    %v2453 = vshrl.u32 %v2452, 7
    %v2454 = vsub.s32 1, %v2453
    %v2455 = vrot.slane %v2446, %v2454
    %v2490 = vunpack.c.l.b16 %v2414
    %v2491 = vunpack.c.h.b16 %v2414
    %v2492 = vunpack.c.l.b16 %v2415
    %v2493 = vunpack.c.h.b16 %v2415
    %v2494 = vunpack.c.l.b16 %v2416
    %v2495 = vunpack.c.h.b16 %v2416
    %v2496 = vunpack.c.l.b16 %v2417
    %v2497 = vunpack.c.h.b16 %v2417
    %v2498 = vunpack.c.l.b16 %v2418
    %v2499 = vunpack.c.h.b16 %v2418
    %v2500 = vunpack.c.l.b16 %v2419
    %v2501 = vunpack.c.h.b16 %v2419
    %v2502 = vunpack.c.l.b16 %v2420
    %v2503 = vunpack.c.h.b16 %v2420
    %v2504 = vunpack.c.l.b16 %v2421
    %v2505 = vunpack.c.h.b16 %v2421
    %v2506 = vunpack.c.l.b16 %v2422
    %v2507 = vunpack.c.h.b16 %v2422
    %v2508 = vunpack.c.l.b16 %v2423
    %v2509 = vunpack.c.h.b16 %v2423
    %v2510 = vunpack.c.l.b16 %v2424
    %v2511 = vunpack.c.h.b16 %v2424
    %v2512 = vunpack.c.l.b16 %v2425
    %v2513 = vunpack.c.h.b16 %v2425
    %v2514 = vunpack.c.l.b16 %v2426
    %v2515 = vunpack.c.h.b16 %v2426
    %v2516 = vunpack.c.l.b16 %v2427
    %v2517 = vunpack.c.h.b16 %v2427
    %v2518 = vunpack.c.l.b16 %v2428
    %v2519 = vunpack.c.h.b16 %v2428
    %v2520 = vunpack.c.l.b16 %v2429
    %v2521 = vunpack.c.h.b16 %v2429
    %v2522 = vunpack.c.l.b16 %v2430
    %v2523 = vunpack.c.h.b16 %v2430
    %v2524 = vunpack.c.l.b16 %v2431
    %v2525 = vunpack.c.h.b16 %v2431
    %v2526 = vunpack.c.l.b16 %v2432
    %v2527 = vunpack.c.h.b16 %v2432
    %v2528 = vunpack.c.l.b16 %v2433
    %v2529 = vunpack.c.h.b16 %v2433
    %v2530 = vunpack.c.l.b16 %v2434
    %v2531 = vunpack.c.h.b16 %v2434
    %v2532 = vunpack.c.l.b16 %v2435
    %v2533 = vunpack.c.h.b16 %v2435
    %v2534 = vunpack.c.l.b16 %v2436
    %v2535 = vunpack.c.h.b16 %v2436
    %v2536 = vunpack.c.l.b16 %v2437
    %v2537 = vunpack.c.h.b16 %v2437
    %v2538 = vunpack.c.l.b16 %v2438
    %v2539 = vunpack.c.h.b16 %v2438
    %v2540 = vunpack.c.l.b16 %v2439
    %v2541 = vunpack.c.h.b16 %v2439
    %v2542 = vunpack.c.l.b16 %v2440
    %v2543 = vunpack.c.h.b16 %v2440
    %v2544 = vunpack.c.l.b16 %v2441
    %v2545 = vunpack.c.h.b16 %v2441
    %v2546 = vunpack.c.l.b16 %v2442
    %v2547 = vunpack.c.h.b16 %v2442
    %v2548 = vunpack.c.l.b16 %v2443
    %v2549 = vunpack.c.h.b16 %v2443
    %v2550 = vunpack.c.l.b16 %v2444
    %v2551 = vunpack.c.h.b16 %v2444
    %v2552 = vunpack.c.l.b16 %v2445
    %v2553 = vunpack.c.h.b16 %v2445
    %v2554 = vpack.c.b16 %v2492, %v2490
    %v2555 = vpack.c.b16 %v2493, %v2491
    %v2556 = vpack.c.b16 %v2496, %v2494
    %v2557 = vpack.c.b16 %v2497, %v2495
    %v2558 = vpack.c.b16 %v2500, %v2498
    %v2559 = vpack.c.b16 %v2501, %v2499
    %v2560 = vpack.c.b16 %v2504, %v2502
    %v2561 = vpack.c.b16 %v2505, %v2503
    %v2562 = vpack.c.b16 %v2508, %v2506
    %v2563 = vpack.c.b16 %v2509, %v2507
    %v2564 = vpack.c.b16 %v2512, %v2510
    %v2565 = vpack.c.b16 %v2513, %v2511
    %v2566 = vpack.c.b16 %v2516, %v2514
    %v2567 = vpack.c.b16 %v2517, %v2515
    %v2568 = vpack.c.b16 %v2520, %v2518
    %v2569 = vpack.c.b16 %v2521, %v2519
    %v2570 = vpack.c.b16 %v2524, %v2522
    %v2571 = vpack.c.b16 %v2525, %v2523
    %v2572 = vpack.c.b16 %v2528, %v2526
    %v2573 = vpack.c.b16 %v2529, %v2527
    %v2574 = vpack.c.b16 %v2532, %v2530
    %v2575 = vpack.c.b16 %v2533, %v2531
    %v2576 = vpack.c.b16 %v2536, %v2534
    %v2577 = vpack.c.b16 %v2537, %v2535
    %v2578 = vpack.c.b16 %v2540, %v2538
    %v2579 = vpack.c.b16 %v2541, %v2539
    %v2580 = vpack.c.b16 %v2544, %v2542
    %v2581 = vpack.c.b16 %v2545, %v2543
    %v2582 = vpack.c.b16 %v2548, %v2546
    %v2583 = vpack.c.b16 %v2549, %v2547
    %v2584 = vpack.c.b16 %v2552, %v2550
    %v2585 = vpack.c.b16 %v2553, %v2551
    %2618 = vmatprep.subr.bf16.mxu0 %v2569
    %2619 = vmatpush1.bf16.msra.mxu0 %v2568
    %2620 = vmatprep.subr.bf16.mxu0 %v2567
    %2621 = vmatpush1.bf16.msra.mxu0 %v2566
    %2622 = vmatprep.subr.bf16.mxu0 %v2565
    %2623 = vmatpush1.bf16.msra.mxu0 %v2564
    %2624 = vmatprep.subr.bf16.mxu0 %v2563
    %2625 = vmatpush1.bf16.msra.mxu0 %v2562
    %2626 = vmatprep.subr.bf16.mxu0 %v2561
    %2627 = vmatpush1.bf16.msra.mxu0 %v2560
    %2628 = vmatprep.subr.bf16.mxu0 %v2559
    %2629 = vmatpush1.bf16.msra.mxu0 %v2558
    %2630 = vmatprep.subr.bf16.mxu0 %v2557
    %2631 = vmatpush1.bf16.msra.mxu0 %v2556
    %2632 = vmatprep.subr.bf16.mxu0 %v2555
    %2633 = vmatpush1.bf16.msra.mxu0 %v2554
    %2634 = vmatprep.subr.bf16.mxu0 %v2585
    %2635 = vmatpush2.bf16.msra.mxu0 %v2584
    %2636 = vmatprep.subr.bf16.mxu0 %v2583
    %2637 = vmatpush2.bf16.msra.mxu0 %v2582
    %2638 = vmatprep.subr.bf16.mxu0 %v2581
    %2639 = vmatpush2.bf16.msra.mxu0 %v2580
    %2640 = vmatprep.subr.bf16.mxu0 %v2579
    %2641 = vmatpush2.bf16.msra.mxu0 %v2578
    %2642 = vmatprep.subr.bf16.mxu0 %v2577
    %2643 = vmatpush2.bf16.msra.mxu0 %v2576
    %2644 = vmatprep.subr.bf16.mxu0 %v2575
    %2645 = vmatpush2.bf16.msra.mxu0 %v2574
    %2646 = vmatprep.subr.bf16.mxu0 %v2573
    %2647 = vmatpush2.bf16.msra.mxu0 %v2572
    %2648 = vmatprep.subr.bf16.mxu0 %v2571
    %2649 = vmatpush2.bf16.msra.mxu0 %v2570
    %2650 = vmatprep.mubr.bf16.mxu0 %v2411
    %2651 = vmatmul.mubr.bf16.gmra.mxu0 %v2410
    %v2652 = vpop.f32.mrf.mxu0
    %v2653 = vadd.f32 %v2451, %v2652
    %v2654 = vpop.f32.mrf.mxu0
    %v2655 = vadd.f32 %v2455, %v2654
    %v2656 = vpop.f32.mrf.mxu0
    %v2657 = vadd.f32 %v2451, %v2656
    %v2658 = vpop.f32.mrf.mxu0
    %v2659 = vadd.f32 %v2455, %v2658
    %2660 = vmatprep.mubr.bf16.mxu0 %v2413
    %2661 = vmatmul.mubr.bf16.gmra.mxu0 %v2412
    %v2662 = vpop.f32.mrf.mxu0
    %v2663 = vadd.f32 %v2451, %v2662
    %v2664 = vpop.f32.mrf.mxu0
    %v2665 = vadd.f32 %v2455, %v2664
    %v2666 = vpop.f32.mrf.mxu0
    %v2667 = vadd.f32 %v2451, %v2666
    %v2668 = vpop.f32.mrf.mxu0
    %v2669 = vadd.f32 %v2455, %v2668
    %2670 = vdwg.mxu0
    %v2671 = vmax.f32 %v2653, 0.0
    %v2672 = vmax.f32 %v2655, 0.0
    %v2673 = vmax.f32 %v2657, 0.0
    %v2674 = vmax.f32 %v2659, 0.0
    %v2675 = vmax.f32 %v2663, 0.0
    %v2676 = vmax.f32 %v2665, 0.0
    %v2677 = vmax.f32 %v2667, 0.0
    %v2678 = vmax.f32 %v2669, 0.0
    %v2679 = vpack.c.bf16 %v2673, %v2671
    %v2680 = vpack.c.bf16 %v2674, %v2672
    %v2681 = vpack.c.bf16 %v2677, %v2675
    %v2682 = vpack.c.bf16 %v2678, %v2676
    %v2683 = vld [vmem:[%s19] sm:$0xf]
    %v2684 = vld [vmem:[%s19 + $0x4] sm:$0xf]
    %v2685 = vld [vmem:[%s19 + $0x8] sm:$0xf]
    %v2686 = vld [vmem:[%s19 + $0xc] sm:$0xf]
    %v2687 = vld [vmem:[%s19 + $0x10] sm:$0xf]
    %v2688 = vld [vmem:[%s19 + $0x14] sm:$0xf]
    %v2689 = vld [vmem:[%s19 + $0x18] sm:$0xf]
    %v2690 = vld [vmem:[%s19 + $0x1c] sm:$0xf]
    %v2691 = vld [vmem:[%s19 + $0x20] sm:$0xf]
    %v2692 = vld [vmem:[%s19 + $0x24] sm:$0xf]
    %v2693 = vld [vmem:[%s19 + $0x28] sm:$0xf]
    %v2694 = vld [vmem:[%s19 + $0x2c] sm:$0xf]
    %v2695 = vld [vmem:[%s19 + $0x30] sm:$0xf]
    %v2696 = vld [vmem:[%s19 + $0x34] sm:$0xf]
    %v2697 = vld [vmem:[%s19 + $0x38] sm:$0xf]
    %v2698 = vld [vmem:[%s19 + $0x3c] sm:$0xf]
    %v2699 = vld [vmem:[%s19 + $0x40] sm:$0xf]
    %v2700 = vld [vmem:[%s19 + $0x44] sm:$0xf]
    %v2701 = vld [vmem:[%s19 + $0x48] sm:$0xf]
    %v2702 = vld [vmem:[%s19 + $0x4c] sm:$0xf]
    %v2703 = vld [vmem:[%s19 + $0x50] sm:$0xf]
    %v2704 = vld [vmem:[%s19 + $0x54] sm:$0xf]
    %v2705 = vld [vmem:[%s19 + $0x58] sm:$0xf]
    %v2706 = vld [vmem:[%s19 + $0x5c] sm:$0xf]
    %v2707 = vld [vmem:[%s19 + $0x60] sm:$0xf]
    %v2708 = vld [vmem:[%s19 + $0x64] sm:$0xf]
    %v2709 = vld [vmem:[%s19 + $0x68] sm:$0xf]
    %v2710 = vld [vmem:[%s19 + $0x6c] sm:$0xf]
    %v2711 = vld [vmem:[%s19 + $0x70] sm:$0xf]
    %v2712 = vld [vmem:[%s19 + $0x74] sm:$0xf]
    %v2713 = vld [vmem:[%s19 + $0x78] sm:$0xf]
    %v2714 = vld [vmem:[%s19 + $0x7c] sm:$0xf]
    %v2715 = vld [vmem:[%s20] sm:$0x1]
    %v2717 = vlaneseq
    %v2718 = vshrl.u32 %v2717, 7
    %v2719 = vsub.s32 0, %v2718
    %v2720 = vrot.slane %v2715, %v2719
    %v2754 = vunpack.c.l.b16 %v2683
    %v2755 = vunpack.c.l.b16 %v2684
    %v2756 = vunpack.c.l.b16 %v2685
    %v2757 = vunpack.c.l.b16 %v2686
    %v2758 = vunpack.c.l.b16 %v2687
    %v2759 = vunpack.c.l.b16 %v2688
    %v2760 = vunpack.c.l.b16 %v2689
    %v2761 = vunpack.c.l.b16 %v2690
    %v2762 = vunpack.c.l.b16 %v2691
    %v2763 = vunpack.c.l.b16 %v2692
    %v2764 = vunpack.c.l.b16 %v2693
    %v2765 = vunpack.c.l.b16 %v2694
    %v2766 = vunpack.c.l.b16 %v2695
    %v2767 = vunpack.c.l.b16 %v2696
    %v2768 = vunpack.c.l.b16 %v2697
    %v2769 = vunpack.c.l.b16 %v2698
    %v2770 = vunpack.c.l.b16 %v2699
    %v2771 = vunpack.c.l.b16 %v2700
    %v2772 = vunpack.c.l.b16 %v2701
    %v2773 = vunpack.c.l.b16 %v2702
    %v2774 = vunpack.c.l.b16 %v2703
    %v2775 = vunpack.c.l.b16 %v2704
    %v2776 = vunpack.c.l.b16 %v2705
    %v2777 = vunpack.c.l.b16 %v2706
    %v2778 = vunpack.c.l.b16 %v2707
    %v2779 = vunpack.c.l.b16 %v2708
    %v2780 = vunpack.c.l.b16 %v2709
    %v2781 = vunpack.c.l.b16 %v2710
    %v2782 = vunpack.c.l.b16 %v2711
    %v2783 = vunpack.c.l.b16 %v2712
    %v2784 = vunpack.c.l.b16 %v2713
    %v2785 = vunpack.c.l.b16 %v2714
    %v2786 = vpack.c.b16 %v2755, %v2754
    %v2787 = vpack.c.b16 %v2757, %v2756
    %v2788 = vpack.c.b16 %v2759, %v2758
    %v2789 = vpack.c.b16 %v2761, %v2760
    %v2790 = vpack.c.b16 %v2763, %v2762
    %v2791 = vpack.c.b16 %v2765, %v2764
    %v2792 = vpack.c.b16 %v2767, %v2766
    %v2793 = vpack.c.b16 %v2769, %v2768
    %v2794 = vpack.c.b16 %v2771, %v2770
    %v2795 = vpack.c.b16 %v2773, %v2772
    %v2796 = vpack.c.b16 %v2775, %v2774
    %v2797 = vpack.c.b16 %v2777, %v2776
    %v2798 = vpack.c.b16 %v2779, %v2778
    %v2799 = vpack.c.b16 %v2781, %v2780
    %v2800 = vpack.c.b16 %v2783, %v2782
    %v2801 = vpack.c.b16 %v2785, %v2784
    %2818 = vmatprep.subr.bf16.mxu0 0
    %2819 = vmatpush1.bf16.msra.mxu0 %v2793
    %2820 = vmatprep.subr.bf16.mxu0 0
    %2821 = vmatpush1.bf16.msra.mxu0 %v2792
    %2822 = vmatprep.subr.bf16.mxu0 0
    %2823 = vmatpush1.bf16.msra.mxu0 %v2791
    %2824 = vmatprep.subr.bf16.mxu0 0
    %2825 = vmatpush1.bf16.msra.mxu0 %v2790
    %2826 = vmatprep.subr.bf16.mxu0 0
    %2827 = vmatpush1.bf16.msra.mxu0 %v2789
    %2828 = vmatprep.subr.bf16.mxu0 0
    %2829 = vmatpush1.bf16.msra.mxu0 %v2788
    %2830 = vmatprep.subr.bf16.mxu0 0
    %2831 = vmatpush1.bf16.msra.mxu0 %v2787
    %2832 = vmatprep.subr.bf16.mxu0 0
    %2833 = vmatpush1.bf16.msra.mxu0 %v2786
    %2834 = vmatprep.subr.bf16.mxu0 0
    %2835 = vmatpush2.bf16.msra.mxu0 %v2801
    %2836 = vmatprep.subr.bf16.mxu0 0
    %2837 = vmatpush2.bf16.msra.mxu0 %v2800
    %2838 = vmatprep.subr.bf16.mxu0 0
    %2839 = vmatpush2.bf16.msra.mxu0 %v2799
    %2840 = vmatprep.subr.bf16.mxu0 0
    %2841 = vmatpush2.bf16.msra.mxu0 %v2798
    %2842 = vmatprep.subr.bf16.mxu0 0
    %2843 = vmatpush2.bf16.msra.mxu0 %v2797
    %2844 = vmatprep.subr.bf16.mxu0 0
    %2845 = vmatpush2.bf16.msra.mxu0 %v2796
    %2846 = vmatprep.subr.bf16.mxu0 0
    %2847 = vmatpush2.bf16.msra.mxu0 %v2795
    %2848 = vmatprep.subr.bf16.mxu0 0
    %2849 = vmatpush2.bf16.msra.mxu0 %v2794
    %2850 = vmatprep.mubr.bf16.mxu0 %v2680
    %2851 = vmatmul.mubr.bf16.gmra.mxu0 %v2679
    %v2852 = vpop.f32.mrf.mxu0
    %v2853 = vadd.f32 %v2720, %v2852
    %v2854 = vpop.f32.mrf.mxu0
    %v2855 = vpop.f32.mrf.mxu0
    %v2856 = vadd.f32 %v2720, %v2855
    %v2857 = vpop.f32.mrf.mxu0
    %2858 = vmatprep.mubr.bf16.mxu0 %v2682
    %2859 = vmatmul.mubr.bf16.gmra.mxu0 %v2681
    %v2860 = vpop.f32.mrf.mxu0
    %v2861 = vadd.f32 %v2720, %v2860
    %v2862 = vpop.f32.mrf.mxu0
    %v2863 = vpop.f32.mrf.mxu0
    %v2864 = vadd.f32 %v2720, %v2863
    %v2865 = vpop.f32.mrf.mxu0
    %2866 = vdwg.mxu0
    %2867 = vxpose.xlu0.b32.start [1/16] %v2853, 128
    %2868 = vxpose.xlu0.b32.cont [2/16] %v2856, 128
    %2869 = vxpose.xlu0.b32.cont [3/16] %v2861, 128
    %2870 = vxpose.xlu0.b32.cont [4/16] %v2864, 128
    %2871 = vxpose.xlu0.b32.cont [5/16] 0.0, 128
    %2872 = vxpose.xlu0.b32.cont [6/16] 0.0, 128
    %2873 = vxpose.xlu0.b32.cont [7/16] 0.0, 128
    %2874 = vxpose.xlu0.b32.cont [8/16] 0.0, 128
    %2875 = vxpose.xlu0.b32.cont [9/16] 0.0, 128
    %2876 = vxpose.xlu0.b32.cont [10/16] 0.0, 128
    %2877 = vxpose.xlu0.b32.cont [11/16] 0.0, 128
    %2878 = vxpose.xlu0.b32.cont [12/16] 0.0, 128
    %2879 = vxpose.xlu0.b32.cont [13/16] 0.0, 128
    %2880 = vxpose.xlu0.b32.cont [14/16] 0.0, 128
    %2881 = vxpose.xlu0.b32.cont [15/16] 0.0, 128
    %2882 = vxpose.xlu0.b32.end [16/16] 0.0, 128
    %v2883 = vpop.trf.xlu0
    %v2884 = vpop.trf.xlu0
    %v2885 = vpop.trf.xlu0
    %v2886 = vpop.trf.xlu0
    %v2887 = vpop.trf.xlu0
    %v2888 = vpop.trf.xlu0
    %v2889 = vpop.trf.xlu0
    %v2890 = vpop.trf.xlu0
    %v2891 = vpop.trf.xlu0
    %v2892 = vpop.trf.xlu0
    %v2893 = vpop.trf.xlu0
    %v2894 = vpop.trf.xlu0
    %v2895 = vpop.trf.xlu0
    %v2896 = vpop.trf.xlu0
    %v2897 = vpop.trf.xlu0
    %v2898 = vpop.trf.xlu0
    %vm2899 = vcmask 254976
    %v2900 = vsel %vm2899, %v2883, inf
    %v2901 = vrot.slane %v2900, 4
    %v2902 = vmin.f32 %v2900, %v2901
    %v2903 = vrot.slane %v2902, 2
    %v2904 = vmin.f32 %v2902, %v2903
    %v2905 = vrot.slane %v2904, 1
    %v2906 = vmin.f32 %v2904, %v2905
    %v2907 = vlaneseq
    %v2908 = vand.u32 %v2907, 127
    %v2909 = vlaneseq
    %v2910 = vshrl.u32 %v2909, 7
    %v2911 = vmul.u32 %v2910, 16
    %vm2912 = vcmp.ge.s32.totalorder %v2908, %v2911
    %v2913 = vadd.s32 %v2910, 1
    %v2914 = vmul.u32 %v2913, 16
    %vm2915 = vcmp.lt.s32.totalorder %v2908, %v2914
    %vm2916 = vmand %vm2912, %vm2915
    %v2917 = vsel %vm2916, %v2906, -inf
    %v2918 = vsel %vm2899, %v2917, -inf
    %2919 = vmax.xlane.f32.xlu0 %v2918
    %v2920 = vpop.xlane.xlu0 %2919
    %v2921 = vcvt.s32.f32 %v2908
    %vm2922 = vcmp.ge.f32.partialorder %v2917, %v2920
    %vm2923 = vmand %vm2916, %vm2922
    %v2924 = vsel %vm2923, %v2921, 32.0
    %v2925 = vsel %vm2899, %v2924, inf
    %2926 = vmin.xlane.f32.xlu0 %v2925
    %v2927 = vpop.xlane.xlu0 %2926
    %vm2928 = vcmp.eq.f32.partialorder %v2921, %v2927
    %v2929 = vsel %vm2928, 1, 0
    %v2930 = vcvt.s32.f32 %v2929
    %vm2931 = vcmask 261120
    %v2933 = vsel %vm2931, %v2930, 0
    %2935 = vmatprep.subr.mxu0 0.0
    %2936 = vmatpush1.msra.mxu0 0.0
    %2937 = vmatprep.subr.mxu0 0.0
    %2938 = vmatpush1.msra.mxu0 0.0
    %2939 = vmatprep.subr.mxu0 0.0
    %2940 = vmatpush1.msra.mxu0 0.0
    %2941 = vmatprep.subr.mxu0 0.0
    %2942 = vmatpush1.msra.mxu0 0.0
    %2943 = vmatprep.subr.mxu0 0.0
    %2944 = vmatpush1.msra.mxu0 0.0
    %2945 = vmatprep.subr.mxu0 0.0
    %2946 = vmatpush1.msra.mxu0 0.0
    %2947 = vmatprep.subr.mxu0 0.0
    %2948 = vmatpush1.msra.mxu0 0.0
    %2949 = vmatprep.subr.mxu0 0.0
    %2950 = vmatpush1.msra.mxu0 0.0
    %2951 = vmatprep.subr.mxu0 0.0
    %2952 = vmatpush1.msra.mxu0 0.0
    %2953 = vmatprep.subr.mxu0 0.0
    %2954 = vmatpush1.msra.mxu0 0.0
    %2955 = vmatprep.subr.mxu0 0.0
    %2956 = vmatpush1.msra.mxu0 0.0
    %2957 = vmatprep.subr.mxu0 0.0
    %2958 = vmatpush1.msra.mxu0 0.0
    %2959 = vmatprep.subr.mxu0 0.0
    %2960 = vmatpush1.msra.mxu0 %v2279
    %2961 = vmatprep.subr.mxu0 0.0
    %2962 = vmatpush1.msra.mxu0 %v2278
    %2963 = vmatprep.subr.mxu0 0.0
    %2964 = vmatpush1.msra.mxu0 %v2277
    %2965 = vmatprep.subr.mxu0 0.0
    %2966 = vmatpush1.msra.mxu0 %v2276
    %2967 = vmatprep.subr.mxu0 0.0
    %2968 = vmatpush2.msra.mxu0 0.0
    %2969 = vmatprep.subr.mxu0 0.0
    %2970 = vmatpush2.msra.mxu0 0.0
    %2971 = vmatprep.subr.mxu0 0.0
    %2972 = vmatpush2.msra.mxu0 0.0
    %2973 = vmatprep.subr.mxu0 0.0
    %2974 = vmatpush2.msra.mxu0 0.0
    %2975 = vmatprep.subr.mxu0 0.0
    %2976 = vmatpush2.msra.mxu0 0.0
    %2977 = vmatprep.subr.mxu0 0.0
    %2978 = vmatpush2.msra.mxu0 0.0
    %2979 = vmatprep.subr.mxu0 0.0
    %2980 = vmatpush2.msra.mxu0 0.0
    %2981 = vmatprep.subr.mxu0 0.0
    %2982 = vmatpush2.msra.mxu0 0.0
    %2983 = vmatprep.subr.mxu0 0.0
    %2984 = vmatpush2.msra.mxu0 0.0
    %2985 = vmatprep.subr.mxu0 0.0
    %2986 = vmatpush2.msra.mxu0 0.0
    %2987 = vmatprep.subr.mxu0 0.0
    %2988 = vmatpush2.msra.mxu0 0.0
    %2989 = vmatprep.subr.mxu0 0.0
    %2990 = vmatpush2.msra.mxu0 0.0
    %2991 = vmatprep.subr.mxu0 0.0
    %2992 = vmatpush2.msra.mxu0 0.0
    %2993 = vmatprep.subr.mxu0 0.0
    %2994 = vmatpush2.msra.mxu0 0.0
    %2995 = vmatprep.subr.mxu0 0.0
    %2996 = vmatpush2.msra.mxu0 0.0
    %2997 = vmatprep.subr.mxu0 0.0
    %2998 = vmatpush2.msra.mxu0 0.0
    %2999 = vmatprep.mubr.f32.mxu0 0.0
    %3000 = vmatmul.mubr.f32.gmra.mxu0 %v2933
    %v3001 = vpop.f32.mrf.mxu0
    %v3002 = vadd.f32 0.0, %v3001
    %v3003 = vpop.f32.mrf.mxu0
    %3004 = vdwg.mxu0
    %vm3005 = vcmask 25600
    %3006 = vst.msk [vmem:[#allocation5] sm:$0x3] %vm3005, %v3002
    %v3007 = vsel %vm2916, %v2906, 0.0
    %v3008 = vsel %vm2899, %v3007, 0.0
    %3009 = vadd.xlane.f32.xlu0 %v3008
    %v3010 = vpop.xlane.xlu0 %3009
    %v3011 = vmul.f32 %v3010, 0.0625
    %vm3012 = vcmask 1024
    %3013 = vst.msk [vmem:[%s23] sm:$0x3] %vm3012, %v3011
    // Predicated region
    $region90: #{diffusion_actor_critic_forward.3} parent=1 // pred_check
      _
    $region91: #{diffusion_actor_critic_forward.3} parent=1 // pred_check_branch
      %3015 = sbr.rel (0) target = $region93
    $region92: #{diffusion_actor_critic_forward.3} parent=1 // pred_region
      %s3017 = ssub.s32 32, 32
      %3018 = vsyncadd [#allocation3], %s3017
      %s3020 = sshll.u32 [#allocation5], 4
      %s3021 = int_to_ptr.vmem [resolvable:$true] %s3020
      %3023 = dma.vmem_to_hbm [thread:$0]  %s3021, 32, %s21, [#allocation3]
    $region93: #{diffusion_actor_critic_forward.3} parent=1 // pred_fallthru
      _
    // Predicated region
    $region94: #{diffusion_actor_critic_forward.3} parent=1 // pred_check
      _
    $region95: #{diffusion_actor_critic_forward.3} parent=1 // pred_check_branch
      %3025 = sbr.rel (0) target = $region97
    $region96: #{diffusion_actor_critic_forward.3} parent=1 // pred_region
      _
    $region97: #{diffusion_actor_critic_forward.3} parent=1 // pred_fallthru
      _
    // Predicated region
    $region98: #{diffusion_actor_critic_forward.3} parent=1 // pred_check
      _
    $region99: #{diffusion_actor_critic_forward.3} parent=1 // pred_check_branch
      %3027 = sbr.rel (0) target = $region101
    $region100: #{diffusion_actor_critic_forward.3} parent=1 // pred_region
      _
    $region101: #{diffusion_actor_critic_forward.3} parent=1 // pred_fallthru
      _
    // Predicated region
    $region102: #{diffusion_actor_critic_forward.3} parent=1 // pred_check
      _
    $region103: #{diffusion_actor_critic_forward.3} parent=1 // pred_check_branch
      %3029 = sbr.rel (0) target = $region105
    $region104: #{diffusion_actor_critic_forward.3} parent=1 // pred_region
      %3030 = dma.done [#allocation3], 32
    $region105: #{diffusion_actor_critic_forward.3} parent=1 // pred_fallthru
      _
    // Predicated region
    $region106: #{diffusion_actor_critic_forward.3} parent=1 // pred_check
      _
    $region107: #{diffusion_actor_critic_forward.3} parent=1 // pred_check_branch
      %3032 = sbr.rel (0) target = $region109
    $region108: #{diffusion_actor_critic_forward.3} parent=1 // pred_region
      _
    $region109: #{diffusion_actor_critic_forward.3} parent=1 // pred_fallthru
      _
    // Predicated region
    $region110: #{diffusion_actor_critic_forward.3} parent=1 // pred_check
      _
    $region111: #{diffusion_actor_critic_forward.3} parent=1 // pred_check_branch
      %3034 = sbr.rel (0) target = $region113
    $region112: #{diffusion_actor_critic_forward.3} parent=1 // pred_region
      _
    $region113: #{diffusion_actor_critic_forward.3} parent=1 // pred_fallthru
      _
    %3035 = vsyncpa [#allocation3], 1
    %3036 = vsyncpa [#allocation4], 1

</llo_original>
